<compile_context>
chip_gen: v5e
topology: v5e:2x2
jax: 0.10.0
libtpu: 0.0.40
codegen_flags: <defaults>
</compile_context>

<pallas_src>
import functools
import math
from typing import NamedTuple

import jax
import jax.numpy as jnp
from jax import lax
from jax.experimental import pallas as pl
from jax.experimental.pallas import tpu as pltpu

_SQRT1_2 = 1.0 / math.sqrt(2.0)


# -----------------------------------------------------------------------------
# In-kernel helpers (f32 math)
# -----------------------------------------------------------------------------
def _layernorm(x, gamma, beta, eps):
    mu = jnp.mean(x, axis=-1, keepdims=True)
    var = jnp.mean(jnp.square(x - mu), axis=-1, keepdims=True)
    return (x - mu) * lax.rsqrt(var + eps) * gamma + beta


def _gelu_erf(x):  # exact erf GELU (PyTorch nn.GELU default)
    return 0.5 * x * (1.0 + lax.erf(x * jnp.float32(_SQRT1_2)))


# -----------------------------------------------------------------------------
# Patch-embed matmul: batch folded into the M (row) dimension (feedback #1).
# -----------------------------------------------------------------------------
def _matmul2d_kernel(x_ref, w_ref, o_ref):
    o_ref[...] = jnp.dot(x_ref[...].astype(jnp.bfloat16), w_ref[...],
                         preferred_element_type=jnp.float32).astype(o_ref.dtype)


def matmul2d(x, w, *, tm=16, tn=128):
    """(M, K) @ (K, N) -> (M, N) f32.  Weights are bf16, accumulate in f32."""
    M, K = x.shape
    Kw, N = w.shape
    assert K == Kw
    if not (M % tm == 0 and tm % 8 == 0):
        tm = M                      # full-extent block satisfies (8,128) rule
    if N % tn != 0:
        tn = N
    grid = (M // tm, N // tn)
    return pl.pallas_call(
        _matmul2d_kernel,
        grid=grid,
        in_specs=[pl.BlockSpec((tm, K), lambda i, j: (i, 0)),
                  pl.BlockSpec((K, tn), lambda i, j: (0, j))],
        out_specs=pl.BlockSpec((tm, tn), lambda i, j: (i, j)),
        out_shape=jax.ShapeDtypeStruct((M, N), jnp.float32),
        compiler_params=pltpu.CompilerParams(
            dimension_semantics=("parallel", "parallel")),
    )(x, w)


# -----------------------------------------------------------------------------
# Fused (pos-embed add + pre-transformer LayerNorm), gridded over batch.
# Its output is the residual stream, so it must be materialized once.
# -----------------------------------------------------------------------------
def _addpos_ln_kernel(eps, x_ref, pos_ref, g_ref, b_ref, o_ref):
    x = x_ref[0].astype(jnp.float32) + pos_ref[0].astype(jnp.float32)
    y = _layernorm(x, g_ref[...].astype(jnp.float32),
                   b_ref[...].astype(jnp.float32), eps)
    o_ref[0] = y.astype(o_ref.dtype)


def add_pos_layernorm(x, pos, gamma, beta, eps=1e-6):
    B, S, D = x.shape
    return pl.pallas_call(
        functools.partial(_addpos_ln_kernel, eps),
        grid=(B,),
        in_specs=[pl.BlockSpec((1, S, D), lambda b: (b, 0, 0)),
                  pl.BlockSpec((1, S, D), lambda b: (0, 0, 0)),
                  pl.BlockSpec((1, D), lambda b: (0, 0)),
                  pl.BlockSpec((1, D), lambda b: (0, 0))],
        out_specs=pl.BlockSpec((1, S, D), lambda b: (b, 0, 0)),
        out_shape=jax.ShapeDtypeStruct((B, S, D), x.dtype),
        compiler_params=pltpu.CompilerParams(dimension_semantics=("parallel",)),
    )(x, pos, gamma.reshape(1, D), beta.reshape(1, D))


# -----------------------------------------------------------------------------
# One fully-fused pre-norm transformer block per pallas_call (feedback #4/5/14):
#   LN1 -> QKV -> per-head attention with fused output projection into a
#   lane-dense (S, D) accumulator -> +bias +residual -> LN2 -> fc1 -> GELU ->
#   fc2 -> +residual.  All intermediates stay in VMEM/vregs; grid=(B,).
# -----------------------------------------------------------------------------
def _block_kernel(num_heads, head_dim, eps,
                  h_ref, ln1_g_ref, ln1_b_ref, wqkv_ref, bqkv_ref,
                  wproj_ref, bproj_ref, ln2_g_ref, ln2_b_ref,
                  wfc1_ref, bfc1_ref, wfc2_ref, bfc2_ref, o_ref):
    D = num_heads * head_dim
    scale = jnp.float32(1.0 / math.sqrt(head_dim))

    h = h_ref[0].astype(jnp.float32)                       # (S, D) residual stream
    S = h.shape[0]

    # ---- LN1 + QKV projection (bf16 MXU operands, f32 accumulate) ----
    x = _layernorm(h, ln1_g_ref[...], ln1_b_ref[...], eps)
    qkv = jnp.dot(x.astype(jnp.bfloat16), wqkv_ref[...],
                  preferred_element_type=jnp.float32) + bqkv_ref[...]   # (S, 3D)

    # ---- MHSA; output projection fused per head into a lane-dense (S, D)
    #      f32 accumulator (no sub-128-lane masked stores). ----
    # TODO(synk): at S=257 / 16 heads use flash-style KV tiling instead of a
    #             full (S,S) score matrix per head in an unrolled loop.
    wproj = wproj_ref[...]                                  # (D, D) bf16
    acc = jnp.zeros((S, D), jnp.float32)
    for hd in range(num_heads):
        lo = hd * head_dim
        q = (qkv[:, lo:lo + head_dim] * scale).astype(jnp.bfloat16)
        k = qkv[:, D + lo:D + lo + head_dim].astype(jnp.bfloat16)
        v = qkv[:, 2 * D + lo:2 * D + lo + head_dim].astype(jnp.bfloat16)
        # scores via dot_general contracting the feature axes (no k transpose)
        s = lax.dot_general(q, k, (((1,), (1,)), ((), ())),
                            preferred_element_type=jnp.float32)          # (S, S)
        s = s - jnp.max(s, axis=-1, keepdims=True)
        p = jnp.exp(s)
        p = p / jnp.sum(p, axis=-1, keepdims=True)                       # exact softmax
        o = jnp.dot(p.astype(jnp.bfloat16), v,
                    preferred_element_type=jnp.float32)                  # (S, Dh)
        acc = acc + jnp.dot(o.astype(jnp.bfloat16), wproj[lo:lo + head_dim, :],
                            preferred_element_type=jnp.float32)          # (S, D)
    h = h + acc + bproj_ref[...]

    # ---- MLP: LN2 -> fc1 -> erf-GELU -> fc2 -> +residual (all on-chip) ----
    x2 = _layernorm(h, ln2_g_ref[...], ln2_b_ref[...], eps)
    y = jnp.dot(x2.astype(jnp.bfloat16), wfc1_ref[...],
                preferred_element_type=jnp.float32) + bfc1_ref[...]      # (S, mlp)
    y = _gelu_erf(y)
    h = h + jnp.dot(y.astype(jnp.bfloat16), wfc2_ref[...],
                    preferred_element_type=jnp.float32) + bfc2_ref[...]

    o_ref[0] = h.astype(o_ref.dtype)


def transformer_block(h, blk, num_heads, eps=1e-6):
    B, S, D = h.shape
    Dh = D // num_heads
    mlp = blk["fc1_w"].shape[1]

    def full2d(shape):
        return pl.BlockSpec(shape, lambda b: (0, 0))

    return pl.pallas_call(
        functools.partial(_block_kernel, num_heads, Dh, eps),
        grid=(B,),
        in_specs=[
            pl.BlockSpec((1, S, D), lambda b: (b, 0, 0)),   # residual stream
            full2d((1, D)), full2d((1, D)),                 # ln1 gamma/beta
            full2d((D, 3 * D)), full2d((1, 3 * D)),         # qkv w (bf16) / b
            full2d((D, D)), full2d((1, D)),                 # proj w (bf16) / b
            full2d((1, D)), full2d((1, D)),                 # ln2 gamma/beta
            full2d((D, mlp)), full2d((1, mlp)),             # fc1 w (bf16) / b
            full2d((mlp, D)), full2d((1, D)),               # fc2 w (bf16) / b
        ],
        out_specs=pl.BlockSpec((1, S, D), lambda b: (b, 0, 0)),
        out_shape=jax.ShapeDtypeStruct((B, S, D), h.dtype),
        compiler_params=pltpu.CompilerParams(dimension_semantics=("parallel",)),
    )(h,
      blk["ln1_g"].reshape(1, D), blk["ln1_b"].reshape(1, D),
      blk["qkv_w"], blk["qkv_b"].reshape(1, 3 * D),
      blk["proj_w"], blk["proj_b"].reshape(1, D),
      blk["ln2_g"].reshape(1, D), blk["ln2_b"].reshape(1, D),
      blk["fc1_w"], blk["fc1_b"].reshape(1, mlp),
      blk["fc2_w"], blk["fc2_b"].reshape(1, D))


# -----------------------------------------------------------------------------
# Head: LayerNorm -> (already-selected CLS) -> Linear(no bias) -> L2-normalize.
# One merged call on a (B, D) 2D block (feedback #13).
# -----------------------------------------------------------------------------
def _head_kernel(eps, x_ref, g_ref, b_ref, w_ref, o_ref):
    x = x_ref[...].astype(jnp.float32)                      # (B, D)
    x = _layernorm(x, g_ref[...], b_ref[...], eps)
    y = jnp.dot(x.astype(jnp.bfloat16), w_ref[...],
                preferred_element_type=jnp.float32)          # (B, out_dim)
    n = jnp.maximum(jnp.sqrt(jnp.sum(y * y, axis=-1, keepdims=True)), 1e-12)
    o_ref[...] = (y / n).astype(o_ref.dtype)                 # F.normalize semantics


def head_project(cls_tok, gamma, beta, w, eps=1e-6):
    B, D = cls_tok.shape
    out_dim = w.shape[1]
    return pl.pallas_call(
        functools.partial(_head_kernel, eps),
        grid=(1,),
        in_specs=[pl.BlockSpec((B, D), lambda i: (0, 0)),
                  pl.BlockSpec((1, D), lambda i: (0, 0)),
                  pl.BlockSpec((1, D), lambda i: (0, 0)),
                  pl.BlockSpec((D, out_dim), lambda i: (0, 0))],
        out_specs=pl.BlockSpec((B, out_dim), lambda i: (0, 0)),
        out_shape=jax.ShapeDtypeStruct((B, out_dim), jnp.float32),
    )(cls_tok, gamma.reshape(1, D), beta.reshape(1, D), w)


# -----------------------------------------------------------------------------
# Model config / parameters (deterministic synthetic init; no checkpoint load)
# -----------------------------------------------------------------------------
class Config(NamedTuple):
    in_chans: int = 3
    img_size: int = 16
    patch: int = 4
    embed_dim: int = 128     # lane-dense feature dim (multiple of 128)
    num_heads: int = 4       # head_dim = 32
    depth: int = 2
    mlp_ratio: int = 4       # mlp = 512
    out_dim: int = 128


def init_params(key, cfg: Config):
    C, P, D = cfg.in_chans, cfg.patch, cfg.embed_dim
    N = (cfg.img_size // P) ** 2
    S = N + 1
    mlp = cfg.mlp_ratio * D

    def nrm(k, shape, std=0.02, dtype=jnp.float32):
        return (std * jax.random.normal(k, shape)).astype(dtype)

    keys = iter(jax.random.split(key, 64))
    # Conv3d(C, D, kernel=(2,P,P), bias=False); input video is a repeated frame
    # so the temporal kernel collapses to a sum over T -> equivalent 2D conv.
    conv3d_w = nrm(next(keys), (D, C, 2, P, P))
    patch_w = jnp.sum(conv3d_w, axis=2).reshape(D, C * P * P).T.astype(jnp.bfloat16)

    params = {
        "patch_w": patch_w,                               # (C*P*P, D) bf16
        "cls_token": nrm(next(keys), (1, 1, D)),
        "pos_embed": nrm(next(keys), (1, S, D)),
        "pre_ln_g": jnp.ones((D,), jnp.float32),
        "pre_ln_b": jnp.zeros((D,), jnp.float32),
        "head_ln_g": jnp.ones((D,), jnp.float32),
        "head_ln_b": jnp.zeros((D,), jnp.float32),
        "head_w": nrm(next(keys), (D, cfg.out_dim), dtype=jnp.bfloat16),
        "blocks": [],
    }
    for _ in range(cfg.depth):
        params["blocks"].append({
            "ln1_g": jnp.ones((D,), jnp.float32),
            "ln1_b": jnp.zeros((D,), jnp.float32),
            "qkv_w": nrm(next(keys), (D, 3 * D), dtype=jnp.bfloat16),  # [q|k|v] cols
            "qkv_b": nrm(next(keys), (3 * D,)),
            "proj_w": nrm(next(keys), (D, D), dtype=jnp.bfloat16),
            "proj_b": nrm(next(keys), (D,)),
            "ln2_g": jnp.ones((D,), jnp.float32),
            "ln2_b": jnp.zeros((D,), jnp.float32),
            "fc1_w": nrm(next(keys), (D, mlp), dtype=jnp.bfloat16),
            "fc1_b": nrm(next(keys), (mlp,)),
            "fc2_w": nrm(next(keys), (mlp, D), dtype=jnp.bfloat16),
            "fc2_b": nrm(next(keys), (D,)),
        })
    return params


# -----------------------------------------------------------------------------
# Forward pass (ImageBind vision branch): depth + 3 pallas_calls total.
# -----------------------------------------------------------------------------
def imagebind_vision_forward(params, x, cfg: Config):
    B, C, H, W = x.shape                      # NCHW, like the PyTorch module
    P, D = cfg.patch, cfg.embed_dim
    gh, gw = H // P, W // P
    N = gh * gw

    # ---- patch embed: im2col (layout glue) + 2D matmul with batch in rows ----
    patches = (x.reshape(B, C, gh, P, gw, P)
                .transpose(0, 2, 4, 1, 3, 5)
                .reshape(B * N, C * P * P))
    tokens = matmul2d(patches, params["patch_w"]).reshape(B, N, D)

    # ---- CLS concat (tiny XLA glue) + fused pos-add + pre-transformer LN ----
    cls = jnp.broadcast_to(params["cls_token"], (B, 1, D)).astype(tokens.dtype)
    tokens = jnp.concatenate([cls, tokens], axis=1)            # (B, S, D)
    h = add_pos_layernorm(tokens, params["pos_embed"],
                          params["pre_ln_g"], params["pre_ln_b"])

    # ---- pre-norm transformer blocks: one fused pallas_call each ----
    for blk in params["blocks"]:
        h = transformer_block(h, blk, cfg.num_heads)

    # ---- head: LN -> select CLS -> Linear(no bias) -> L2 normalize ----
    # (LN is per-token, so LN(select(x)) == select(LN(x)); one merged call.)
    cls_tok = h[:, 0, :]                                       # (B, D)
    return head_project(cls_tok, params["head_ln_g"], params["head_ln_b"],
                        params["head_w"])


# -----------------------------------------------------------------------------
if __name__ == "__main__":
    cfg = Config()
    key = jax.random.PRNGKey(0)
    kx, kp = jax.random.split(key)
    x = jax.random.normal(kx, (2, cfg.in_chans, cfg.img_size, cfg.img_size),
                          dtype=jnp.float32)   # NCHW input, like the PyTorch module
    params = init_params(kp, cfg)

    fwd = jax.jit(lambda p, inp: imagebind_vision_forward(p, inp, cfg))
    out = jax.block_until_ready(fwd(params, x))

    assert out.shape == (2, cfg.out_dim), out.shape
    assert bool(jnp.all(jnp.isfinite(out)))
    # output rows are unit-norm (vision postprocessor = F.normalize)
    assert bool(jnp.allclose(jnp.linalg.norm(out, axis=-1), 1.0, atol=1e-4))
    print("KERNEL_OK")
</pallas_src>

<mosaic_0001>
module attributes {stable_mosaic.version = 11 : i64} {
  func.func @_matmul2d_kernel(%arg0: i32, %arg1: i32, %arg2: memref<16x48xf32, #tpu.memory_space<vmem>>, %arg3: memref<48x128xbf16, #tpu.memory_space<vmem>>, %arg4: memref<16x128xf32, #tpu.memory_space<vmem>>) attributes {dimension_semantics = [#tpu.dimension_semantics<parallel>, #tpu.dimension_semantics<parallel>], iteration_bounds = array<i64: 2, 1>, scalar_prefetch = 0 : i64, scratch_operands = 0 : i64, tpu.core_type = #tpu.core_type<tc>, window_params = [{transform_indices = @transform_0, window_bounds = array<i64: 16, 48>}, {transform_indices = @transform_1, window_bounds = array<i64: 48, 128>}, {transform_indices = @transform_2, window_bounds = array<i64: 16, 128>}]} {
    %c0 = arith.constant 0 : index
    %c0_0 = arith.constant 0 : index
    %0 = vector.load %arg2[%c0, %c0_0] : memref<16x48xf32, #tpu.memory_space<vmem>>, vector<16x48xf32>
    %1 = arith.truncf %0 : vector<16x48xf32> to vector<16x48xbf16>
    %c0_1 = arith.constant 0 : index
    %c0_2 = arith.constant 0 : index
    %2 = vector.load %arg3[%c0_1, %c0_2] : memref<48x128xbf16, #tpu.memory_space<vmem>>, vector<48x128xbf16>
    %cst = arith.constant dense<0.000000e+00> : vector<16x128xf32>
    %3 = tpu.matmul %1, %2, %cst {dimension_numbers = #tpu.dot_dimension_numbers<[1], [0], [0], [1], [0, 0, 1, 1], [], []>} : vector<16x48xbf16>, vector<48x128xbf16>, vector<16x128xf32> -> vector<16x128xf32>
    %c0_3 = arith.constant 0 : index
    %c0_4 = arith.constant 0 : index
    %4 = vector.load %arg4[%c0_3, %c0_4] : memref<16x128xf32, #tpu.memory_space<vmem>>, vector<16x128xf32>
    tpu.vector_store %arg4[%c0_3, %c0_4], %3 {strides = array<i32>} : memref<16x128xf32, #tpu.memory_space<vmem>>, vector<16x128xf32>,
    return
  }
  func.func @transform_0(%arg0: i32, %arg1: i32) -> (i32, i32) {
    %c0_i32 = arith.constant 0 : i32
    %c0_i32_0 = arith.constant 0 : i32
    return %arg0, %c0_i32 : i32, i32
  }
  func.func @transform_1(%arg0: i32, %arg1: i32) -> (i32, i32) {
    %c0_i32 = arith.constant 0 : i32
    %c0_i32_0 = arith.constant 0 : i32
    return %c0_i32, %arg1 : i32, i32
  }
  func.func @transform_2(%arg0: i32, %arg1: i32) -> (i32, i32) {
    %c0_i32 = arith.constant 0 : i32
    return %arg0, %arg1 : i32, i32
  }
}

module attributes {stable_mosaic.version = 11 : i64} {
  func.func @_addpos_ln_kernel(%arg0: i32, %arg1: memref<1x17x128xf32, #tpu.memory_space<vmem>>, %arg2: memref<1x17x128xf32, #tpu.memory_space<vmem>>, %arg3: memref<1x128xf32, #tpu.memory_space<vmem>>, %arg4: memref<1x128xf32, #tpu.memory_space<vmem>>, %arg5: memref<1x17x128xf32, #tpu.memory_space<vmem>>) attributes {dimension_semantics = [#tpu.dimension_semantics<parallel>], iteration_bounds = array<i64: 2>, scalar_prefetch = 0 : i64, scratch_operands = 0 : i64, tpu.core_type = #tpu.core_type<tc>, window_params = [{transform_indices = @transform_0, window_bounds = array<i64: 1, 17, 128>}, {pipeline_mode = #tpu.pipeline_mode<synchronous>, transform_indices = @transform_1, window_bounds = array<i64: 1, 17, 128>}, {pipeline_mode = #tpu.pipeline_mode<synchronous>, transform_indices = @transform_2, window_bounds = array<i64: 1, 128>}, {pipeline_mode = #tpu.pipeline_mode<synchronous>, transform_indices = @transform_3, window_bounds = array<i64: 1, 128>}, {transform_indices = @transform_4, window_bounds = array<i64: 1, 17, 128>}]} {
    %c0 = arith.constant 0 : index
    %c0_0 = arith.constant 0 : index
    %c0_1 = arith.constant 0 : index
    %0 = vector.load %arg1[%c0, %c0_0, %c0_1] : memref<1x17x128xf32, #tpu.memory_space<vmem>>, vector<1x17x128xf32>
    %1 = vector.shape_cast %0 : vector<1x17x128xf32> to vector<17x128xf32>
    %c0_2 = arith.constant 0 : index
    %c0_3 = arith.constant 0 : index
    %c0_4 = arith.constant 0 : index
    %2 = vector.load %arg2[%c0_2, %c0_3, %c0_4] : memref<1x17x128xf32, #tpu.memory_space<vmem>>, vector<1x17x128xf32>
    %3 = vector.shape_cast %2 : vector<1x17x128xf32> to vector<17x128xf32>
    %4 = arith.addf %1, %3 : vector<17x128xf32>
    %c0_5 = arith.constant 0 : index
    %c0_6 = arith.constant 0 : index
    %5 = vector.load %arg3[%c0_5, %c0_6] : memref<1x128xf32, #tpu.memory_space<vmem>>, vector<1x128xf32>
    %c0_7 = arith.constant 0 : index
    %c0_8 = arith.constant 0 : index
    %6 = vector.load %arg4[%c0_7, %c0_8] : memref<1x128xf32, #tpu.memory_space<vmem>>, vector<1x128xf32>
    %cst = arith.constant dense<0.000000e+00> : vector<17xf32>
    %7 = vector.multi_reduction <add>, %4, %cst [1] : vector<17x128xf32> to vector<17xf32>
    %8 = vector.shape_cast %7 : vector<17xf32> to vector<17x1xf32>
    %cst_9 = arith.constant 1.280000e+02 : f32
    %9 = vector.broadcast %cst_9 : f32 to vector<17x1xf32>
    %10 = arith.divf %8, %9 : vector<17x1xf32>
    %11 = vector.broadcast %10 : vector<17x1xf32> to vector<17x128xf32>
    %12 = arith.subf %4, %11 : vector<17x128xf32>
    %13 = arith.mulf %12, %12 : vector<17x128xf32>
    %cst_10 = arith.constant dense<0.000000e+00> : vector<17xf32>
    %14 = vector.multi_reduction <add>, %13, %cst_10 [1] : vector<17x128xf32> to vector<17xf32>
    %15 = vector.shape_cast %14 : vector<17xf32> to vector<17x1xf32>
    %cst_11 = arith.constant 1.280000e+02 : f32
    %16 = vector.broadcast %cst_11 : f32 to vector<17x1xf32>
    %17 = arith.divf %15, %16 : vector<17x1xf32>
    %18 = vector.broadcast %10 : vector<17x1xf32> to vector<17x128xf32>
    %19 = arith.subf %4, %18 : vector<17x128xf32>
    %cst_12 = arith.constant 9.99999997E-7 : f32
    %20 = vector.broadcast %cst_12 : f32 to vector<17x1xf32>
    %21 = arith.addf %17, %20 : vector<17x1xf32>
    %22 = math.rsqrt %21 : vector<17x1xf32>
    %23 = vector.broadcast %22 : vector<17x1xf32> to vector<17x128xf32>
    %24 = arith.mulf %19, %23 : vector<17x128xf32>
    %25 = vector.broadcast %5 : vector<1x128xf32> to vector<17x128xf32>
    %26 = arith.mulf %24, %25 : vector<17x128xf32>
    %27 = vector.broadcast %6 : vector<1x128xf32> to vector<17x128xf32>
    %28 = arith.addf %26, %27 : vector<17x128xf32>
    %c0_13 = arith.constant 0 : index
    %c0_14 = arith.constant 0 : index
    %c0_15 = arith.constant 0 : index
    %29 = vector.load %arg5[%c0_13, %c0_14, %c0_15] : memref<1x17x128xf32, #tpu.memory_space<vmem>>, vector<1x17x128xf32>
    %30 = vector.shape_cast %29 : vector<1x17x128xf32> to vector<17x128xf32>
    %31 = vector.shape_cast %28 : vector<17x128xf32> to vector<1x17x128xf32>
    tpu.vector_store %arg5[%c0_13, %c0_14, %c0_15], %31 {strides = array<i32>} : memref<1x17x128xf32, #tpu.memory_space<vmem>>, vector<1x17x128xf32>,
    return
  }
  func.func @transform_0(%arg0: i32) -> (i32, i32, i32) {
    %c0_i32 = arith.constant 0 : i32
    %c0_i32_0 = arith.constant 0 : i32
    %c0_i32_1 = arith.constant 0 : i32
    return %arg0, %c0_i32, %c0_i32_0 : i32, i32, i32
  }
  func.func @transform_1(%arg0: i32) -> (i32, i32, i32) {
    %c0_i32 = arith.constant 0 : i32
    %c0_i32_0 = arith.constant 0 : i32
    %c0_i32_1 = arith.constant 0 : i32
    %c0_i32_2 = arith.constant 0 : i32
    return %c0_i32, %c0_i32_0, %c0_i32_1 : i32, i32, i32
  }
  func.func @transform_2(%arg0: i32) -> (i32, i32) {
    %c0_i32 = arith.constant 0 : i32
    %c0_i32_0 = arith.constant 0 : i32
    %c0_i32_1 = arith.constant 0 : i32
    return %c0_i32, %c0_i32_0 : i32, i32
  }
  func.func @transform_3(%arg0: i32) -> (i32, i32) {
    %c0_i32 = arith.constant 0 : i32
    %c0_i32_0 = arith.constant 0 : i32
    %c0_i32_1 = arith.constant 0 : i32
    return %c0_i32, %c0_i32_0 : i32, i32
  }
  func.func @transform_4(%arg0: i32) -> (i32, i32, i32) {
    %c0_i32 = arith.constant 0 : i32
    %c0_i32_0 = arith.constant 0 : i32
    %c0_i32_1 = arith.constant 0 : i32
    return %arg0, %c0_i32, %c0_i32_0 : i32, i32, i32
  }
}

module attributes {stable_mosaic.version = 11 : i64} {
  func.func @_block_kernel(%arg0: i32, %arg1: memref<1x17x128xf32, #tpu.memory_space<vmem>>, %arg2: memref<1x128xf32, #tpu.memory_space<vmem>>, %arg3: memref<1x128xf32, #tpu.memory_space<vmem>>, %arg4: memref<128x384xbf16, #tpu.memory_space<vmem>>, %arg5: memref<1x384xf32, #tpu.memory_space<vmem>>, %arg6: memref<128x128xbf16, #tpu.memory_space<vmem>>, %arg7: memref<1x128xf32, #tpu.memory_space<vmem>>, %arg8: memref<1x128xf32, #tpu.memory_space<vmem>>, %arg9: memref<1x128xf32, #tpu.memory_space<vmem>>, %arg10: memref<128x512xbf16, #tpu.memory_space<vmem>>, %arg11: memref<1x512xf32, #tpu.memory_space<vmem>>, %arg12: memref<512x128xbf16, #tpu.memory_space<vmem>>, %arg13: memref<1x128xf32, #tpu.memory_space<vmem>>, %arg14: memref<1x17x128xf32, #tpu.memory_space<vmem>>) attributes {dimension_semantics = [#tpu.dimension_semantics<parallel>], iteration_bounds = array<i64: 2>, scalar_prefetch = 0 : i64, scratch_operands = 0 : i64, tpu.core_type = #tpu.core_type<tc>, window_params = [{transform_indices = @transform_0, window_bounds = array<i64: 1, 17, 128>}, {pipeline_mode = #tpu.pipeline_mode<synchronous>, transform_indices = @transform_1, window_bounds = array<i64: 1, 128>}, {pipeline_mode = #tpu.pipeline_mode<synchronous>, transform_indices = @transform_2, window_bounds = array<i64: 1, 128>}, {pipeline_mode = #tpu.pipeline_mode<synchronous>, transform_indices = @transform_3, window_bounds = array<i64: 128, 384>}, {pipeline_mode = #tpu.pipeline_mode<synchronous>, transform_indices = @transform_4, window_bounds = array<i64: 1, 384>}, {pipeline_mode = #tpu.pipeline_mode<synchronous>, transform_indices = @transform_5, window_bounds = array<i64: 128, 128>}, {pipeline_mode = #tpu.pipeline_mode<synchronous>, transform_indices = @transform_6, window_bounds = array<i64: 1, 128>}, {pipeline_mode = #tpu.pipeline_mode<synchronous>, transform_indices = @transform_7, window_bounds = array<i64: 1, 128>}, {pipeline_mode = #tpu.pipeline_mode<synchronous>, transform_indices = @transform_8, window_bounds = array<i64: 1, 128>}, {pipeline_mode = #tpu.pipeline_mode<synchronous>, transform_indices = @transform_9, window_bounds = array<i64: 128, 512>}, {pipeline_mode = #tpu.pipeline_mode<synchronous>, transform_indices = @transform_10, window_bounds = array<i64: 1, 512>}, {pipeline_mode = #tpu.pipeline_mode<synchronous>, transform_indices = @transform_11, window_bounds = array<i64: 512, 128>}, {pipeline_mode = #tpu.pipeline_mode<synchronous>, transform_indices = @transform_12, window_bounds = array<i64: 1, 128>}, {transform_indices = @transform_13, window_bounds = array<i64: 1, 17, 128>}]} {
    %c0 = arith.constant 0 : index
    %c0_0 = arith.constant 0 : index
    %c0_1 = arith.constant 0 : index
    %0 = vector.load %arg1[%c0, %c0_0, %c0_1] : memref<1x17x128xf32, #tpu.memory_space<vmem>>, vector<1x17x128xf32>
    %1 = vector.shape_cast %0 : vector<1x17x128xf32> to vector<17x128xf32>
    %c0_2 = arith.constant 0 : index
    %c0_3 = arith.constant 0 : index
    %2 = vector.load %arg2[%c0_2, %c0_3] : memref<1x128xf32, #tpu.memory_space<vmem>>, vector<1x128xf32>
    %c0_4 = arith.constant 0 : index
    %c0_5 = arith.constant 0 : index
    %3 = vector.load %arg3[%c0_4, %c0_5] : memref<1x128xf32, #tpu.memory_space<vmem>>, vector<1x128xf32>
    %cst = arith.constant dense<0.000000e+00> : vector<17xf32>
    %4 = vector.multi_reduction <add>, %1, %cst [1] : vector<17x128xf32> to vector<17xf32>
    %5 = vector.shape_cast %4 : vector<17xf32> to vector<17x1xf32>
    %cst_6 = arith.constant 1.280000e+02 : f32
    %6 = vector.broadcast %cst_6 : f32 to vector<17x1xf32>
    %7 = arith.divf %5, %6 : vector<17x1xf32>
    %8 = vector.broadcast %7 : vector<17x1xf32> to vector<17x128xf32>
    %9 = arith.subf %1, %8 : vector<17x128xf32>
    %10 = arith.mulf %9, %9 : vector<17x128xf32>
    %cst_7 = arith.constant dense<0.000000e+00> : vector<17xf32>
    %11 = vector.multi_reduction <add>, %10, %cst_7 [1] : vector<17x128xf32> to vector<17xf32>
    %12 = vector.shape_cast %11 : vector<17xf32> to vector<17x1xf32>
    %cst_8 = arith.constant 1.280000e+02 : f32
    %13 = vector.broadcast %cst_8 : f32 to vector<17x1xf32>
    %14 = arith.divf %12, %13 : vector<17x1xf32>
    %15 = vector.broadcast %7 : vector<17x1xf32> to vector<17x128xf32>
    %16 = arith.subf %1, %15 : vector<17x128xf32>
    %cst_9 = arith.constant 9.99999997E-7 : f32
    %17 = vector.broadcast %cst_9 : f32 to vector<17x1xf32>
    %18 = arith.addf %14, %17 : vector<17x1xf32>
    %19 = math.rsqrt %18 : vector<17x1xf32>
    %20 = vector.broadcast %19 : vector<17x1xf32> to vector<17x128xf32>
    %21 = arith.mulf %16, %20 : vector<17x128xf32>
    %22 = vector.broadcast %2 : vector<1x128xf32> to vector<17x128xf32>
    %23 = arith.mulf %21, %22 : vector<17x128xf32>
    %24 = vector.broadcast %3 : vector<1x128xf32> to vector<17x128xf32>
    %25 = arith.addf %23, %24 : vector<17x128xf32>
    %26 = arith.truncf %25 : vector<17x128xf32> to vector<17x128xbf16>
    %c0_10 = arith.constant 0 : index
    %c0_11 = arith.constant 0 : index
    %27 = vector.load %arg4[%c0_10, %c0_11] : memref<128x384xbf16, #tpu.memory_space<vmem>>, vector<128x384xbf16>
    %cst_12 = arith.constant dense<0.000000e+00> : vector<17x384xf32>
    %28 = tpu.matmul %26, %27, %cst_12 {dimension_numbers = #tpu.dot_dimension_numbers<[1], [0], [0], [1], [0, 0, 1, 1], [], []>} : vector<17x128xbf16>, vector<128x384xbf16>, vector<17x384xf32> -> vector<17x384xf32>
    %c0_13 = arith.constant 0 : index
    %c0_14 = arith.constant 0 : index
    %29 = vector.load %arg5[%c0_13, %c0_14] : memref<1x384xf32, #tpu.memory_space<vmem>>, vector<1x384xf32>
    %30 = vector.broadcast %29 : vector<1x384xf32> to vector<17x384xf32>
    %31 = arith.addf %28, %30 : vector<17x384xf32>
    %c0_15 = arith.constant 0 : index
    %c0_16 = arith.constant 0 : index
    %32 = vector.load %arg6[%c0_15, %c0_16] : memref<128x128xbf16, #tpu.memory_space<vmem>>, vector<128x128xbf16>
    %cst_17 = arith.constant 0.000000e+00 : f32
    %33 = vector.broadcast %cst_17 : f32 to vector<17x128xf32>
    %34 = vector.extract_strided_slice %31 {offsets = [0, 0], sizes = [17, 32], strides = [1, 1]} : vector<17x384xf32> to vector<17x32xf32>
    %cst_18 = arith.constant 0.176776692 : f32
    %35 = vector.broadcast %cst_18 : f32 to vector<17x32xf32>
    %36 = arith.mulf %34, %35 : vector<17x32xf32>
    %37 = arith.truncf %36 : vector<17x32xf32> to vector<17x32xbf16>
    %38 = vector.extract_strided_slice %31 {offsets = [0, 128], sizes = [17, 32], strides = [1, 1]} : vector<17x384xf32> to vector<17x32xf32>
    %39 = arith.truncf %38 : vector<17x32xf32> to vector<17x32xbf16>
    %40 = vector.extract_strided_slice %31 {offsets = [0, 256], sizes = [17, 32], strides = [1, 1]} : vector<17x384xf32> to vector<17x32xf32>
    %41 = arith.truncf %40 : vector<17x32xf32> to vector<17x32xbf16>
    %cst_19 = arith.constant dense<0.000000e+00> : vector<17x17xf32>
    %42 = tpu.matmul %37, %39, %cst_19 {dimension_numbers = #tpu.dot_dimension_numbers<[1], [1], [0], [0], [0, 0, 1, 0], [], []>} : vector<17x32xbf16>, vector<17x32xbf16>, vector<17x17xf32> -> vector<17x17xf32>
    %cst_20 = arith.constant dense<0xFF800000> : vector<17xf32>
    %43 = vector.multi_reduction <maximumf>, %42, %cst_20 [1] : vector<17x17xf32> to vector<17xf32>
    %44 = vector.shape_cast %43 : vector<17xf32> to vector<17x1xf32>
    %45 = vector.broadcast %44 : vector<17x1xf32> to vector<17x17xf32>
    %46 = arith.subf %42, %45 : vector<17x17xf32>
    %47 = math.exp %46 : vector<17x17xf32>
    %cst_21 = arith.constant dense<0.000000e+00> : vector<17xf32>
    %48 = vector.multi_reduction <add>, %47, %cst_21 [1] : vector<17x17xf32> to vector<17xf32>
    %49 = vector.shape_cast %48 : vector<17xf32> to vector<17x1xf32>
    %50 = vector.broadcast %49 : vector<17x1xf32> to vector<17x17xf32>
    %51 = arith.divf %47, %50 : vector<17x17xf32>
    %52 = arith.truncf %51 : vector<17x17xf32> to vector<17x17xbf16>
    %cst_22 = arith.constant dense<0.000000e+00> : vector<17x32xf32>
    %53 = tpu.matmul %52, %41, %cst_22 {dimension_numbers = #tpu.dot_dimension_numbers<[1], [0], [0], [1], [0, 0, 1, 1], [], []>} : vector<17x17xbf16>, vector<17x32xbf16>, vector<17x32xf32> -> vector<17x32xf32>
    %54 = arith.truncf %53 : vector<17x32xf32> to vector<17x32xbf16>
    %55 = vector.extract_strided_slice %32 {offsets = [0, 0], sizes = [32, 128], strides = [1, 1]} : vector<128x128xbf16> to vector<32x128xbf16>
    %cst_23 = arith.constant dense<0.000000e+00> : vector<17x128xf32>
    %56 = tpu.matmul %54, %55, %cst_23 {dimension_numbers = #tpu.dot_dimension_numbers<[1], [0], [0], [1], [0, 0, 1, 1], [], []>} : vector<17x32xbf16>, vector<32x128xbf16>, vector<17x128xf32> -> vector<17x128xf32>
    %57 = arith.addf %33, %56 : vector<17x128xf32>
    %58 = vector.extract_strided_slice %31 {offsets = [0, 32], sizes = [17, 32], strides = [1, 1]} : vector<17x384xf32> to vector<17x32xf32>
    %cst_24 = arith.constant 0.176776692 : f32
    %59 = vector.broadcast %cst_24 : f32 to vector<17x32xf32>
    %60 = arith.mulf %58, %59 : vector<17x32xf32>
    %61 = arith.truncf %60 : vector<17x32xf32> to vector<17x32xbf16>
    %62 = vector.extract_strided_slice %31 {offsets = [0, 160], sizes = [17, 32], strides = [1, 1]} : vector<17x384xf32> to vector<17x32xf32>
    %63 = arith.truncf %62 : vector<17x32xf32> to vector<17x32xbf16>
    %64 = vector.extract_strided_slice %31 {offsets = [0, 288], sizes = [17, 32], strides = [1, 1]} : vector<17x384xf32> to vector<17x32xf32>
    %65 = arith.truncf %64 : vector<17x32xf32> to vector<17x32xbf16>
    %cst_25 = arith.constant dense<0.000000e+00> : vector<17x17xf32>
    %66 = tpu.matmul %61, %63, %cst_25 {dimension_numbers = #tpu.dot_dimension_numbers<[1], [1], [0], [0], [0, 0, 1, 0], [], []>} : vector<17x32xbf16>, vector<17x32xbf16>, vector<17x17xf32> -> vector<17x17xf32>
    %cst_26 = arith.constant dense<0xFF800000> : vector<17xf32>
    %67 = vector.multi_reduction <maximumf>, %66, %cst_26 [1] : vector<17x17xf32> to vector<17xf32>
    %68 = vector.shape_cast %67 : vector<17xf32> to vector<17x1xf32>
    %69 = vector.broadcast %68 : vector<17x1xf32> to vector<17x17xf32>
    %70 = arith.subf %66, %69 : vector<17x17xf32>
    %71 = math.exp %70 : vector<17x17xf32>
    %cst_27 = arith.constant dense<0.000000e+00> : vector<17xf32>
    %72 = vector.multi_reduction <add>, %71, %cst_27 [1] : vector<17x17xf32> to vector<17xf32>
    %73 = vector.shape_cast %72 : vector<17xf32> to vector<17x1xf32>
    %74 = vector.broadcast %73 : vector<17x1xf32> to vector<17x17xf32>
    %75 = arith.divf %71, %74 : vector<17x17xf32>
    %76 = arith.truncf %75 : vector<17x17xf32> to vector<17x17xbf16>
    %cst_28 = arith.constant dense<0.000000e+00> : vector<17x32xf32>
    %77 = tpu.matmul %76, %65, %cst_28 {dimension_numbers = #tpu.dot_dimension_numbers<[1], [0], [0], [1], [0, 0, 1, 1], [], []>} : vector<17x17xbf16>, vector<17x32xbf16>, vector<17x32xf32> -> vector<17x32xf32>
    %78 = arith.truncf %77 : vector<17x32xf32> to vector<17x32xbf16>
    %79 = vector.extract_strided_slice %32 {offsets = [32, 0], sizes = [32, 128], strides = [1, 1]} : vector<128x128xbf16> to vector<32x128xbf16>
    %cst_29 = arith.constant dense<0.000000e+00> : vector<17x128xf32>
    %80 = tpu.matmul %78, %79, %cst_29 {dimension_numbers = #tpu.dot_dimension_numbers<[1], [0], [0], [1], [0, 0, 1, 1], [], []>} : vector<17x32xbf16>, vector<32x128xbf16>, vector<17x128xf32> -> vector<17x128xf32>
    %81 = arith.addf %57, %80 : vector<17x128xf32>
    %82 = vector.extract_strided_slice %31 {offsets = [0, 64], sizes = [17, 32], strides = [1, 1]} : vector<17x384xf32> to vector<17x32xf32>
    %cst_30 = arith.constant 0.176776692 : f32
    %83 = vector.broadcast %cst_30 : f32 to vector<17x32xf32>
    %84 = arith.mulf %82, %83 : vector<17x32xf32>
    %85 = arith.truncf %84 : vector<17x32xf32> to vector<17x32xbf16>
    %86 = vector.extract_strided_slice %31 {offsets = [0, 192], sizes = [17, 32], strides = [1, 1]} : vector<17x384xf32> to vector<17x32xf32>
    %87 = arith.truncf %86 : vector<17x32xf32> to vector<17x32xbf16>
    %88 = vector.extract_strided_slice %31 {offsets = [0, 320], sizes = [17, 32], strides = [1, 1]} : vector<17x384xf32> to vector<17x32xf32>
    %89 = arith.truncf %88 : vector<17x32xf32> to vector<17x32xbf16>
    %cst_31 = arith.constant dense<0.000000e+00> : vector<17x17xf32>
    %90 = tpu.matmul %85, %87, %cst_31 {dimension_numbers = #tpu.dot_dimension_numbers<[1], [1], [0], [0], [0, 0, 1, 0], [], []>} : vector<17x32xbf16>, vector<17x32xbf16>, vector<17x17xf32> -> vector<17x17xf32>
    %cst_32 = arith.constant dense<0xFF800000> : vector<17xf32>
    %91 = vector.multi_reduction <maximumf>, %90, %cst_32 [1] : vector<17x17xf32> to vector<17xf32>
    %92 = vector.shape_cast %91 : vector<17xf32> to vector<17x1xf32>
    %93 = vector.broadcast %92 : vector<17x1xf32> to vector<17x17xf32>
    %94 = arith.subf %90, %93 : vector<17x17xf32>
    %95 = math.exp %94 : vector<17x17xf32>
    %cst_33 = arith.constant dense<0.000000e+00> : vector<17xf32>
    %96 = vector.multi_reduction <add>, %95, %cst_33 [1] : vector<17x17xf32> to vector<17xf32>
    %97 = vector.shape_cast %96 : vector<17xf32> to vector<17x1xf32>
    %98 = vector.broadcast %97 : vector<17x1xf32> to vector<17x17xf32>
    %99 = arith.divf %95, %98 : vector<17x17xf32>
    %100 = arith.truncf %99 : vector<17x17xf32> to vector<17x17xbf16>
    %cst_34 = arith.constant dense<0.000000e+00> : vector<17x32xf32>
    %101 = tpu.matmul %100, %89, %cst_34 {dimension_numbers = #tpu.dot_dimension_numbers<[1], [0], [0], [1], [0, 0, 1, 1], [], []>} : vector<17x17xbf16>, vector<17x32xbf16>, vector<17x32xf32> -> vector<17x32xf32>
    %102 = arith.truncf %101 : vector<17x32xf32> to vector<17x32xbf16>
    %103 = vector.extract_strided_slice %32 {offsets = [64, 0], sizes = [32, 128], strides = [1, 1]} : vector<128x128xbf16> to vector<32x128xbf16>
    %cst_35 = arith.constant dense<0.000000e+00> : vector<17x128xf32>
    %104 = tpu.matmul %102, %103, %cst_35 {dimension_numbers = #tpu.dot_dimension_numbers<[1], [0], [0], [1], [0, 0, 1, 1], [], []>} : vector<17x32xbf16>, vector<32x128xbf16>, vector<17x128xf32> -> vector<17x128xf32>
    %105 = arith.addf %81, %104 : vector<17x128xf32>
    %106 = vector.extract_strided_slice %31 {offsets = [0, 96], sizes = [17, 32], strides = [1, 1]} : vector<17x384xf32> to vector<17x32xf32>
    %cst_36 = arith.constant 0.176776692 : f32
    %107 = vector.broadcast %cst_36 : f32 to vector<17x32xf32>
    %108 = arith.mulf %106, %107 : vector<17x32xf32>
    %109 = arith.truncf %108 : vector<17x32xf32> to vector<17x32xbf16>
    %110 = vector.extract_strided_slice %31 {offsets = [0, 224], sizes = [17, 32], strides = [1, 1]} : vector<17x384xf32> to vector<17x32xf32>
    %111 = arith.truncf %110 : vector<17x32xf32> to vector<17x32xbf16>
    %112 = vector.extract_strided_slice %31 {offsets = [0, 352], sizes = [17, 32], strides = [1, 1]} : vector<17x384xf32> to vector<17x32xf32>
    %113 = arith.truncf %112 : vector<17x32xf32> to vector<17x32xbf16>
    %cst_37 = arith.constant dense<0.000000e+00> : vector<17x17xf32>
    %114 = tpu.matmul %109, %111, %cst_37 {dimension_numbers = #tpu.dot_dimension_numbers<[1], [1], [0], [0], [0, 0, 1, 0], [], []>} : vector<17x32xbf16>, vector<17x32xbf16>, vector<17x17xf32> -> vector<17x17xf32>
    %cst_38 = arith.constant dense<0xFF800000> : vector<17xf32>
    %115 = vector.multi_reduction <maximumf>, %114, %cst_38 [1] : vector<17x17xf32> to vector<17xf32>
    %116 = vector.shape_cast %115 : vector<17xf32> to vector<17x1xf32>
    %117 = vector.broadcast %116 : vector<17x1xf32> to vector<17x17xf32>
    %118 = arith.subf %114, %117 : vector<17x17xf32>
    %119 = math.exp %118 : vector<17x17xf32>
    %cst_39 = arith.constant dense<0.000000e+00> : vector<17xf32>
    %120 = vector.multi_reduction <add>, %119, %cst_39 [1] : vector<17x17xf32> to vector<17xf32>
    %121 = vector.shape_cast %120 : vector<17xf32> to vector<17x1xf32>
    %122 = vector.broadcast %121 : vector<17x1xf32> to vector<17x17xf32>
    %123 = arith.divf %119, %122 : vector<17x17xf32>
    %124 = arith.truncf %123 : vector<17x17xf32> to vector<17x17xbf16>
    %cst_40 = arith.constant dense<0.000000e+00> : vector<17x32xf32>
    %125 = tpu.matmul %124, %113, %cst_40 {dimension_numbers = #tpu.dot_dimension_numbers<[1], [0], [0], [1], [0, 0, 1, 1], [], []>} : vector<17x17xbf16>, vector<17x32xbf16>, vector<17x32xf32> -> vector<17x32xf32>
    %126 = arith.truncf %125 : vector<17x32xf32> to vector<17x32xbf16>
    %127 = vector.extract_strided_slice %32 {offsets = [96, 0], sizes = [32, 128], strides = [1, 1]} : vector<128x128xbf16> to vector<32x128xbf16>
    %cst_41 = arith.constant dense<0.000000e+00> : vector<17x128xf32>
    %128 = tpu.matmul %126, %127, %cst_41 {dimension_numbers = #tpu.dot_dimension_numbers<[1], [0], [0], [1], [0, 0, 1, 1], [], []>} : vector<17x32xbf16>, vector<32x128xbf16>, vector<17x128xf32> -> vector<17x128xf32>
    %129 = arith.addf %105, %128 : vector<17x128xf32>
    %130 = arith.addf %1, %129 : vector<17x128xf32>
    %c0_42 = arith.constant 0 : index
    %c0_43 = arith.constant 0 : index
    %131 = vector.load %arg7[%c0_42, %c0_43] : memref<1x128xf32, #tpu.memory_space<vmem>>, vector<1x128xf32>
    %132 = vector.broadcast %131 : vector<1x128xf32> to vector<17x128xf32>
    %133 = arith.addf %130, %132 : vector<17x128xf32>
    %c0_44 = arith.constant 0 : index
    %c0_45 = arith.constant 0 : index
    %134 = vector.load %arg8[%c0_44, %c0_45] : memref<1x128xf32, #tpu.memory_space<vmem>>, vector<1x128xf32>
    %c0_46 = arith.constant 0 : index
    %c0_47 = arith.constant 0 : index
    %135 = vector.load %arg9[%c0_46, %c0_47] : memref<1x128xf32, #tpu.memory_space<vmem>>, vector<1x128xf32>
    %cst_48 = arith.constant dense<0.000000e+00> : vector<17xf32>
    %136 = vector.multi_reduction <add>, %133, %cst_48 [1] : vector<17x128xf32> to vector<17xf32>
    %137 = vector.shape_cast %136 : vector<17xf32> to vector<17x1xf32>
    %cst_49 = arith.constant 1.280000e+02 : f32
    %138 = vector.broadcast %cst_49 : f32 to vector<17x1xf32>
    %139 = arith.divf %137, %138 : vector<17x1xf32>
    %140 = vector.broadcast %139 : vector<17x1xf32> to vector<17x128xf32>
    %141 = arith.subf %133, %140 : vector<17x128xf32>
    %142 = arith.mulf %141, %141 : vector<17x128xf32>
    %cst_50 = arith.constant dense<0.000000e+00> : vector<17xf32>
    %143 = vector.multi_reduction <add>, %142, %cst_50 [1] : vector<17x128xf32> to vector<17xf32>
    %144 = vector.shape_cast %143 : vector<17xf32> to vector<17x1xf32>
    %cst_51 = arith.constant 1.280000e+02 : f32
    %145 = vector.broadcast %cst_51 : f32 to vector<17x1xf32>
    %146 = arith.divf %144, %145 : vector<17x1xf32>
    %147 = vector.broadcast %139 : vector<17x1xf32> to vector<17x128xf32>
    %148 = arith.subf %133, %147 : vector<17x128xf32>
    %cst_52 = arith.constant 9.99999997E-7 : f32
    %149 = vector.broadcast %cst_52 : f32 to vector<17x1xf32>
    %150 = arith.addf %146, %149 : vector<17x1xf32>
    %151 = math.rsqrt %150 : vector<17x1xf32>
    %152 = vector.broadcast %151 : vector<17x1xf32> to vector<17x128xf32>
    %153 = arith.mulf %148, %152 : vector<17x128xf32>
    %154 = vector.broadcast %134 : vector<1x128xf32> to vector<17x128xf32>
    %155 = arith.mulf %153, %154 : vector<17x128xf32>
    %156 = vector.broadcast %135 : vector<1x128xf32> to vector<17x128xf32>
    %157 = arith.addf %155, %156 : vector<17x128xf32>
    %158 = arith.truncf %157 : vector<17x128xf32> to vector<17x128xbf16>
    %c0_53 = arith.constant 0 : index
    %c0_54 = arith.constant 0 : index
    %159 = vector.load %arg10[%c0_53, %c0_54] : memref<128x512xbf16, #tpu.memory_space<vmem>>, vector<128x512xbf16>
    %cst_55 = arith.constant dense<0.000000e+00> : vector<17x512xf32>
    %160 = tpu.matmul %158, %159, %cst_55 {dimension_numbers = #tpu.dot_dimension_numbers<[1], [0], [0], [1], [0, 0, 1, 1], [], []>} : vector<17x128xbf16>, vector<128x512xbf16>, vector<17x512xf32> -> vector<17x512xf32>
    %c0_56 = arith.constant 0 : index
    %c0_57 = arith.constant 0 : index
    %161 = vector.load %arg11[%c0_56, %c0_57] : memref<1x512xf32, #tpu.memory_space<vmem>>, vector<1x512xf32>
    %162 = vector.broadcast %161 : vector<1x512xf32> to vector<17x512xf32>
    %163 = arith.addf %160, %162 : vector<17x512xf32>
    %cst_58 = arith.constant 5.000000e-01 : f32
    %164 = vector.broadcast %cst_58 : f32 to vector<17x512xf32>
    %165 = arith.mulf %164, %163 : vector<17x512xf32>
    %cst_59 = arith.constant 0.707106769 : f32
    %166 = vector.broadcast %cst_59 : f32 to vector<17x512xf32>
    %167 = arith.mulf %163, %166 : vector<17x512xf32>
    %168 = math.erf %167 : vector<17x512xf32>
    %cst_60 = arith.constant 1.000000e+00 : f32
    %169 = vector.broadcast %cst_60 : f32 to vector<17x512xf32>
    %170 = arith.addf %169, %168 : vector<17x512xf32>
    %171 = arith.mulf %165, %170 : vector<17x512xf32>
    %172 = arith.truncf %171 : vector<17x512xf32> to vector<17x512xbf16>
    %c0_61 = arith.constant 0 : index
    %c0_62 = arith.constant 0 : index
    %173 = vector.load %arg12[%c0_61, %c0_62] : memref<512x128xbf16, #tpu.memory_space<vmem>>, vector<512x128xbf16>
    %cst_63 = arith.constant dense<0.000000e+00> : vector<17x128xf32>
    %174 = tpu.matmul %172, %173, %cst_63 {dimension_numbers = #tpu.dot_dimension_numbers<[1], [0], [0], [1], [0, 0, 1, 1], [], []>} : vector<17x512xbf16>, vector<512x128xbf16>, vector<17x128xf32> -> vector<17x128xf32>
    %175 = arith.addf %133, %174 : vector<17x128xf32>
    %c0_64 = arith.constant 0 : index
    %c0_65 = arith.constant 0 : index
    %176 = vector.load %arg13[%c0_64, %c0_65] : memref<1x128xf32, #tpu.memory_space<vmem>>, vector<1x128xf32>
    %177 = vector.broadcast %176 : vector<1x128xf32> to vector<17x128xf32>
    %178 = arith.addf %175, %177 : vector<17x128xf32>
    %c0_66 = arith.constant 0 : index
    %c0_67 = arith.constant 0 : index
    %c0_68 = arith.constant 0 : index
    %179 = vector.load %arg14[%c0_66, %c0_67, %c0_68] : memref<1x17x128xf32, #tpu.memory_space<vmem>>, vector<1x17x128xf32>
    %180 = vector.shape_cast %179 : vector<1x17x128xf32> to vector<17x128xf32>
    %181 = vector.shape_cast %178 : vector<17x128xf32> to vector<1x17x128xf32>
    tpu.vector_store %arg14[%c0_66, %c0_67, %c0_68], %181 {strides = array<i32>} : memref<1x17x128xf32, #tpu.memory_space<vmem>>, vector<1x17x128xf32>,
    return
  }
  func.func @transform_0(%arg0: i32) -> (i32, i32, i32) {
    %c0_i32 = arith.constant 0 : i32
    %c0_i32_0 = arith.constant 0 : i32
    %c0_i32_1 = arith.constant 0 : i32
    return %arg0, %c0_i32, %c0_i32_0 : i32, i32, i32
  }
  func.func @transform_1(%arg0: i32) -> (i32, i32) {
    %c0_i32 = arith.constant 0 : i32
    %c0_i32_0 = arith.constant 0 : i32
    %c0_i32_1 = arith.constant 0 : i32
    return %c0_i32, %c0_i32_0 : i32, i32
  }
  func.func @transform_2(%arg0: i32) -> (i32, i32) {
    %c0_i32 = arith.constant 0 : i32
    %c0_i32_0 = arith.constant 0 : i32
    %c0_i32_1 = arith.constant 0 : i32
    return %c0_i32, %c0_i32_0 : i32, i32
  }
  func.func @transform_3(%arg0: i32) -> (i32, i32) {
    %c0_i32 = arith.constant 0 : i32
    %c0_i32_0 = arith.constant 0 : i32
    %c0_i32_1 = arith.constant 0 : i32
    return %c0_i32, %c0_i32_0 : i32, i32
  }
  func.func @transform_4(%arg0: i32) -> (i32, i32) {
    %c0_i32 = arith.constant 0 : i32
    %c0_i32_0 = arith.constant 0 : i32
    %c0_i32_1 = arith.constant 0 : i32
    return %c0_i32, %c0_i32_0 : i32, i32
  }
  func.func @transform_5(%arg0: i32) -> (i32, i32) {
    %c0_i32 = arith.constant 0 : i32
    %c0_i32_0 = arith.constant 0 : i32
    %c0_i32_1 = arith.constant 0 : i32
    return %c0_i32, %c0_i32_0 : i32, i32
  }
  func.func @transform_6(%arg0: i32) -> (i32, i32) {
    %c0_i32 = arith.constant 0 : i32
    %c0_i32_0 = arith.constant 0 : i32
    %c0_i32_1 = arith.constant 0 : i32
    return %c0_i32, %c0_i32_0 : i32, i32
  }
  func.func @transform_7(%arg0: i32) -> (i32, i32) {
    %c0_i32 = arith.constant 0 : i32
    %c0_i32_0 = arith.constant 0 : i32
    %c0_i32_1 = arith.constant 0 : i32
    return %c0_i32, %c0_i32_0 : i32, i32
  }
  func.func @transform_8(%arg0: i32) -> (i32, i32) {
    %c0_i32 = arith.constant 0 : i32
    %c0_i32_0 = arith.constant 0 : i32
    %c0_i32_1 = arith.constant 0 : i32
    return %c0_i32, %c0_i32_0 : i32, i32
  }
  func.func @transform_9(%arg0: i32) -> (i32, i32) {
    %c0_i32 = arith.constant 0 : i32
    %c0_i32_0 = arith.constant 0 : i32
    %c0_i32_1 = arith.constant 0 : i32
    return %c0_i32, %c0_i32_0 : i32, i32
  }
  func.func @transform_10(%arg0: i32) -> (i32, i32) {
    %c0_i32 = arith.constant 0 : i32
    %c0_i32_0 = arith.constant 0 : i32
    %c0_i32_1 = arith.constant 0 : i32
    return %c0_i32, %c0_i32_0 : i32, i32
  }
  func.func @transform_11(%arg0: i32) -> (i32, i32) {
    %c0_i32 = arith.constant 0 : i32
    %c0_i32_0 = arith.constant 0 : i32
    %c0_i32_1 = arith.constant 0 : i32
    return %c0_i32, %c0_i32_0 : i32, i32
  }
  func.func @transform_12(%arg0: i32) -> (i32, i32) {
    %c0_i32 = arith.constant 0 : i32
    %c0_i32_0 = arith.constant 0 : i32
    %c0_i32_1 = arith.constant 0 : i32
    return %c0_i32, %c0_i32_0 : i32, i32
  }
  func.func @transform_13(%arg0: i32) -> (i32, i32, i32) {
    %c0_i32 = arith.constant 0 : i32
    %c0_i32_0 = arith.constant 0 : i32
    %c0_i32_1 = arith.constant 0 : i32
    return %arg0, %c0_i32, %c0_i32_0 : i32, i32, i32
  }
}

module attributes {stable_mosaic.version = 11 : i64} {
  func.func @_head_kernel(%arg0: i32, %arg1: memref<2x128xf32, #tpu.memory_space<vmem>>, %arg2: memref<1x128xf32, #tpu.memory_space<vmem>>, %arg3: memref<1x128xf32, #tpu.memory_space<vmem>>, %arg4: memref<128x128xbf16, #tpu.memory_space<vmem>>, %arg5: memref<2x128xf32, #tpu.memory_space<vmem>>) attributes {dimension_semantics = [#tpu.dimension_semantics<arbitrary>], iteration_bounds = array<i64: 1>, scalar_prefetch = 0 : i64, scratch_operands = 0 : i64, tpu.core_type = #tpu.core_type<tc>, window_params = [{pipeline_mode = #tpu.pipeline_mode<synchronous>, transform_indices = @transform_0, window_bounds = array<i64: 2, 128>}, {pipeline_mode = #tpu.pipeline_mode<synchronous>, transform_indices = @transform_1, window_bounds = array<i64: 1, 128>}, {pipeline_mode = #tpu.pipeline_mode<synchronous>, transform_indices = @transform_2, window_bounds = array<i64: 1, 128>}, {pipeline_mode = #tpu.pipeline_mode<synchronous>, transform_indices = @transform_3, window_bounds = array<i64: 128, 128>}, {pipeline_mode = #tpu.pipeline_mode<synchronous>, transform_indices = @transform_4, window_bounds = array<i64: 2, 128>}]} {
    %c0 = arith.constant 0 : index
    %c0_0 = arith.constant 0 : index
    %0 = vector.load %arg1[%c0, %c0_0] : memref<2x128xf32, #tpu.memory_space<vmem>>, vector<2x128xf32>
    %c0_1 = arith.constant 0 : index
    %c0_2 = arith.constant 0 : index
    %1 = vector.load %arg2[%c0_1, %c0_2] : memref<1x128xf32, #tpu.memory_space<vmem>>, vector<1x128xf32>
    %c0_3 = arith.constant 0 : index
    %c0_4 = arith.constant 0 : index
    %2 = vector.load %arg3[%c0_3, %c0_4] : memref<1x128xf32, #tpu.memory_space<vmem>>, vector<1x128xf32>
    %cst = arith.constant dense<0.000000e+00> : vector<2xf32>
    %3 = vector.multi_reduction <add>, %0, %cst [1] : vector<2x128xf32> to vector<2xf32>
    %4 = vector.shape_cast %3 : vector<2xf32> to vector<2x1xf32>
    %cst_5 = arith.constant 1.280000e+02 : f32
    %5 = vector.broadcast %cst_5 : f32 to vector<2x1xf32>
    %6 = arith.divf %4, %5 : vector<2x1xf32>
    %7 = vector.broadcast %6 : vector<2x1xf32> to vector<2x128xf32>
    %8 = arith.subf %0, %7 : vector<2x128xf32>
    %9 = arith.mulf %8, %8 : vector<2x128xf32>
    %cst_6 = arith.constant dense<0.000000e+00> : vector<2xf32>
    %10 = vector.multi_reduction <add>, %9, %cst_6 [1] : vector<2x128xf32> to vector<2xf32>
    %11 = vector.shape_cast %10 : vector<2xf32> to vector<2x1xf32>
    %cst_7 = arith.constant 1.280000e+02 : f32
    %12 = vector.broadcast %cst_7 : f32 to vector<2x1xf32>
    %13 = arith.divf %11, %12 : vector<2x1xf32>
    %14 = vector.broadcast %6 : vector<2x1xf32> to vector<2x128xf32>
    %15 = arith.subf %0, %14 : vector<2x128xf32>
    %cst_8 = arith.constant 9.99999997E-7 : f32
    %16 = vector.broadcast %cst_8 : f32 to vector<2x1xf32>
    %17 = arith.addf %13, %16 : vector<2x1xf32>
    %18 = math.rsqrt %17 : vector<2x1xf32>
    %19 = vector.broadcast %18 : vector<2x1xf32> to vector<2x128xf32>
    %20 = arith.mulf %15, %19 : vector<2x128xf32>
    %21 = vector.broadcast %1 : vector<1x128xf32> to vector<2x128xf32>
    %22 = arith.mulf %20, %21 : vector<2x128xf32>
    %23 = vector.broadcast %2 : vector<1x128xf32> to vector<2x128xf32>
    %24 = arith.addf %22, %23 : vector<2x128xf32>
    %25 = arith.truncf %24 : vector<2x128xf32> to vector<2x128xbf16>
    %c0_9 = arith.constant 0 : index
    %c0_10 = arith.constant 0 : index
    %26 = vector.load %arg4[%c0_9, %c0_10] : memref<128x128xbf16, #tpu.memory_space<vmem>>, vector<128x128xbf16>
    %cst_11 = arith.constant dense<0.000000e+00> : vector<2x128xf32>
    %27 = tpu.matmul %25, %26, %cst_11 {dimension_numbers = #tpu.dot_dimension_numbers<[1], [0], [0], [1], [0, 0, 1, 1], [], []>} : vector<2x128xbf16>, vector<128x128xbf16>, vector<2x128xf32> -> vector<2x128xf32>
    %28 = arith.mulf %27, %27 : vector<2x128xf32>
    %cst_12 = arith.constant dense<0.000000e+00> : vector<2xf32>
    %29 = vector.multi_reduction <add>, %28, %cst_12 [1] : vector<2x128xf32> to vector<2xf32>
    %30 = vector.shape_cast %29 : vector<2xf32> to vector<2x1xf32>
    %31 = math.sqrt %30 : vector<2x1xf32>
    %cst_13 = arith.constant 9.99999996E-13 : f32
    %32 = vector.broadcast %cst_13 : f32 to vector<2x1xf32>
    %33 = arith.maximumf %31, %32 : vector<2x1xf32>
    %34 = vector.broadcast %33 : vector<2x1xf32> to vector<2x128xf32>
    %35 = arith.divf %27, %34 : vector<2x128xf32>
    %c0_14 = arith.constant 0 : index
    %c0_15 = arith.constant 0 : index
    %36 = vector.load %arg5[%c0_14, %c0_15] : memref<2x128xf32, #tpu.memory_space<vmem>>, vector<2x128xf32>
    tpu.vector_store %arg5[%c0_14, %c0_15], %35 {strides = array<i32>} : memref<2x128xf32, #tpu.memory_space<vmem>>, vector<2x128xf32>,
    return
  }
  func.func @transform_0(%arg0: i32) -> (i32, i32) {
    %c0_i32 = arith.constant 0 : i32
    %c0_i32_0 = arith.constant 0 : i32
    %c0_i32_1 = arith.constant 0 : i32
    return %c0_i32, %c0_i32_0 : i32, i32
  }
  func.func @transform_1(%arg0: i32) -> (i32, i32) {
    %c0_i32 = arith.constant 0 : i32
    %c0_i32_0 = arith.constant 0 : i32
    %c0_i32_1 = arith.constant 0 : i32
    return %c0_i32, %c0_i32_0 : i32, i32
  }
  func.func @transform_2(%arg0: i32) -> (i32, i32) {
    %c0_i32 = arith.constant 0 : i32
    %c0_i32_0 = arith.constant 0 : i32
    %c0_i32_1 = arith.constant 0 : i32
    return %c0_i32, %c0_i32_0 : i32, i32
  }
  func.func @transform_3(%arg0: i32) -> (i32, i32) {
    %c0_i32 = arith.constant 0 : i32
    %c0_i32_0 = arith.constant 0 : i32
    %c0_i32_1 = arith.constant 0 : i32
    return %c0_i32, %c0_i32_0 : i32, i32
  }
  func.func @transform_4(%arg0: i32) -> (i32, i32) {
    %c0_i32 = arith.constant 0 : i32
    %c0_i32_0 = arith.constant 0 : i32
    %c0_i32_1 = arith.constant 0 : i32
    return %c0_i32, %c0_i32_0 : i32, i32
  }
}

</mosaic_0001>

<llo_original>
// kernel: _lambda_.5
$region0: #{_lambda_.5}
  #allocation0 [shape = 'u32[]', space=smem, size = 0x4, offset = 0x4, fixed_abs, tag = 'smem constant byte address 0x4 - core index']
  #allocation1 [shape = 'u32[72,128]{1,0:T(1,128)}', space=vmem, size = 0x9000, scoped, tag = 'internal scratch']
  %s0 = inlined_call_operand.vmem [shape: f32[32,48], index: 0, kind: input, shape index: {}]
  %s1 = inlined_call_operand.vmem [shape: bf16[48,128], index: 1, kind: input, shape index: {}]
  %s2 = inlined_call_operand.vmem [shape: f32[32,128], index: 2, kind: output, shape index: {}]
  %s3 = sld [smem:[#allocation0]]
  $region41: #{_lambda_.5} parent=0
    _
  %s5 = ssub.s32 1, %s3
  %s6 = scalar_select 0, %s5, %s3
  loop: start=0, step=1, limit=4
  $region2: #{_lambda_.5} parent=0 // loop_pre_header
    _
  $region3: #{_lambda_.5} parent=0 // loop_header
    %s8 = sphi 0, %s12
    %p9 = scmp.ge.s32.totalorder %s8, 4
    %s15 = sphi 0, %s27
    %s16 = sphi 0, %s23
    %s17 = sphi 0, %s15
    %s18 = sphi 0, %s16
    %s19 = sphi 0, %s17
    %s20 = sphi 0, %s18
    %s30 = sphi 0, %s32
    %s33 = sphi 0, %s30
    %s34 = sphi 0, %s33
    %s50 = sphi 0, %s34
    %s56 = sphi 0, %s58
    %s59 = sphi 0, %s56
    %s60 = sphi 0, %s59
    %s76 = sphi 0, %s60
    %s84 = sphi 0, %s86
    %s87 = sphi 0, %s84
    %s88 = sphi 0, %s87
    %s104 = sphi 0, %s88
  $region4: #{_lambda_.5} parent=0 // loop_header_branch
    %11 = sbr.rel (%p9) target = $region8
  $region5: #{_lambda_.5} parent=0 // loop_body
    %s13 = ssub.s32 %s8, 1
    %s14 = ssub.s32 %s8, 2
    %s21 = sadd.s32 1, %s16
    %p22 = scmp.ge.s32.totalorder %s21, 1
    %s23 = scalar_select %p22, 0, %s21
    %s24 = sadd.s32 1, %s15
    %s25 = scalar_select %p22, %s24, %s15
    %p26 = scmp.ge.s32.totalorder %s25, 2
    %s27 = scalar_select %p26, 0, %s25
    %s28 = ssub.s32 %s15, %s27
    %p29 = scmp.eq.s32.totalorder %s28, 0
    %s31 = sadd.s32 %s30, 1
    %s32 = scalar_select %p29, %s30, %s31
    %p35 = pneg %p29
    %p36 = scmp.eq.s32.totalorder %s8, 1
    %p37 = por %p35, %p36
    %p38 = scmp.ne.s32.totalorder %s30, %s33
    %p39 = scmp.eq.s32.totalorder %s8, 0
    %p40 = por %p38, %p39
    %p41 = scmp.ne.s32.totalorder %s30, %s33
    %p42 = scmp.eq.s32.totalorder %s13, 1
    %p43 = por %p41, %p42
    %p44 = scmp.ne.s32.totalorder %s33, %s34
    %p45 = scmp.eq.s32.totalorder %s13, 0
    %p46 = por %p44, %p45
    %p47 = scmp.ne.s32.totalorder %s33, %s34
    %p48 = scmp.eq.s32.totalorder %s14, 1
    %p49 = por %p47, %p48
    %p51 = scmp.ne.s32.totalorder %s34, %s50
    %p52 = scmp.eq.s32.totalorder %s14, 0
    %p53 = por %p51, %p52
    %s54 = ssub.s32 %s16, %s23
    %p55 = scmp.eq.s32.totalorder %s54, 0
    %s57 = sadd.s32 %s56, 1
    %s58 = scalar_select %p55, %s56, %s57
    %p61 = pneg %p55
    %p62 = scmp.eq.s32.totalorder %s8, 1
    %p63 = por %p61, %p62
    %p64 = scmp.ne.s32.totalorder %s56, %s59
    %p65 = scmp.eq.s32.totalorder %s8, 0
    %p66 = por %p64, %p65
    %p67 = scmp.ne.s32.totalorder %s56, %s59
    %p68 = scmp.eq.s32.totalorder %s13, 1
    %p69 = por %p67, %p68
    %p70 = scmp.ne.s32.totalorder %s59, %s60
    %p71 = scmp.eq.s32.totalorder %s13, 0
    %p72 = por %p70, %p71
    %p73 = scmp.ne.s32.totalorder %s59, %s60
    %p74 = scmp.eq.s32.totalorder %s14, 1
    %p75 = por %p73, %p74
    %p77 = scmp.ne.s32.totalorder %s60, %s76
    %p78 = scmp.eq.s32.totalorder %s14, 0
    %p79 = por %p77, %p78
    %s80 = ssub.s32 %s15, %s27
    %s81 = ssub.s32 %s16, %s23
    %s82 = sor.u32 %s80, %s81
    %p83 = scmp.eq.s32.totalorder %s82, 0
    %s85 = sadd.s32 %s84, 1
    %s86 = scalar_select %p83, %s84, %s85
    %p89 = pneg %p83
    %p90 = scmp.eq.s32.totalorder %s8, 1
    %p91 = por %p89, %p90
    %p92 = scmp.ne.s32.totalorder %s84, %s87
    %p93 = scmp.eq.s32.totalorder %s8, 0
    %p94 = por %p92, %p93
    %p95 = scmp.ne.s32.totalorder %s84, %s87
    %p96 = scmp.eq.s32.totalorder %s13, 1
    %p97 = por %p95, %p96
    %p98 = scmp.ne.s32.totalorder %s87, %s88
    %p99 = scmp.eq.s32.totalorder %s13, 0
    %p100 = por %p98, %p99
    %p101 = scmp.ne.s32.totalorder %s87, %s88
    %p102 = scmp.eq.s32.totalorder %s14, 1
    %p103 = por %p101, %p102
    %p105 = scmp.ne.s32.totalorder %s88, %s104
    %p106 = scmp.eq.s32.totalorder %s14, 0
    %p107 = por %p105, %p106
    %p108 = scmp.le.s32.totalorder 1, %s8
    %p109 = scmp.lt.s32.totalorder %s8, 3
    %p110 = pnand %p108, %p109
    %p111 = pneg %p110
    // Predicated region
    $region9: #{_lambda_.5} parent=5 // pred_check
      _
    $region10: #{_lambda_.5} parent=5 // pred_check_branch
      %113 = sbr.rel (%p110) target = $region12
    $region11: #{_lambda_.5} parent=5 // pred_region
      %s114 = ssub.s32 %s8, 1
      // Predicated region
      $region13: #{_lambda_.5} parent=11 // pred_check
        %p115 = pneg %p72
      $region14: #{_lambda_.5} parent=11 // pred_check_branch
        %117 = sbr.rel (%p115) target = $region16
      $region15: #{_lambda_.5} parent=11 // pred_region
        %p118 = scmp.lt.s32.totalorder %s18, 0
        %s119 = scalar_select %p118, %s18, 0
        %s120 = smul.addr %s119, 4
        %s121 = scalar_lea.vmem %s1, %s120
      $region16: #{_lambda_.5} parent=11 // pred_fallthru
        _
    $region12: #{_lambda_.5} parent=5 // pred_fallthru
      _
    %p122 = scmp.lt.s32.totalorder %s8, 2
    // Predicated region
    $region17: #{_lambda_.5} parent=5 // pred_check
      %p123 = pneg %p122
    $region18: #{_lambda_.5} parent=5 // pred_check_branch
      %125 = sbr.rel (%p123) target = $region20
    $region19: #{_lambda_.5} parent=5 // pred_region
      // Predicated region
      $region21: #{_lambda_.5} parent=19 // pred_check
        %p126 = pneg %p40
      $region22: #{_lambda_.5} parent=19 // pred_check_branch
        %128 = sbr.rel (%p126) target = $region24
      $region23: #{_lambda_.5} parent=19 // pred_region
        %s129 = smul.u32 2, %s15
        %p130 = scmp.lt.s32.totalorder %s129, 3
        %s131 = scalar_select %p130, %s129, 3
        %s132 = smul.addr %s131, 8
        %s133 = scalar_lea.vmem %s0, %s132
        %s134 = smul.u32 2, %s15
      $region24: #{_lambda_.5} parent=19 // pred_fallthru
        _
    $region20: #{_lambda_.5} parent=5 // pred_fallthru
      _
    %p135 = scmp.le.s32.totalorder 1, %s8
    %p136 = scmp.lt.s32.totalorder %s8, 3
    %p137 = pnand %p135, %p136
    %p138 = pneg %p137
    // Predicated region
    $region25: #{_lambda_.5} parent=5 // pred_check
      _
    $region26: #{_lambda_.5} parent=5 // pred_check_branch
      %140 = sbr.rel (%p137) target = $region28
    $region27: #{_lambda_.5} parent=5 // pred_region
      %s141 = ssub.s32 %s8, 1
      %s142 = smul.u32 2, %s17
      %p143 = scmp.lt.s32.totalorder %s142, 3
      %s144 = scalar_select %p143, %s142, 3
      %s145 = smul.addr %s144, 8
      %s146 = scalar_lea.vmem %s0, %s145
      %p147 = pneg %p46
      %p148 = pneg %p43
      %p149 = scmp.lt.s32.totalorder %s18, 0
      %s150 = scalar_select %p149, %s18, 0
      %s151 = smul.addr %s150, 4
      %s152 = scalar_lea.vmem %s1, %s151
      %p153 = pneg %p72
      %p154 = pneg %p69
      %p155 = pneg %p100
      %p156 = pneg %p97
      %s157 = smul.u32 2, %s17
      %p158 = scmp.lt.s32.totalorder %s157, 3
      %s159 = scalar_select %p158, %s157, 3
      %p160 = scmp.lt.s32.totalorder %s18, 0
      %s161 = scalar_select %p160, %s18, 0
      %s162 = sadd.s32 %s161, %s159
      %s163 = smul.addr %s162, 8
      %s164 = scalar_lea.vmem %s2, %s163
      %s165 = smul.u32 2, %s17
      %p166 = scmp.lt.s32.totalorder %s165, 3
      %s167 = scalar_select %p166, %s165, 3
      %s168 = smul.addr %s167, 8
      %s169 = scalar_lea.vmem %s0, %s168
      %s170 = smul.u32 2, %s17
      %p171 = scmp.lt.s32.totalorder %s18, 0
      %s172 = scalar_select %p171, %s18, 0
      %s173 = smul.addr %s172, 4
      %s174 = scalar_lea.vmem %s1, %s173
      %s175 = smul.u32 2, %s17
      %p176 = scmp.lt.s32.totalorder %s175, 3
      %s177 = scalar_select %p176, %s175, 3
      %p178 = scmp.lt.s32.totalorder %s18, 0
      %s179 = scalar_select %p178, %s18, 0
      %s180 = sadd.s32 %s179, %s177
      %s181 = smul.addr %s180, 8
      %s182 = scalar_lea.vmem %s2, %s181
      %s183 = smul.u32 2, %s17
      %v185 = vld [vmem:[%s169] sm:$0xff]
      %v186 = vld [vmem:[%s169 + $0x8] sm:$0xff]
      %v187 = vpack.c.bf16 %v186, %v185
      %v188 = vld [vmem:[%s174] sm:$0xf]
      %v189 = vld [vmem:[%s174 + $0x4] sm:$0xf]
      %v190 = vld [vmem:[%s174 + $0x8] sm:$0xf]
      %v191 = vld [vmem:[%s174 + $0xc] sm:$0xf]
      %v192 = vld [vmem:[%s174 + $0x10] sm:$0xf]
      %v193 = vld [vmem:[%s174 + $0x14] sm:$0xf]
      %v200 = vunpack.c.l.b16 %v188
      %v201 = vunpack.c.l.b16 %v189
      %v202 = vunpack.c.l.b16 %v190
      %v203 = vunpack.c.l.b16 %v191
      %v204 = vunpack.c.l.b16 %v192
      %v205 = vunpack.c.l.b16 %v193
      %v206 = vpack.c.b16 %v201, %v200
      %v207 = vpack.c.b16 %v203, %v202
      %v208 = vpack.c.b16 %v205, %v204
      %vm212 = vcmask 392192
      %v214 = vsel %vm212, %v187, 0
      %216 = vmatpush.bf16.msra.mxu0 0
      %217 = vmatpush.bf16.msra.mxu0 0
      %218 = vmatpush.bf16.msra.mxu0 0
      %219 = vmatpush.bf16.msra.mxu0 0
      %220 = vmatpush.bf16.msra.mxu0 0
      %221 = vmatpush.bf16.msra.mxu0 %v208
      %222 = vmatpush.bf16.msra.mxu0 %v207
      %223 = vmatpush.bf16.msra.mxu0 %v206
      %224 = vmatmul.bf16.gmra.mxu0 %v214
      %v225 = vpop.f32.mrf.mxu0
      %v226 = vadd.f32 0.0, %v225
      %v227 = vpop.f32.mrf.mxu0
      %v228 = vadd.f32 0.0, %v227
      %229 = vdwg.mxu0
      %230 = vst [vmem:[%s182] sm:$0xff] %v226
      %231 = vst [vmem:[%s182 + $0x8] sm:$0xff] %v228
      %s232 = smul.u32 2, %s17
      %p233 = scmp.lt.s32.totalorder %s232, 3
      %s234 = scalar_select %p233, %s232, 3
      %p235 = scmp.lt.s32.totalorder %s18, 0
      %s236 = scalar_select %p235, %s18, 0
      %s237 = sadd.s32 %s236, %s234
      %s238 = smul.addr %s237, 8
      %s239 = scalar_lea.vmem %s2, %s238
      // Predicated region
      $region29: #{_lambda_.5} parent=27 // pred_check
        %p240 = pneg %p97
      $region30: #{_lambda_.5} parent=27 // pred_check_branch
        %242 = sbr.rel (%p240) target = $region32
      $region31: #{_lambda_.5} parent=27 // pred_region
        %s243 = smul.u32 2, %s17
      $region32: #{_lambda_.5} parent=27 // pred_fallthru
        _
    $region28: #{_lambda_.5} parent=5 // pred_fallthru
      _
    %p244 = scmp.le.s32.totalorder 2, %s8
    // Predicated region
    $region33: #{_lambda_.5} parent=5 // pred_check
      %p245 = pneg %p244
    $region34: #{_lambda_.5} parent=5 // pred_check_branch
      %247 = sbr.rel (%p245) target = $region36
    $region35: #{_lambda_.5} parent=5 // pred_region
      %s248 = ssub.s32 %s8, 2
      // Predicated region
      $region37: #{_lambda_.5} parent=35 // pred_check
        %p249 = pneg %p103
      $region38: #{_lambda_.5} parent=35 // pred_check_branch
        %251 = sbr.rel (%p249) target = $region40
      $region39: #{_lambda_.5} parent=35 // pred_region
        %s252 = smul.u32 2, %s19
        %p253 = scmp.lt.s32.totalorder %s252, 3
        %s254 = scalar_select %p253, %s252, 3
        %p255 = scmp.lt.s32.totalorder %s20, 0
        %s256 = scalar_select %p255, %s20, 0
        %s257 = sadd.s32 %s256, %s254
        %s258 = smul.addr %s257, 8
        %s259 = scalar_lea.vmem %s2, %s258
      $region40: #{_lambda_.5} parent=35 // pred_fallthru
        _
    $region36: #{_lambda_.5} parent=5 // pred_fallthru
      _
  $region6: #{_lambda_.5} parent=0 // loop_footer
    %s12 = sadd.s32 1, %s8
  $region7: #{_lambda_.5} parent=0 // loop_footer_branch
    %7 = sbr.rel target = $region3
  $region8: #{_lambda_.5} parent=0 // loop_exit
    _

// kernel: _lambda_.6
$region0: #{_lambda_.6}
  #allocation0 [shape = 'u32[]', space=smem, size = 0x4, offset = 0x4, fixed_abs, tag = 'smem constant byte address 0x4 - core index']
  #allocation1 [shape = 'u32[72,128]{1,0:T(1,128)}', space=vmem, size = 0x9000, scoped, tag = 'internal scratch']
  %s0 = inlined_call_operand.vmem [shape: f32[2,17,128], index: 0, kind: input, shape index: {}]
  %s1 = inlined_call_operand.vmem [shape: f32[1,17,128], index: 1, kind: input, shape index: {}]
  %s2 = inlined_call_operand.vmem [shape: f32[1,128], index: 2, kind: input, shape index: {}]
  %s3 = inlined_call_operand.vmem [shape: f32[1,128], index: 3, kind: input, shape index: {}]
  %s4 = inlined_call_operand.vmem [shape: f32[2,17,128], index: 4, kind: output, shape index: {}]
  %s5 = sld [smem:[#allocation0]]
  $region49: #{_lambda_.6} parent=0
    _
  %s7 = ssub.s32 1, %s5
  %s8 = scalar_select 0, %s7, %s5
  loop: start=0, step=1, limit=4
  $region2: #{_lambda_.6} parent=0 // loop_pre_header
    _
  $region3: #{_lambda_.6} parent=0 // loop_header
    %s10 = sphi 0, %s14
    %p11 = scmp.ge.s32.totalorder %s10, 4
    %s20 = sphi 0, %s22
    %s23 = sphi 0, %s20
    %s24 = sphi 0, %s23
    %s40 = sphi 0, %s24
    %s44 = sphi 0, %s44
    %s46 = sphi 0, %s44
    %s47 = sphi 0, %s46
    %s61 = sphi 0, %s47
    %s65 = sphi 0, %s65
    %s67 = sphi 0, %s65
    %s68 = sphi 0, %s67
    %s82 = sphi 0, %s68
    %s86 = sphi 0, %s86
    %s88 = sphi 0, %s86
    %s89 = sphi 0, %s88
    %s103 = sphi 0, %s89
    %s109 = sphi 0, %s111
    %s112 = sphi 0, %s109
    %s113 = sphi 0, %s112
    %s129 = sphi 0, %s113
  $region4: #{_lambda_.6} parent=0 // loop_header_branch
    %13 = sbr.rel (%p11) target = $region8
  $region5: #{_lambda_.6} parent=0 // loop_body
    %s15 = ssub.s32 %s10, 1
    %s16 = ssub.s32 %s10, 2
    %s17 = sadd.s32 %s10, 1
    %s18 = ssub.s32 %s10, %s17
    %p19 = scmp.eq.s32.totalorder %s18, 0
    %s21 = sadd.s32 %s20, 1
    %s22 = scalar_select %p19, %s20, %s21
    %p25 = pneg %p19
    %p26 = scmp.eq.s32.totalorder %s10, 1
    %p27 = por %p25, %p26
    %p28 = scmp.ne.s32.totalorder %s20, %s23
    %p29 = scmp.eq.s32.totalorder %s10, 0
    %p30 = por %p28, %p29
    %p31 = scmp.ne.s32.totalorder %s20, %s23
    %p32 = scmp.eq.s32.totalorder %s15, 1
    %p33 = por %p31, %p32
    %p34 = scmp.ne.s32.totalorder %s23, %s24
    %p35 = scmp.eq.s32.totalorder %s15, 0
    %p36 = por %p34, %p35
    %p37 = scmp.ne.s32.totalorder %s23, %s24
    %p38 = scmp.eq.s32.totalorder %s16, 1
    %p39 = por %p37, %p38
    %p41 = scmp.ne.s32.totalorder %s24, %s40
    %p42 = scmp.eq.s32.totalorder %s16, 0
    %p43 = por %p41, %p42
    %s45 = sadd.s32 %s44, 1
    %p48 = scmp.eq.s32.totalorder %s10, 1
    %p49 = scmp.ne.s32.totalorder %s44, %s46
    %p50 = scmp.eq.s32.totalorder %s10, 0
    %p51 = por %p49, %p50
    %p52 = scmp.ne.s32.totalorder %s44, %s46
    %p53 = scmp.eq.s32.totalorder %s15, 1
    %p54 = por %p52, %p53
    %p55 = scmp.ne.s32.totalorder %s46, %s47
    %p56 = scmp.eq.s32.totalorder %s15, 0
    %p57 = por %p55, %p56
    %p58 = scmp.ne.s32.totalorder %s46, %s47
    %p59 = scmp.eq.s32.totalorder %s16, 1
    %p60 = por %p58, %p59
    %p62 = scmp.ne.s32.totalorder %s47, %s61
    %p63 = scmp.eq.s32.totalorder %s16, 0
    %p64 = por %p62, %p63
    %s66 = sadd.s32 %s65, 1
    %p69 = scmp.eq.s32.totalorder %s10, 1
    %p70 = scmp.ne.s32.totalorder %s65, %s67
    %p71 = scmp.eq.s32.totalorder %s10, 0
    %p72 = por %p70, %p71
    %p73 = scmp.ne.s32.totalorder %s65, %s67
    %p74 = scmp.eq.s32.totalorder %s15, 1
    %p75 = por %p73, %p74
    %p76 = scmp.ne.s32.totalorder %s67, %s68
    %p77 = scmp.eq.s32.totalorder %s15, 0
    %p78 = por %p76, %p77
    %p79 = scmp.ne.s32.totalorder %s67, %s68
    %p80 = scmp.eq.s32.totalorder %s16, 1
    %p81 = por %p79, %p80
    %p83 = scmp.ne.s32.totalorder %s68, %s82
    %p84 = scmp.eq.s32.totalorder %s16, 0
    %p85 = por %p83, %p84
    %s87 = sadd.s32 %s86, 1
    %p90 = scmp.eq.s32.totalorder %s10, 1
    %p91 = scmp.ne.s32.totalorder %s86, %s88
    %p92 = scmp.eq.s32.totalorder %s10, 0
    %p93 = por %p91, %p92
    %p94 = scmp.ne.s32.totalorder %s86, %s88
    %p95 = scmp.eq.s32.totalorder %s15, 1
    %p96 = por %p94, %p95
    %p97 = scmp.ne.s32.totalorder %s88, %s89
    %p98 = scmp.eq.s32.totalorder %s15, 0
    %p99 = por %p97, %p98
    %p100 = scmp.ne.s32.totalorder %s88, %s89
    %p101 = scmp.eq.s32.totalorder %s16, 1
    %p102 = por %p100, %p101
    %p104 = scmp.ne.s32.totalorder %s89, %s103
    %p105 = scmp.eq.s32.totalorder %s16, 0
    %p106 = por %p104, %p105
    %s107 = ssub.s32 %s10, %s17
    %p108 = scmp.eq.s32.totalorder %s107, 0
    %s110 = sadd.s32 %s109, 1
    %s111 = scalar_select %p108, %s109, %s110
    %p114 = pneg %p108
    %p115 = scmp.eq.s32.totalorder %s10, 1
    %p116 = por %p114, %p115
    %p117 = scmp.ne.s32.totalorder %s109, %s112
    %p118 = scmp.eq.s32.totalorder %s10, 0
    %p119 = por %p117, %p118
    %p120 = scmp.ne.s32.totalorder %s109, %s112
    %p121 = scmp.eq.s32.totalorder %s15, 1
    %p122 = por %p120, %p121
    %p123 = scmp.ne.s32.totalorder %s112, %s113
    %p124 = scmp.eq.s32.totalorder %s15, 0
    %p125 = por %p123, %p124
    %p126 = scmp.ne.s32.totalorder %s112, %s113
    %p127 = scmp.eq.s32.totalorder %s16, 1
    %p128 = por %p126, %p127
    %p130 = scmp.ne.s32.totalorder %s113, %s129
    %p131 = scmp.eq.s32.totalorder %s16, 0
    %p132 = por %p130, %p131
    %p133 = scmp.le.s32.totalorder 1, %s10
    %p134 = scmp.lt.s32.totalorder %s10, 3
    %p135 = pnand %p133, %p134
    %p136 = pneg %p135
    // Predicated region
    $region9: #{_lambda_.6} parent=5 // pred_check
      _
    $region10: #{_lambda_.6} parent=5 // pred_check_branch
      %138 = sbr.rel (%p135) target = $region12
    $region11: #{_lambda_.6} parent=5 // pred_region
      %s139 = ssub.s32 %s10, 1
      // Predicated region
      $region13: #{_lambda_.6} parent=11 // pred_check
        %p140 = pneg %p57
      $region14: #{_lambda_.6} parent=11 // pred_check_branch
        %142 = sbr.rel (%p140) target = $region16
      $region15: #{_lambda_.6} parent=11 // pred_region
        _
      $region16: #{_lambda_.6} parent=11 // pred_fallthru
        _
      // Predicated region
      $region17: #{_lambda_.6} parent=11 // pred_check
        %p143 = pneg %p78
      $region18: #{_lambda_.6} parent=11 // pred_check_branch
        %145 = sbr.rel (%p143) target = $region20
      $region19: #{_lambda_.6} parent=11 // pred_region
        _
      $region20: #{_lambda_.6} parent=11 // pred_fallthru
        _
      // Predicated region
      $region21: #{_lambda_.6} parent=11 // pred_check
        %p146 = pneg %p99
      $region22: #{_lambda_.6} parent=11 // pred_check_branch
        %148 = sbr.rel (%p146) target = $region24
      $region23: #{_lambda_.6} parent=11 // pred_region
        _
      $region24: #{_lambda_.6} parent=11 // pred_fallthru
        _
    $region12: #{_lambda_.6} parent=5 // pred_fallthru
      _
    %p149 = scmp.lt.s32.totalorder %s10, 2
    // Predicated region
    $region25: #{_lambda_.6} parent=5 // pred_check
      %p150 = pneg %p149
    $region26: #{_lambda_.6} parent=5 // pred_check_branch
      %152 = sbr.rel (%p150) target = $region28
    $region27: #{_lambda_.6} parent=5 // pred_region
      // Predicated region
      $region29: #{_lambda_.6} parent=27 // pred_check
        %p153 = pneg %p30
      $region30: #{_lambda_.6} parent=27 // pred_check_branch
        %155 = sbr.rel (%p153) target = $region32
      $region31: #{_lambda_.6} parent=27 // pred_region
        %p156 = scmp.lt.s32.totalorder %s10, 1
        %s157 = scalar_select %p156, %s10, 1
        %s158 = smul.addr %s157, 3
        %s159 = smul.addr %s158, 8
        %s160 = scalar_lea.vmem %s0, %s159
      $region32: #{_lambda_.6} parent=27 // pred_fallthru
        _
    $region28: #{_lambda_.6} parent=5 // pred_fallthru
      _
    %p161 = scmp.le.s32.totalorder 1, %s10
    %p162 = scmp.lt.s32.totalorder %s10, 3
    %p163 = pnand %p161, %p162
    %p164 = pneg %p163
    // Predicated region
    $region33: #{_lambda_.6} parent=5 // pred_check
      _
    $region34: #{_lambda_.6} parent=5 // pred_check_branch
      %166 = sbr.rel (%p163) target = $region36
    $region35: #{_lambda_.6} parent=5 // pred_region
      %s167 = ssub.s32 %s10, 1
      %p168 = scmp.lt.s32.totalorder %s15, 1
      %s169 = scalar_select %p168, %s15, 1
      %s170 = smul.addr %s169, 3
      %s171 = smul.addr %s170, 8
      %s172 = scalar_lea.vmem %s0, %s171
      %p173 = pneg %p36
      %p174 = pneg %p33
      %p175 = pneg %p57
      %p176 = pneg %p54
      %p177 = pneg %p78
      %p178 = pneg %p75
      %p179 = pneg %p99
      %p180 = pneg %p96
      %p181 = pneg %p125
      %p182 = pneg %p122
      %p183 = scmp.lt.s32.totalorder %s15, 1
      %s184 = scalar_select %p183, %s15, 1
      %s185 = smul.addr %s184, 3
      %s186 = smul.addr %s185, 8
      %s187 = scalar_lea.vmem %s4, %s186
      %p188 = scmp.lt.s32.totalorder %s15, 1
      %s189 = scalar_select %p188, %s15, 1
      %s190 = smul.addr %s189, 3
      %s191 = smul.addr %s190, 8
      %s192 = scalar_lea.vmem %s0, %s191
      %p193 = scmp.lt.s32.totalorder %s15, 1
      %s194 = scalar_select %p193, %s15, 1
      %s195 = smul.addr %s194, 3
      %s196 = smul.addr %s195, 8
      %s197 = scalar_lea.vmem %s4, %s196
      %v198 = vld [vmem:[%s192] sm:$0xff]
      %v199 = vld [vmem:[%s192 + $0x8] sm:$0xff]
      %v200 = vld [vmem:[%s192 + $0x10] sm:$0x1]
      %v201 = vld [vmem:[%s1] sm:$0xff]
      %v202 = vld [vmem:[%s1 + $0x8] sm:$0xff]
      %v203 = vld [vmem:[%s1 + $0x10] sm:$0x1]
      %v204 = vadd.f32 %v198, %v201
      %v205 = vadd.f32 %v199, %v202
      %v206 = vadd.f32 %v200, %v203
      %v207 = vld [vmem:[%s2] sm:$0x1]
      %v208 = vld [vmem:[%s3] sm:$0x1]
      %209 = vadd.xlane.f32.xlu0 %v204
      %v210 = vpop.xlane.xlu0 %209
      %211 = vadd.xlane.f32.xlu0 %v205
      %v212 = vpop.xlane.xlu0 %211
      %vm213 = vcmask 1040384
      %v214 = vsel %vm213, %v206, 0.0
      %215 = vadd.xlane.f32.xlu0 %v214
      %v216 = vpop.xlane.xlu0 %215
      %v217 = vrcp.pop 128.0
      %v218 = vmul.f32 128.0, %v217
      %v219 = vsub.f32 1.0, %v218
      %v220 = vmul.f32 %v217, %v219
      %v221 = vadd.f32 %v217, %v220
      %vm222 = vweird.f32 %v217
      %v223 = vsel %vm222, %v217, %v221
      %v224 = vmul.f32 %v210, %v223
      %v225 = vmul.f32 %v212, %v223
      %v226 = vmul.f32 %v216, %v223
      %v227 = vsub.f32 %v204, %v224
      %v228 = vsub.f32 %v205, %v225
      %v229 = vsub.f32 %v206, %v226
      %v230 = vmul.f32 %v227, %v227
      %v231 = vmul.f32 %v228, %v228
      %v232 = vmul.f32 %v229, %v229
      %233 = vadd.xlane.f32.xlu0 %v230
      %v234 = vpop.xlane.xlu0 %233
      %235 = vadd.xlane.f32.xlu0 %v231
      %v236 = vpop.xlane.xlu0 %235
      %v237 = vsel %vm213, %v232, 0.0
      %238 = vadd.xlane.f32.xlu0 %v237
      %v239 = vpop.xlane.xlu0 %238
      %v240 = vmul.f32 %v234, %v223
      %v241 = vmul.f32 %v236, %v223
      %v242 = vmul.f32 %v239, %v223
      %v243 = vadd.f32 %v240, 1e-06
      %v244 = vadd.f32 %v241, 1e-06
      %v245 = vadd.f32 %v242, 1e-06
      %v246 = vrsqrt.pop %v243
      %v247 = vmul.f32 %v246, %v243
      %v248 = vmul.f32 %v247, %v246
      %v249 = vmul.f32 0.5, %v248
      %v250 = vsub.f32 1.5, %v249
      %v251 = vmul.f32 %v246, %v250
      %vm252 = vweird.f32 %v243
      %vm253 = vweird.f32 %v246
      %vm254 = vmor %vm252, %vm253
      %v255 = vsel %vm254, %v246, %v251
      %v256 = vrsqrt.pop %v244
      %v257 = vmul.f32 %v256, %v244
      %v258 = vmul.f32 %v257, %v256
      %v259 = vmul.f32 0.5, %v258
      %v260 = vsub.f32 1.5, %v259
      %v261 = vmul.f32 %v256, %v260
      %vm262 = vweird.f32 %v244
      %vm263 = vweird.f32 %v256
      %vm264 = vmor %vm262, %vm263
      %v265 = vsel %vm264, %v256, %v261
      %v266 = vrsqrt.pop %v245
      %v267 = vmul.f32 %v266, %v245
      %v268 = vmul.f32 %v267, %v266
      %v269 = vmul.f32 0.5, %v268
      %v270 = vsub.f32 1.5, %v269
      %v271 = vmul.f32 %v266, %v270
      %vm272 = vweird.f32 %v245
      %vm273 = vweird.f32 %v266
      %vm274 = vmor %vm272, %vm273
      %v275 = vsel %vm274, %v266, %v271
      %v276 = vmul.f32 %v227, %v255
      %v277 = vmul.f32 %v228, %v265
      %v278 = vmul.f32 %v229, %v275
      %v280 = vperm.slane %v207, 0
      %v282 = vmul.f32 %v276, %v280
      %v283 = vmul.f32 %v277, %v280
      %v284 = vmul.f32 %v278, %v280
      %v286 = vperm.slane %v208, 0
      %v288 = vadd.f32 %v282, %v286
      %v289 = vadd.f32 %v283, %v286
      %v290 = vadd.f32 %v284, %v286
      %291 = vst [vmem:[%s197] sm:$0xff] %v288
      %292 = vst [vmem:[%s197 + $0x8] sm:$0xff] %v289
      %293 = vst [vmem:[%s197 + $0x10] sm:$0x1] %v290
      %p294 = scmp.lt.s32.totalorder %s15, 1
      %s295 = scalar_select %p294, %s15, 1
      %s296 = smul.addr %s295, 3
      %s297 = smul.addr %s296, 8
      %s298 = scalar_lea.vmem %s4, %s297
      // Predicated region
      $region37: #{_lambda_.6} parent=35 // pred_check
        %p299 = pneg %p122
      $region38: #{_lambda_.6} parent=35 // pred_check_branch
        %301 = sbr.rel (%p299) target = $region40
      $region39: #{_lambda_.6} parent=35 // pred_region
        _
      $region40: #{_lambda_.6} parent=35 // pred_fallthru
        _
    $region36: #{_lambda_.6} parent=5 // pred_fallthru
      _
    %p302 = scmp.le.s32.totalorder 2, %s10
    // Predicated region
    $region41: #{_lambda_.6} parent=5 // pred_check
      %p303 = pneg %p302
    $region42: #{_lambda_.6} parent=5 // pred_check_branch
      %305 = sbr.rel (%p303) target = $region44
    $region43: #{_lambda_.6} parent=5 // pred_region
      %s306 = ssub.s32 %s10, 2
      // Predicated region
      $region45: #{_lambda_.6} parent=43 // pred_check
        %p307 = pneg %p128
      $region46: #{_lambda_.6} parent=43 // pred_check_branch
        %309 = sbr.rel (%p307) target = $region48
      $region47: #{_lambda_.6} parent=43 // pred_region
        %p310 = scmp.lt.s32.totalorder %s16, 1
        %s311 = scalar_select %p310, %s16, 1
        %s312 = smul.addr %s311, 3
        %s313 = smul.addr %s312, 8
        %s314 = scalar_lea.vmem %s4, %s313
      $region48: #{_lambda_.6} parent=43 // pred_fallthru
        _
    $region44: #{_lambda_.6} parent=5 // pred_fallthru
      _
  $region6: #{_lambda_.6} parent=0 // loop_footer
    %s14 = sadd.s32 1, %s10
  $region7: #{_lambda_.6} parent=0 // loop_footer_branch
    %9 = sbr.rel target = $region3
  $region8: #{_lambda_.6} parent=0 // loop_exit
    _

// kernel: _lambda_.9
$region0: #{_lambda_.9}
  #allocation0 [shape = 'u32[]', space=smem, size = 0x4, offset = 0x4, fixed_abs, tag = 'smem constant byte address 0x4 - core index']
  #allocation1 [shape = 'u32[72,128]{1,0:T(1,128)}', space=vmem, size = 0x9000, scoped, tag = 'internal scratch']
  %s0 = inlined_call_operand.vmem [shape: f32[2,128], index: 0, kind: input, shape index: {}]
  %s1 = inlined_call_operand.vmem [shape: f32[1,128], index: 1, kind: input, shape index: {}]
  %s2 = inlined_call_operand.vmem [shape: f32[1,128], index: 2, kind: input, shape index: {}]
  %s3 = inlined_call_operand.vmem [shape: bf16[128,128], index: 3, kind: input, shape index: {}]
  %s4 = inlined_call_operand.hbm [shape: f32[2,128], index: 4, kind: output, shape index: {}]
  %s5 = sld [smem:[#allocation0]]
  $region26: #{_lambda_.9} parent=0
    _
  %s7 = ssub.s32 1, %s5
  %s8 = scalar_select 0, %s7, %s5
  $region1: #{_lambda_.9} parent=0
    #allocation2 [shape = 'u8[1024]{0}', space=vmem, size = 0x400, scoped, tag = 'output window, operand 0, single buffered']
    #allocation3 [shape = 's32[1]{0}', space=sflag, size = 0x4, scoped, tag = 'scoped memory for _lambda_.9']
    %9 = vsyncpa [#allocation3], 0
    // Predicated region
    $region2: #{_lambda_.9} parent=1 // pred_check
      _
    $region3: #{_lambda_.9} parent=1 // pred_check_branch
      %11 = sbr.rel (0) target = $region5
    $region4: #{_lambda_.9} parent=1 // pred_region
      _
    $region5: #{_lambda_.9} parent=1 // pred_fallthru
      _
    // Predicated region
    $region6: #{_lambda_.9} parent=1 // pred_check
      _
    $region7: #{_lambda_.9} parent=1 // pred_check_branch
      %13 = sbr.rel (0) target = $region9
    $region8: #{_lambda_.9} parent=1 // pred_region
      _
    $region9: #{_lambda_.9} parent=1 // pred_fallthru
      _
    // Predicated region
    $region10: #{_lambda_.9} parent=1 // pred_check
      _
    $region11: #{_lambda_.9} parent=1 // pred_check_branch
      %15 = sbr.rel (0) target = $region13
    $region12: #{_lambda_.9} parent=1 // pred_region
      _
    $region13: #{_lambda_.9} parent=1 // pred_fallthru
      _
    // Predicated region
    $region14: #{_lambda_.9} parent=1 // pred_check
      _
    $region15: #{_lambda_.9} parent=1 // pred_check_branch
      %17 = sbr.rel (0) target = $region17
    $region16: #{_lambda_.9} parent=1 // pred_region
      _
    $region17: #{_lambda_.9} parent=1 // pred_fallthru
      _
    %v18 = vld [vmem:[%s0] sm:$0x3]
    %v19 = vld [vmem:[%s1] sm:$0x1]
    %v20 = vld [vmem:[%s2] sm:$0x1]
    %vm21 = vcmask 1041408
    %v22 = vsel %vm21, %v18, 0.0
    %23 = vadd.xlane.f32.xlu0 %v22
    %v24 = vpop.xlane.xlu0 %23
    %v25 = vrcp.pop 128.0
    %v26 = vmul.f32 128.0, %v25
    %v27 = vsub.f32 1.0, %v26
    %v28 = vmul.f32 %v25, %v27
    %v29 = vadd.f32 %v25, %v28
    %vm30 = vweird.f32 %v25
    %v31 = vsel %vm30, %v25, %v29
    %v32 = vmul.f32 %v24, %v31
    %v33 = vsub.f32 %v18, %v32
    %v34 = vmul.f32 %v33, %v33
    %v35 = vsel %vm21, %v34, 0.0
    %36 = vadd.xlane.f32.xlu0 %v35
    %v37 = vpop.xlane.xlu0 %36
    %v38 = vmul.f32 %v37, %v31
    %v39 = vadd.f32 %v38, 1e-06
    %v40 = vrsqrt.pop %v39
    %v41 = vmul.f32 %v40, %v39
    %v42 = vmul.f32 %v41, %v40
    %v43 = vmul.f32 0.5, %v42
    %v44 = vsub.f32 1.5, %v43
    %v45 = vmul.f32 %v40, %v44
    %vm46 = vweird.f32 %v39
    %vm47 = vweird.f32 %v40
    %vm48 = vmor %vm46, %vm47
    %v49 = vsel %vm48, %v40, %v45
    %v50 = vmul.f32 %v33, %v49
    %v52 = vperm.slane %v19, 0
    %v54 = vmul.f32 %v50, %v52
    %v56 = vperm.slane %v20, 0
    %v58 = vadd.f32 %v54, %v56
    %v59 = vpack.c.bf16 %v58, %v58
    %v60 = vld [vmem:[%s3] sm:$0xf]
    %v61 = vld [vmem:[%s3 + $0x4] sm:$0xf]
    %v62 = vld [vmem:[%s3 + $0x8] sm:$0xf]
    %v63 = vld [vmem:[%s3 + $0xc] sm:$0xf]
    %v64 = vld [vmem:[%s3 + $0x10] sm:$0xf]
    %v65 = vld [vmem:[%s3 + $0x14] sm:$0xf]
    %v66 = vld [vmem:[%s3 + $0x18] sm:$0xf]
    %v67 = vld [vmem:[%s3 + $0x1c] sm:$0xf]
    %v68 = vld [vmem:[%s3 + $0x20] sm:$0xf]
    %v69 = vld [vmem:[%s3 + $0x24] sm:$0xf]
    %v70 = vld [vmem:[%s3 + $0x28] sm:$0xf]
    %v71 = vld [vmem:[%s3 + $0x2c] sm:$0xf]
    %v72 = vld [vmem:[%s3 + $0x30] sm:$0xf]
    %v73 = vld [vmem:[%s3 + $0x34] sm:$0xf]
    %v74 = vld [vmem:[%s3 + $0x38] sm:$0xf]
    %v75 = vld [vmem:[%s3 + $0x3c] sm:$0xf]
    %v92 = vunpack.c.l.b16 %v60
    %v93 = vunpack.c.l.b16 %v61
    %v94 = vunpack.c.l.b16 %v62
    %v95 = vunpack.c.l.b16 %v63
    %v96 = vunpack.c.l.b16 %v64
    %v97 = vunpack.c.l.b16 %v65
    %v98 = vunpack.c.l.b16 %v66
    %v99 = vunpack.c.l.b16 %v67
    %v100 = vunpack.c.l.b16 %v68
    %v101 = vunpack.c.l.b16 %v69
    %v102 = vunpack.c.l.b16 %v70
    %v103 = vunpack.c.l.b16 %v71
    %v104 = vunpack.c.l.b16 %v72
    %v105 = vunpack.c.l.b16 %v73
    %v106 = vunpack.c.l.b16 %v74
    %v107 = vunpack.c.l.b16 %v75
    %v108 = vpack.c.b16 %v93, %v92
    %v109 = vpack.c.b16 %v95, %v94
    %v110 = vpack.c.b16 %v97, %v96
    %v111 = vpack.c.b16 %v99, %v98
    %v112 = vpack.c.b16 %v101, %v100
    %v113 = vpack.c.b16 %v103, %v102
    %v114 = vpack.c.b16 %v105, %v104
    %v115 = vpack.c.b16 %v107, %v106
    %124 = vmatpush.bf16.msra.mxu0 %v115
    %125 = vmatpush.bf16.msra.mxu0 %v114
    %126 = vmatpush.bf16.msra.mxu0 %v113
    %127 = vmatpush.bf16.msra.mxu0 %v112
    %128 = vmatpush.bf16.msra.mxu0 %v111
    %129 = vmatpush.bf16.msra.mxu0 %v110
    %130 = vmatpush.bf16.msra.mxu0 %v109
    %131 = vmatpush.bf16.msra.mxu0 %v108
    %132 = vmatmul.bf16.gmra.mxu0 %v59
    %v133 = vpop.f32.mrf.mxu0
    %v134 = vadd.f32 0.0, %v133
    %v135 = vpop.f32.mrf.mxu0
    %136 = vdwg.mxu0
    %v137 = vmul.f32 %v134, %v134
    %v138 = vsel %vm21, %v137, 0.0
    %139 = vadd.xlane.f32.xlu0 %v138
    %v140 = vpop.xlane.xlu0 %139
    %v141 = vrsqrt.pop %v140
    %v142 = vmul.f32 %v141, %v140
    %v143 = vmul.f32 %v142, %v141
    %v144 = vmul.f32 0.5, %v143
    %v145 = vsub.f32 1.5, %v144
    %v146 = vmul.f32 %v141, %v145
    %v147 = vmul.f32 %v140, %v146
    %vm148 = vcmp.eq.f32.partialorder %v140, inf
    %v149 = vsel %vm148, %v140, %v147
    %vm150 = vcmp.eq.f32.partialorder %v140, 0.0
    %v151 = vand.u32 %v140, 2147483648
    %v152 = vsel %vm150, %v151, %v149
    %v153 = vmax.f32 %v152, 1e-12
    %v154 = vrcp.pop %v153
    %v155 = vmul.f32 %v153, %v154
    %v156 = vsub.f32 1.0, %v155
    %v157 = vmul.f32 %v154, %v156
    %v158 = vadd.f32 %v154, %v157
    %vm159 = vweird.f32 %v153
    %vm160 = vweird.f32 %v154
    %vm161 = vmor %vm159, %vm160
    %v162 = vsel %vm161, %v154, %v158
    %v163 = vand.u32 2147483647, %v153
    %vm164 = vcmp.eq.f32.partialorder %v163, 8.507059e+37
    %v165 = vand.u32 %v153, 2147483648
    %v166 = vor.u32 1.1754944e-38, %v165
    %v167 = vsel %vm164, %v166, %v162
    %v168 = vmul.f32 %v134, %v167
    %169 = vst [vmem:[#allocation2] sm:$0x3] %v168
    // Predicated region
    $region18: #{_lambda_.9} parent=1 // pred_check
      _
    $region19: #{_lambda_.9} parent=1 // pred_check_branch
      %171 = sbr.rel (0) target = $region21
    $region20: #{_lambda_.9} parent=1 // pred_region
      %173 = vsyncadd [#allocation3], 0
      %s175 = sshll.u32 [#allocation2], 4
      %s176 = int_to_ptr.vmem [resolvable:$true] %s175
      %s177 = sshll.u32 %s4, 4
      %s178 = int_to_ptr.hbm [resolvable:$true] %s177
      %180 = dma.vmem_to_hbm [thread:$0]  %s176, 32, %s178, [#allocation3]
    $region21: #{_lambda_.9} parent=1 // pred_fallthru
      _
    // Predicated region
    $region22: #{_lambda_.9} parent=1 // pred_check
      _
    $region23: #{_lambda_.9} parent=1 // pred_check_branch
      %182 = sbr.rel (0) target = $region25
    $region24: #{_lambda_.9} parent=1 // pred_region
      %184 = dma.done [#allocation3], 32
    $region25: #{_lambda_.9} parent=1 // pred_fallthru
      _
    %185 = vsyncpa [#allocation3], 1

// kernel: _lambda_.7
$region0: #{_lambda_.7}
  #allocation0 [shape = 'u32[]', space=smem, size = 0x4, offset = 0x4, fixed_abs, tag = 'smem constant byte address 0x4 - core index']
  #allocation1 [shape = 'u32[72,128]{1,0:T(1,128)}', space=vmem, size = 0x9000, scoped, tag = 'internal scratch']
  %s0 = inlined_call_operand.vmem [shape: f32[2,17,128], index: 0, kind: input, shape index: {}]
  %s1 = inlined_call_operand.vmem [shape: f32[1,128], index: 1, kind: input, shape index: {}]
  %s2 = inlined_call_operand.vmem [shape: f32[1,128], index: 2, kind: input, shape index: {}]
  %s3 = inlined_call_operand.vmem [shape: bf16[128,384], index: 3, kind: input, shape index: {}]
  %s4 = inlined_call_operand.vmem [shape: f32[1,384], index: 4, kind: input, shape index: {}]
  %s5 = inlined_call_operand.vmem [shape: bf16[128,128], index: 5, kind: input, shape index: {}]
  %s6 = inlined_call_operand.vmem [shape: f32[1,128], index: 6, kind: input, shape index: {}]
  %s7 = inlined_call_operand.vmem [shape: f32[1,128], index: 7, kind: input, shape index: {}]
  %s8 = inlined_call_operand.vmem [shape: f32[1,128], index: 8, kind: input, shape index: {}]
  %s9 = inlined_call_operand.vmem [shape: bf16[128,512], index: 9, kind: input, shape index: {}]
  %s10 = inlined_call_operand.vmem [shape: f32[1,512], index: 10, kind: input, shape index: {}]
  %s11 = inlined_call_operand.vmem [shape: bf16[512,128], index: 11, kind: input, shape index: {}]
  %s12 = inlined_call_operand.vmem [shape: f32[1,128], index: 12, kind: input, shape index: {}]
  %s13 = inlined_call_operand.vmem [shape: f32[2,17,128], index: 13, kind: output, shape index: {}]
  %s14 = sld [smem:[#allocation0]]
  $region85: #{_lambda_.7} parent=0
    _
  %s16 = ssub.s32 1, %s14
  %s17 = scalar_select 0, %s16, %s14
  loop: start=0, step=1, limit=4
  $region2: #{_lambda_.7} parent=0 // loop_pre_header
    _
  $region3: #{_lambda_.7} parent=0 // loop_header
    %s19 = sphi 0, %s23
    %p20 = scmp.ge.s32.totalorder %s19, 4
    %s29 = sphi 0, %s31
    %s32 = sphi 0, %s29
    %s33 = sphi 0, %s32
    %s49 = sphi 0, %s33
    %s53 = sphi 0, %s53
    %s55 = sphi 0, %s53
    %s56 = sphi 0, %s55
    %s70 = sphi 0, %s56
    %s74 = sphi 0, %s74
    %s76 = sphi 0, %s74
    %s77 = sphi 0, %s76
    %s91 = sphi 0, %s77
    %s95 = sphi 0, %s95
    %s97 = sphi 0, %s95
    %s98 = sphi 0, %s97
    %s112 = sphi 0, %s98
    %s116 = sphi 0, %s116
    %s118 = sphi 0, %s116
    %s119 = sphi 0, %s118
    %s133 = sphi 0, %s119
    %s137 = sphi 0, %s137
    %s139 = sphi 0, %s137
    %s140 = sphi 0, %s139
    %s154 = sphi 0, %s140
    %s158 = sphi 0, %s158
    %s160 = sphi 0, %s158
    %s161 = sphi 0, %s160
    %s175 = sphi 0, %s161
    %s179 = sphi 0, %s179
    %s181 = sphi 0, %s179
    %s182 = sphi 0, %s181
    %s196 = sphi 0, %s182
    %s200 = sphi 0, %s200
    %s202 = sphi 0, %s200
    %s203 = sphi 0, %s202
    %s217 = sphi 0, %s203
    %s221 = sphi 0, %s221
    %s223 = sphi 0, %s221
    %s224 = sphi 0, %s223
    %s238 = sphi 0, %s224
    %s242 = sphi 0, %s242
    %s244 = sphi 0, %s242
    %s245 = sphi 0, %s244
    %s259 = sphi 0, %s245
    %s263 = sphi 0, %s263
    %s265 = sphi 0, %s263
    %s266 = sphi 0, %s265
    %s280 = sphi 0, %s266
    %s284 = sphi 0, %s284
    %s286 = sphi 0, %s284
    %s287 = sphi 0, %s286
    %s301 = sphi 0, %s287
    %s307 = sphi 0, %s309
    %s310 = sphi 0, %s307
    %s311 = sphi 0, %s310
    %s327 = sphi 0, %s311
  $region4: #{_lambda_.7} parent=0 // loop_header_branch
    %22 = sbr.rel (%p20) target = $region8
  $region5: #{_lambda_.7} parent=0 // loop_body
    %s24 = ssub.s32 %s19, 1
    %s25 = ssub.s32 %s19, 2
    %s26 = sadd.s32 %s19, 1
    %s27 = ssub.s32 %s19, %s26
    %p28 = scmp.eq.s32.totalorder %s27, 0
    %s30 = sadd.s32 %s29, 1
    %s31 = scalar_select %p28, %s29, %s30
    %p34 = pneg %p28
    %p35 = scmp.eq.s32.totalorder %s19, 1
    %p36 = por %p34, %p35
    %p37 = scmp.ne.s32.totalorder %s29, %s32
    %p38 = scmp.eq.s32.totalorder %s19, 0
    %p39 = por %p37, %p38
    %p40 = scmp.ne.s32.totalorder %s29, %s32
    %p41 = scmp.eq.s32.totalorder %s24, 1
    %p42 = por %p40, %p41
    %p43 = scmp.ne.s32.totalorder %s32, %s33
    %p44 = scmp.eq.s32.totalorder %s24, 0
    %p45 = por %p43, %p44
    %p46 = scmp.ne.s32.totalorder %s32, %s33
    %p47 = scmp.eq.s32.totalorder %s25, 1
    %p48 = por %p46, %p47
    %p50 = scmp.ne.s32.totalorder %s33, %s49
    %p51 = scmp.eq.s32.totalorder %s25, 0
    %p52 = por %p50, %p51
    %s54 = sadd.s32 %s53, 1
    %p57 = scmp.eq.s32.totalorder %s19, 1
    %p58 = scmp.ne.s32.totalorder %s53, %s55
    %p59 = scmp.eq.s32.totalorder %s19, 0
    %p60 = por %p58, %p59
    %p61 = scmp.ne.s32.totalorder %s53, %s55
    %p62 = scmp.eq.s32.totalorder %s24, 1
    %p63 = por %p61, %p62
    %p64 = scmp.ne.s32.totalorder %s55, %s56
    %p65 = scmp.eq.s32.totalorder %s24, 0
    %p66 = por %p64, %p65
    %p67 = scmp.ne.s32.totalorder %s55, %s56
    %p68 = scmp.eq.s32.totalorder %s25, 1
    %p69 = por %p67, %p68
    %p71 = scmp.ne.s32.totalorder %s56, %s70
    %p72 = scmp.eq.s32.totalorder %s25, 0
    %p73 = por %p71, %p72
    %s75 = sadd.s32 %s74, 1
    %p78 = scmp.eq.s32.totalorder %s19, 1
    %p79 = scmp.ne.s32.totalorder %s74, %s76
    %p80 = scmp.eq.s32.totalorder %s19, 0
    %p81 = por %p79, %p80
    %p82 = scmp.ne.s32.totalorder %s74, %s76
    %p83 = scmp.eq.s32.totalorder %s24, 1
    %p84 = por %p82, %p83
    %p85 = scmp.ne.s32.totalorder %s76, %s77
    %p86 = scmp.eq.s32.totalorder %s24, 0
    %p87 = por %p85, %p86
    %p88 = scmp.ne.s32.totalorder %s76, %s77
    %p89 = scmp.eq.s32.totalorder %s25, 1
    %p90 = por %p88, %p89
    %p92 = scmp.ne.s32.totalorder %s77, %s91
    %p93 = scmp.eq.s32.totalorder %s25, 0
    %p94 = por %p92, %p93
    %s96 = sadd.s32 %s95, 1
    %p99 = scmp.eq.s32.totalorder %s19, 1
    %p100 = scmp.ne.s32.totalorder %s95, %s97
    %p101 = scmp.eq.s32.totalorder %s19, 0
    %p102 = por %p100, %p101
    %p103 = scmp.ne.s32.totalorder %s95, %s97
    %p104 = scmp.eq.s32.totalorder %s24, 1
    %p105 = por %p103, %p104
    %p106 = scmp.ne.s32.totalorder %s97, %s98
    %p107 = scmp.eq.s32.totalorder %s24, 0
    %p108 = por %p106, %p107
    %p109 = scmp.ne.s32.totalorder %s97, %s98
    %p110 = scmp.eq.s32.totalorder %s25, 1
    %p111 = por %p109, %p110
    %p113 = scmp.ne.s32.totalorder %s98, %s112
    %p114 = scmp.eq.s32.totalorder %s25, 0
    %p115 = por %p113, %p114
    %s117 = sadd.s32 %s116, 1
    %p120 = scmp.eq.s32.totalorder %s19, 1
    %p121 = scmp.ne.s32.totalorder %s116, %s118
    %p122 = scmp.eq.s32.totalorder %s19, 0
    %p123 = por %p121, %p122
    %p124 = scmp.ne.s32.totalorder %s116, %s118
    %p125 = scmp.eq.s32.totalorder %s24, 1
    %p126 = por %p124, %p125
    %p127 = scmp.ne.s32.totalorder %s118, %s119
    %p128 = scmp.eq.s32.totalorder %s24, 0
    %p129 = por %p127, %p128
    %p130 = scmp.ne.s32.totalorder %s118, %s119
    %p131 = scmp.eq.s32.totalorder %s25, 1
    %p132 = por %p130, %p131
    %p134 = scmp.ne.s32.totalorder %s119, %s133
    %p135 = scmp.eq.s32.totalorder %s25, 0
    %p136 = por %p134, %p135
    %s138 = sadd.s32 %s137, 1
    %p141 = scmp.eq.s32.totalorder %s19, 1
    %p142 = scmp.ne.s32.totalorder %s137, %s139
    %p143 = scmp.eq.s32.totalorder %s19, 0
    %p144 = por %p142, %p143
    %p145 = scmp.ne.s32.totalorder %s137, %s139
    %p146 = scmp.eq.s32.totalorder %s24, 1
    %p147 = por %p145, %p146
    %p148 = scmp.ne.s32.totalorder %s139, %s140
    %p149 = scmp.eq.s32.totalorder %s24, 0
    %p150 = por %p148, %p149
    %p151 = scmp.ne.s32.totalorder %s139, %s140
    %p152 = scmp.eq.s32.totalorder %s25, 1
    %p153 = por %p151, %p152
    %p155 = scmp.ne.s32.totalorder %s140, %s154
    %p156 = scmp.eq.s32.totalorder %s25, 0
    %p157 = por %p155, %p156
    %s159 = sadd.s32 %s158, 1
    %p162 = scmp.eq.s32.totalorder %s19, 1
    %p163 = scmp.ne.s32.totalorder %s158, %s160
    %p164 = scmp.eq.s32.totalorder %s19, 0
    %p165 = por %p163, %p164
    %p166 = scmp.ne.s32.totalorder %s158, %s160
    %p167 = scmp.eq.s32.totalorder %s24, 1
    %p168 = por %p166, %p167
    %p169 = scmp.ne.s32.totalorder %s160, %s161
    %p170 = scmp.eq.s32.totalorder %s24, 0
    %p171 = por %p169, %p170
    %p172 = scmp.ne.s32.totalorder %s160, %s161
    %p173 = scmp.eq.s32.totalorder %s25, 1
    %p174 = por %p172, %p173
    %p176 = scmp.ne.s32.totalorder %s161, %s175
    %p177 = scmp.eq.s32.totalorder %s25, 0
    %p178 = por %p176, %p177
    %s180 = sadd.s32 %s179, 1
    %p183 = scmp.eq.s32.totalorder %s19, 1
    %p184 = scmp.ne.s32.totalorder %s179, %s181
    %p185 = scmp.eq.s32.totalorder %s19, 0
    %p186 = por %p184, %p185
    %p187 = scmp.ne.s32.totalorder %s179, %s181
    %p188 = scmp.eq.s32.totalorder %s24, 1
    %p189 = por %p187, %p188
    %p190 = scmp.ne.s32.totalorder %s181, %s182
    %p191 = scmp.eq.s32.totalorder %s24, 0
    %p192 = por %p190, %p191
    %p193 = scmp.ne.s32.totalorder %s181, %s182
    %p194 = scmp.eq.s32.totalorder %s25, 1
    %p195 = por %p193, %p194
    %p197 = scmp.ne.s32.totalorder %s182, %s196
    %p198 = scmp.eq.s32.totalorder %s25, 0
    %p199 = por %p197, %p198
    %s201 = sadd.s32 %s200, 1
    %p204 = scmp.eq.s32.totalorder %s19, 1
    %p205 = scmp.ne.s32.totalorder %s200, %s202
    %p206 = scmp.eq.s32.totalorder %s19, 0
    %p207 = por %p205, %p206
    %p208 = scmp.ne.s32.totalorder %s200, %s202
    %p209 = scmp.eq.s32.totalorder %s24, 1
    %p210 = por %p208, %p209
    %p211 = scmp.ne.s32.totalorder %s202, %s203
    %p212 = scmp.eq.s32.totalorder %s24, 0
    %p213 = por %p211, %p212
    %p214 = scmp.ne.s32.totalorder %s202, %s203
    %p215 = scmp.eq.s32.totalorder %s25, 1
    %p216 = por %p214, %p215
    %p218 = scmp.ne.s32.totalorder %s203, %s217
    %p219 = scmp.eq.s32.totalorder %s25, 0
    %p220 = por %p218, %p219
    %s222 = sadd.s32 %s221, 1
    %p225 = scmp.eq.s32.totalorder %s19, 1
    %p226 = scmp.ne.s32.totalorder %s221, %s223
    %p227 = scmp.eq.s32.totalorder %s19, 0
    %p228 = por %p226, %p227
    %p229 = scmp.ne.s32.totalorder %s221, %s223
    %p230 = scmp.eq.s32.totalorder %s24, 1
    %p231 = por %p229, %p230
    %p232 = scmp.ne.s32.totalorder %s223, %s224
    %p233 = scmp.eq.s32.totalorder %s24, 0
    %p234 = por %p232, %p233
    %p235 = scmp.ne.s32.totalorder %s223, %s224
    %p236 = scmp.eq.s32.totalorder %s25, 1
    %p237 = por %p235, %p236
    %p239 = scmp.ne.s32.totalorder %s224, %s238
    %p240 = scmp.eq.s32.totalorder %s25, 0
    %p241 = por %p239, %p240
    %s243 = sadd.s32 %s242, 1
    %p246 = scmp.eq.s32.totalorder %s19, 1
    %p247 = scmp.ne.s32.totalorder %s242, %s244
    %p248 = scmp.eq.s32.totalorder %s19, 0
    %p249 = por %p247, %p248
    %p250 = scmp.ne.s32.totalorder %s242, %s244
    %p251 = scmp.eq.s32.totalorder %s24, 1
    %p252 = por %p250, %p251
    %p253 = scmp.ne.s32.totalorder %s244, %s245
    %p254 = scmp.eq.s32.totalorder %s24, 0
    %p255 = por %p253, %p254
    %p256 = scmp.ne.s32.totalorder %s244, %s245
    %p257 = scmp.eq.s32.totalorder %s25, 1
    %p258 = por %p256, %p257
    %p260 = scmp.ne.s32.totalorder %s245, %s259
    %p261 = scmp.eq.s32.totalorder %s25, 0
    %p262 = por %p260, %p261
    %s264 = sadd.s32 %s263, 1
    %p267 = scmp.eq.s32.totalorder %s19, 1
    %p268 = scmp.ne.s32.totalorder %s263, %s265
    %p269 = scmp.eq.s32.totalorder %s19, 0
    %p270 = por %p268, %p269
    %p271 = scmp.ne.s32.totalorder %s263, %s265
    %p272 = scmp.eq.s32.totalorder %s24, 1
    %p273 = por %p271, %p272
    %p274 = scmp.ne.s32.totalorder %s265, %s266
    %p275 = scmp.eq.s32.totalorder %s24, 0
    %p276 = por %p274, %p275
    %p277 = scmp.ne.s32.totalorder %s265, %s266
    %p278 = scmp.eq.s32.totalorder %s25, 1
    %p279 = por %p277, %p278
    %p281 = scmp.ne.s32.totalorder %s266, %s280
    %p282 = scmp.eq.s32.totalorder %s25, 0
    %p283 = por %p281, %p282
    %s285 = sadd.s32 %s284, 1
    %p288 = scmp.eq.s32.totalorder %s19, 1
    %p289 = scmp.ne.s32.totalorder %s284, %s286
    %p290 = scmp.eq.s32.totalorder %s19, 0
    %p291 = por %p289, %p290
    %p292 = scmp.ne.s32.totalorder %s284, %s286
    %p293 = scmp.eq.s32.totalorder %s24, 1
    %p294 = por %p292, %p293
    %p295 = scmp.ne.s32.totalorder %s286, %s287
    %p296 = scmp.eq.s32.totalorder %s24, 0
    %p297 = por %p295, %p296
    %p298 = scmp.ne.s32.totalorder %s286, %s287
    %p299 = scmp.eq.s32.totalorder %s25, 1
    %p300 = por %p298, %p299
    %p302 = scmp.ne.s32.totalorder %s287, %s301
    %p303 = scmp.eq.s32.totalorder %s25, 0
    %p304 = por %p302, %p303
    %s305 = ssub.s32 %s19, %s26
    %p306 = scmp.eq.s32.totalorder %s305, 0
    %s308 = sadd.s32 %s307, 1
    %s309 = scalar_select %p306, %s307, %s308
    %p312 = pneg %p306
    %p313 = scmp.eq.s32.totalorder %s19, 1
    %p314 = por %p312, %p313
    %p315 = scmp.ne.s32.totalorder %s307, %s310
    %p316 = scmp.eq.s32.totalorder %s19, 0
    %p317 = por %p315, %p316
    %p318 = scmp.ne.s32.totalorder %s307, %s310
    %p319 = scmp.eq.s32.totalorder %s24, 1
    %p320 = por %p318, %p319
    %p321 = scmp.ne.s32.totalorder %s310, %s311
    %p322 = scmp.eq.s32.totalorder %s24, 0
    %p323 = por %p321, %p322
    %p324 = scmp.ne.s32.totalorder %s310, %s311
    %p325 = scmp.eq.s32.totalorder %s25, 1
    %p326 = por %p324, %p325
    %p328 = scmp.ne.s32.totalorder %s311, %s327
    %p329 = scmp.eq.s32.totalorder %s25, 0
    %p330 = por %p328, %p329
    %p331 = scmp.le.s32.totalorder 1, %s19
    %p332 = scmp.lt.s32.totalorder %s19, 3
    %p333 = pnand %p331, %p332
    %p334 = pneg %p333
    // Predicated region
    $region9: #{_lambda_.7} parent=5 // pred_check
      _
    $region10: #{_lambda_.7} parent=5 // pred_check_branch
      %336 = sbr.rel (%p333) target = $region12
    $region11: #{_lambda_.7} parent=5 // pred_region
      %s337 = ssub.s32 %s19, 1
      // Predicated region
      $region13: #{_lambda_.7} parent=11 // pred_check
        %p338 = pneg %p66
      $region14: #{_lambda_.7} parent=11 // pred_check_branch
        %340 = sbr.rel (%p338) target = $region16
      $region15: #{_lambda_.7} parent=11 // pred_region
        _
      $region16: #{_lambda_.7} parent=11 // pred_fallthru
        _
      // Predicated region
      $region17: #{_lambda_.7} parent=11 // pred_check
        %p341 = pneg %p87
      $region18: #{_lambda_.7} parent=11 // pred_check_branch
        %343 = sbr.rel (%p341) target = $region20
      $region19: #{_lambda_.7} parent=11 // pred_region
        _
      $region20: #{_lambda_.7} parent=11 // pred_fallthru
        _
      // Predicated region
      $region21: #{_lambda_.7} parent=11 // pred_check
        %p344 = pneg %p108
      $region22: #{_lambda_.7} parent=11 // pred_check_branch
        %346 = sbr.rel (%p344) target = $region24
      $region23: #{_lambda_.7} parent=11 // pred_region
        _
      $region24: #{_lambda_.7} parent=11 // pred_fallthru
        _
      // Predicated region
      $region25: #{_lambda_.7} parent=11 // pred_check
        %p347 = pneg %p129
      $region26: #{_lambda_.7} parent=11 // pred_check_branch
        %349 = sbr.rel (%p347) target = $region28
      $region27: #{_lambda_.7} parent=11 // pred_region
        _
      $region28: #{_lambda_.7} parent=11 // pred_fallthru
        _
      // Predicated region
      $region29: #{_lambda_.7} parent=11 // pred_check
        %p350 = pneg %p150
      $region30: #{_lambda_.7} parent=11 // pred_check_branch
        %352 = sbr.rel (%p350) target = $region32
      $region31: #{_lambda_.7} parent=11 // pred_region
        _
      $region32: #{_lambda_.7} parent=11 // pred_fallthru
        _
      // Predicated region
      $region33: #{_lambda_.7} parent=11 // pred_check
        %p353 = pneg %p171
      $region34: #{_lambda_.7} parent=11 // pred_check_branch
        %355 = sbr.rel (%p353) target = $region36
      $region35: #{_lambda_.7} parent=11 // pred_region
        _
      $region36: #{_lambda_.7} parent=11 // pred_fallthru
        _
      // Predicated region
      $region37: #{_lambda_.7} parent=11 // pred_check
        %p356 = pneg %p192
      $region38: #{_lambda_.7} parent=11 // pred_check_branch
        %358 = sbr.rel (%p356) target = $region40
      $region39: #{_lambda_.7} parent=11 // pred_region
        _
      $region40: #{_lambda_.7} parent=11 // pred_fallthru
        _
      // Predicated region
      $region41: #{_lambda_.7} parent=11 // pred_check
        %p359 = pneg %p213
      $region42: #{_lambda_.7} parent=11 // pred_check_branch
        %361 = sbr.rel (%p359) target = $region44
      $region43: #{_lambda_.7} parent=11 // pred_region
        _
      $region44: #{_lambda_.7} parent=11 // pred_fallthru
        _
      // Predicated region
      $region45: #{_lambda_.7} parent=11 // pred_check
        %p362 = pneg %p234
      $region46: #{_lambda_.7} parent=11 // pred_check_branch
        %364 = sbr.rel (%p362) target = $region48
      $region47: #{_lambda_.7} parent=11 // pred_region
        _
      $region48: #{_lambda_.7} parent=11 // pred_fallthru
        _
      // Predicated region
      $region49: #{_lambda_.7} parent=11 // pred_check
        %p365 = pneg %p255
      $region50: #{_lambda_.7} parent=11 // pred_check_branch
        %367 = sbr.rel (%p365) target = $region52
      $region51: #{_lambda_.7} parent=11 // pred_region
        _
      $region52: #{_lambda_.7} parent=11 // pred_fallthru
        _
      // Predicated region
      $region53: #{_lambda_.7} parent=11 // pred_check
        %p368 = pneg %p276
      $region54: #{_lambda_.7} parent=11 // pred_check_branch
        %370 = sbr.rel (%p368) target = $region56
      $region55: #{_lambda_.7} parent=11 // pred_region
        _
      $region56: #{_lambda_.7} parent=11 // pred_fallthru
        _
      // Predicated region
      $region57: #{_lambda_.7} parent=11 // pred_check
        %p371 = pneg %p297
      $region58: #{_lambda_.7} parent=11 // pred_check_branch
        %373 = sbr.rel (%p371) target = $region60
      $region59: #{_lambda_.7} parent=11 // pred_region
        _
      $region60: #{_lambda_.7} parent=11 // pred_fallthru
        _
    $region12: #{_lambda_.7} parent=5 // pred_fallthru
      _
    %p374 = scmp.lt.s32.totalorder %s19, 2
    // Predicated region
    $region61: #{_lambda_.7} parent=5 // pred_check
      %p375 = pneg %p374
    $region62: #{_lambda_.7} parent=5 // pred_check_branch
      %377 = sbr.rel (%p375) target = $region64
    $region63: #{_lambda_.7} parent=5 // pred_region
      // Predicated region
      $region65: #{_lambda_.7} parent=63 // pred_check
        %p378 = pneg %p39
      $region66: #{_lambda_.7} parent=63 // pred_check_branch
        %380 = sbr.rel (%p378) target = $region68
      $region67: #{_lambda_.7} parent=63 // pred_region
        %p381 = scmp.lt.s32.totalorder %s19, 1
        %s382 = scalar_select %p381, %s19, 1
        %s383 = smul.addr %s382, 3
        %s384 = smul.addr %s383, 8
        %s385 = scalar_lea.vmem %s0, %s384
      $region68: #{_lambda_.7} parent=63 // pred_fallthru
        _
    $region64: #{_lambda_.7} parent=5 // pred_fallthru
      _
    %p386 = scmp.le.s32.totalorder 1, %s19
    %p387 = scmp.lt.s32.totalorder %s19, 3
    %p388 = pnand %p386, %p387
    %p389 = pneg %p388
    // Predicated region
    $region69: #{_lambda_.7} parent=5 // pred_check
      _
    $region70: #{_lambda_.7} parent=5 // pred_check_branch
      %391 = sbr.rel (%p388) target = $region72
    $region71: #{_lambda_.7} parent=5 // pred_region
      %s392 = ssub.s32 %s19, 1
      %p393 = scmp.lt.s32.totalorder %s24, 1
      %s394 = scalar_select %p393, %s24, 1
      %s395 = smul.addr %s394, 3
      %s396 = smul.addr %s395, 8
      %s397 = scalar_lea.vmem %s0, %s396
      %p398 = pneg %p45
      %p399 = pneg %p42
      %p400 = pneg %p66
      %p401 = pneg %p63
      %p402 = pneg %p87
      %p403 = pneg %p84
      %p404 = pneg %p108
      %p405 = pneg %p105
      %p406 = pneg %p129
      %p407 = pneg %p126
      %p408 = pneg %p150
      %p409 = pneg %p147
      %p410 = pneg %p171
      %p411 = pneg %p168
      %p412 = pneg %p192
      %p413 = pneg %p189
      %p414 = pneg %p213
      %p415 = pneg %p210
      %p416 = pneg %p234
      %p417 = pneg %p231
      %p418 = pneg %p255
      %p419 = pneg %p252
      %p420 = pneg %p276
      %p421 = pneg %p273
      %p422 = pneg %p297
      %p423 = pneg %p294
      %p424 = pneg %p323
      %p425 = pneg %p320
      %p426 = scmp.lt.s32.totalorder %s24, 1
      %s427 = scalar_select %p426, %s24, 1
      %s428 = smul.addr %s427, 3
      %s429 = smul.addr %s428, 8
      %s430 = scalar_lea.vmem %s13, %s429
      %p431 = scmp.lt.s32.totalorder %s24, 1
      %s432 = scalar_select %p431, %s24, 1
      %s433 = smul.addr %s432, 3
      %s434 = smul.addr %s433, 8
      %s435 = scalar_lea.vmem %s0, %s434
      %p436 = scmp.lt.s32.totalorder %s24, 1
      %s437 = scalar_select %p436, %s24, 1
      %s438 = smul.addr %s437, 3
      %s439 = smul.addr %s438, 8
      %s440 = scalar_lea.vmem %s13, %s439
      %v442 = vld [vmem:[%s435] sm:$0xff]
      %v443 = vld [vmem:[%s435 + $0x8] sm:$0xff]
      %v444 = vld [vmem:[%s435 + $0x10] sm:$0x1]
      %v445 = vld [vmem:[%s1] sm:$0x1]
      %v446 = vld [vmem:[%s2] sm:$0x1]
      %447 = vadd.xlane.f32.xlu0 %v442
      %v448 = vpop.xlane.xlu0 %447
      %449 = vadd.xlane.f32.xlu0 %v443
      %v450 = vpop.xlane.xlu0 %449
      %vm451 = vcmask 1040384
      %v452 = vsel %vm451, %v444, 0.0
      %453 = vadd.xlane.f32.xlu0 %v452
      %v454 = vpop.xlane.xlu0 %453
      %v455 = vrcp.pop 128.0
      %v456 = vmul.f32 128.0, %v455
      %v457 = vsub.f32 1.0, %v456
      %v458 = vmul.f32 %v455, %v457
      %v459 = vadd.f32 %v455, %v458
      %vm460 = vweird.f32 %v455
      %v461 = vsel %vm460, %v455, %v459
      %v462 = vmul.f32 %v448, %v461
      %v463 = vmul.f32 %v450, %v461
      %v464 = vmul.f32 %v454, %v461
      %v465 = vsub.f32 %v442, %v462
      %v466 = vsub.f32 %v443, %v463
      %v467 = vsub.f32 %v444, %v464
      %v468 = vmul.f32 %v465, %v465
      %v469 = vmul.f32 %v466, %v466
      %v470 = vmul.f32 %v467, %v467
      %471 = vadd.xlane.f32.xlu0 %v468
      %v472 = vpop.xlane.xlu0 %471
      %473 = vadd.xlane.f32.xlu0 %v469
      %v474 = vpop.xlane.xlu0 %473
      %v475 = vsel %vm451, %v470, 0.0
      %476 = vadd.xlane.f32.xlu0 %v475
      %v477 = vpop.xlane.xlu0 %476
      %v478 = vmul.f32 %v472, %v461
      %v479 = vmul.f32 %v474, %v461
      %v480 = vmul.f32 %v477, %v461
      %v481 = vadd.f32 %v478, 1e-06
      %v482 = vadd.f32 %v479, 1e-06
      %v483 = vadd.f32 %v480, 1e-06
      %v484 = vrsqrt.pop %v481
      %v485 = vmul.f32 %v484, %v481
      %v486 = vmul.f32 %v485, %v484
      %v487 = vmul.f32 0.5, %v486
      %v488 = vsub.f32 1.5, %v487
      %v489 = vmul.f32 %v484, %v488
      %vm490 = vweird.f32 %v481
      %vm491 = vweird.f32 %v484
      %vm492 = vmor %vm490, %vm491
      %v493 = vsel %vm492, %v484, %v489
      %v494 = vrsqrt.pop %v482
      %v495 = vmul.f32 %v494, %v482
      %v496 = vmul.f32 %v495, %v494
      %v497 = vmul.f32 0.5, %v496
      %v498 = vsub.f32 1.5, %v497
      %v499 = vmul.f32 %v494, %v498
      %vm500 = vweird.f32 %v482
      %vm501 = vweird.f32 %v494
      %vm502 = vmor %vm500, %vm501
      %v503 = vsel %vm502, %v494, %v499
      %v504 = vrsqrt.pop %v483
      %v505 = vmul.f32 %v504, %v483
      %v506 = vmul.f32 %v505, %v504
      %v507 = vmul.f32 0.5, %v506
      %v508 = vsub.f32 1.5, %v507
      %v509 = vmul.f32 %v504, %v508
      %vm510 = vweird.f32 %v483
      %vm511 = vweird.f32 %v504
      %vm512 = vmor %vm510, %vm511
      %v513 = vsel %vm512, %v504, %v509
      %v514 = vmul.f32 %v465, %v493
      %v515 = vmul.f32 %v466, %v503
      %v516 = vmul.f32 %v467, %v513
      %v518 = vperm.slane %v445, 0
      %v520 = vmul.f32 %v514, %v518
      %v521 = vmul.f32 %v515, %v518
      %v522 = vmul.f32 %v516, %v518
      %v524 = vperm.slane %v446, 0
      %v526 = vadd.f32 %v520, %v524
      %v527 = vadd.f32 %v521, %v524
      %v528 = vadd.f32 %v522, %v524
      %v529 = vpack.c.bf16 %v527, %v526
      %v530 = vpack.c.bf16 %v528, %v528
      %v531 = vld [vmem:[%s3] sm:$0xff]
      %v532 = vld [vmem:[%s3 + $0x8] sm:$0xf]
      %v533 = vld [vmem:[%s3 + $0xc] sm:$0xff]
      %v534 = vld [vmem:[%s3 + $0x14] sm:$0xf]
      %v535 = vld [vmem:[%s3 + $0x18] sm:$0xff]
      %v536 = vld [vmem:[%s3 + $0x20] sm:$0xf]
      %v537 = vld [vmem:[%s3 + $0x24] sm:$0xff]
      %v538 = vld [vmem:[%s3 + $0x2c] sm:$0xf]
      %v539 = vld [vmem:[%s3 + $0x30] sm:$0xff]
      %v540 = vld [vmem:[%s3 + $0x38] sm:$0xf]
      %v541 = vld [vmem:[%s3 + $0x3c] sm:$0xff]
      %v542 = vld [vmem:[%s3 + $0x44] sm:$0xf]
      %v543 = vld [vmem:[%s3 + $0x48] sm:$0xff]
      %v544 = vld [vmem:[%s3 + $0x50] sm:$0xf]
      %v545 = vld [vmem:[%s3 + $0x54] sm:$0xff]
      %v546 = vld [vmem:[%s3 + $0x5c] sm:$0xf]
      %v547 = vld [vmem:[%s3 + $0x60] sm:$0xff]
      %v548 = vld [vmem:[%s3 + $0x68] sm:$0xf]
      %v549 = vld [vmem:[%s3 + $0x6c] sm:$0xff]
      %v550 = vld [vmem:[%s3 + $0x74] sm:$0xf]
      %v551 = vld [vmem:[%s3 + $0x78] sm:$0xff]
      %v552 = vld [vmem:[%s3 + $0x80] sm:$0xf]
      %v553 = vld [vmem:[%s3 + $0x84] sm:$0xff]
      %v554 = vld [vmem:[%s3 + $0x8c] sm:$0xf]
      %v555 = vld [vmem:[%s3 + $0x90] sm:$0xff]
      %v556 = vld [vmem:[%s3 + $0x98] sm:$0xf]
      %v557 = vld [vmem:[%s3 + $0x9c] sm:$0xff]
      %v558 = vld [vmem:[%s3 + $0xa4] sm:$0xf]
      %v559 = vld [vmem:[%s3 + $0xa8] sm:$0xff]
      %v560 = vld [vmem:[%s3 + $0xb0] sm:$0xf]
      %v561 = vld [vmem:[%s3 + $0xb4] sm:$0xff]
      %v562 = vld [vmem:[%s3 + $0xbc] sm:$0xf]
      %v563 = vld [vmem:[%s4] sm:$0x7]
      %v565 = vperm.slane %v563, 0
      %v566 = vperm.slane %v563, 1
      %v567 = vperm.slane %v563, 2
      %v603 = vunpack.c.l.b16 %v531
      %v604 = vunpack.c.h.b16 %v531
      %v605 = vunpack.c.l.b16 %v532
      %v606 = vunpack.c.l.b16 %v533
      %v607 = vunpack.c.h.b16 %v533
      %v608 = vunpack.c.l.b16 %v534
      %v609 = vunpack.c.l.b16 %v535
      %v610 = vunpack.c.h.b16 %v535
      %v611 = vunpack.c.l.b16 %v536
      %v612 = vunpack.c.l.b16 %v537
      %v613 = vunpack.c.h.b16 %v537
      %v614 = vunpack.c.l.b16 %v538
      %v615 = vunpack.c.l.b16 %v539
      %v616 = vunpack.c.h.b16 %v539
      %v617 = vunpack.c.l.b16 %v540
      %v618 = vunpack.c.l.b16 %v541
      %v619 = vunpack.c.h.b16 %v541
      %v620 = vunpack.c.l.b16 %v542
      %v621 = vunpack.c.l.b16 %v543
      %v622 = vunpack.c.h.b16 %v543
      %v623 = vunpack.c.l.b16 %v544
      %v624 = vunpack.c.l.b16 %v545
      %v625 = vunpack.c.h.b16 %v545
      %v626 = vunpack.c.l.b16 %v546
      %v627 = vunpack.c.l.b16 %v547
      %v628 = vunpack.c.h.b16 %v547
      %v629 = vunpack.c.l.b16 %v548
      %v630 = vunpack.c.l.b16 %v549
      %v631 = vunpack.c.h.b16 %v549
      %v632 = vunpack.c.l.b16 %v550
      %v633 = vunpack.c.l.b16 %v551
      %v634 = vunpack.c.h.b16 %v551
      %v635 = vunpack.c.l.b16 %v552
      %v636 = vunpack.c.l.b16 %v553
      %v637 = vunpack.c.h.b16 %v553
      %v638 = vunpack.c.l.b16 %v554
      %v639 = vunpack.c.l.b16 %v555
      %v640 = vunpack.c.h.b16 %v555
      %v641 = vunpack.c.l.b16 %v556
      %v642 = vunpack.c.l.b16 %v557
      %v643 = vunpack.c.h.b16 %v557
      %v644 = vunpack.c.l.b16 %v558
      %v645 = vunpack.c.l.b16 %v559
      %v646 = vunpack.c.h.b16 %v559
      %v647 = vunpack.c.l.b16 %v560
      %v648 = vunpack.c.l.b16 %v561
      %v649 = vunpack.c.h.b16 %v561
      %v650 = vunpack.c.l.b16 %v562
      %v651 = vpack.c.b16 %v606, %v603
      %v652 = vpack.c.b16 %v607, %v604
      %v653 = vpack.c.b16 %v608, %v605
      %v654 = vpack.c.b16 %v612, %v609
      %v655 = vpack.c.b16 %v613, %v610
      %v656 = vpack.c.b16 %v614, %v611
      %v657 = vpack.c.b16 %v618, %v615
      %v658 = vpack.c.b16 %v619, %v616
      %v659 = vpack.c.b16 %v620, %v617
      %v660 = vpack.c.b16 %v624, %v621
      %v661 = vpack.c.b16 %v625, %v622
      %v662 = vpack.c.b16 %v626, %v623
      %v663 = vpack.c.b16 %v630, %v627
      %v664 = vpack.c.b16 %v631, %v628
      %v665 = vpack.c.b16 %v632, %v629
      %v666 = vpack.c.b16 %v636, %v633
      %v667 = vpack.c.b16 %v637, %v634
      %v668 = vpack.c.b16 %v638, %v635
      %v669 = vpack.c.b16 %v642, %v639
      %v670 = vpack.c.b16 %v643, %v640
      %v671 = vpack.c.b16 %v644, %v641
      %v672 = vpack.c.b16 %v648, %v645
      %v673 = vpack.c.b16 %v649, %v646
      %v674 = vpack.c.b16 %v650, %v647
      %699 = vmatpush.bf16.msra.mxu0 %v672
      %700 = vmatpush.bf16.msra.mxu0 %v669
      %701 = vmatpush.bf16.msra.mxu0 %v666
      %702 = vmatpush.bf16.msra.mxu0 %v663
      %703 = vmatpush.bf16.msra.mxu0 %v660
      %704 = vmatpush.bf16.msra.mxu0 %v657
      %705 = vmatpush.bf16.msra.mxu0 %v654
      %706 = vmatpush.bf16.msra.mxu0 %v651
      %707 = vmatmul.bf16.gmra.mxu0 %v529
      %v708 = vpop.f32.mrf.mxu0
      %v709 = vadd.f32 %v565, %v708
      %v710 = vpop.f32.mrf.mxu0
      %v711 = vadd.f32 %v565, %v710
      %712 = vmatmul.bf16.gmra.mxu0 %v530
      %v713 = vpop.f32.mrf.mxu0
      %v714 = vadd.f32 %v565, %v713
      %v715 = vpop.f32.mrf.mxu0
      %716 = vdwg.mxu0
      %717 = vmatpush.bf16.msra.mxu0 %v673
      %718 = vmatpush.bf16.msra.mxu0 %v670
      %719 = vmatpush.bf16.msra.mxu0 %v667
      %720 = vmatpush.bf16.msra.mxu0 %v664
      %721 = vmatpush.bf16.msra.mxu0 %v661
      %722 = vmatpush.bf16.msra.mxu0 %v658
      %723 = vmatpush.bf16.msra.mxu0 %v655
      %724 = vmatpush.bf16.msra.mxu0 %v652
      %725 = vmatmul.bf16.gmra.mxu0 %v529
      %v726 = vpop.f32.mrf.mxu0
      %v727 = vadd.f32 %v566, %v726
      %v728 = vpop.f32.mrf.mxu0
      %v729 = vadd.f32 %v566, %v728
      %730 = vmatmul.bf16.gmra.mxu0 %v530
      %v731 = vpop.f32.mrf.mxu0
      %v732 = vadd.f32 %v566, %v731
      %v733 = vpop.f32.mrf.mxu0
      %734 = vdwg.mxu0
      %735 = vmatpush.bf16.msra.mxu0 %v674
      %736 = vmatpush.bf16.msra.mxu0 %v671
      %737 = vmatpush.bf16.msra.mxu0 %v668
      %738 = vmatpush.bf16.msra.mxu0 %v665
      %739 = vmatpush.bf16.msra.mxu0 %v662
      %740 = vmatpush.bf16.msra.mxu0 %v659
      %741 = vmatpush.bf16.msra.mxu0 %v656
      %742 = vmatpush.bf16.msra.mxu0 %v653
      %743 = vmatmul.bf16.gmra.mxu0 %v529
      %v744 = vpop.f32.mrf.mxu0
      %v745 = vadd.f32 %v567, %v744
      %v746 = vpop.f32.mrf.mxu0
      %v747 = vadd.f32 %v567, %v746
      %748 = vmatmul.bf16.gmra.mxu0 %v530
      %v749 = vpop.f32.mrf.mxu0
      %v750 = vadd.f32 %v567, %v749
      %v751 = vpop.f32.mrf.mxu0
      %752 = vdwg.mxu0
      %v753 = vld [vmem:[%s5] sm:$0xf]
      %v754 = vld [vmem:[%s5 + $0x4] sm:$0xf]
      %v755 = vld [vmem:[%s5 + $0x8] sm:$0xf]
      %v756 = vld [vmem:[%s5 + $0xc] sm:$0xf]
      %v757 = vld [vmem:[%s5 + $0x10] sm:$0xf]
      %v758 = vld [vmem:[%s5 + $0x14] sm:$0xf]
      %v759 = vld [vmem:[%s5 + $0x18] sm:$0xf]
      %v760 = vld [vmem:[%s5 + $0x1c] sm:$0xf]
      %v761 = vld [vmem:[%s5 + $0x20] sm:$0xf]
      %v762 = vld [vmem:[%s5 + $0x24] sm:$0xf]
      %v763 = vld [vmem:[%s5 + $0x28] sm:$0xf]
      %v764 = vld [vmem:[%s5 + $0x2c] sm:$0xf]
      %v765 = vld [vmem:[%s5 + $0x30] sm:$0xf]
      %v766 = vld [vmem:[%s5 + $0x34] sm:$0xf]
      %v767 = vld [vmem:[%s5 + $0x38] sm:$0xf]
      %v768 = vld [vmem:[%s5 + $0x3c] sm:$0xf]
      %v769 = vmul.f32 %v709, 0.17677669
      %v770 = vmul.f32 %v711, 0.17677669
      %v771 = vmul.f32 %v714, 0.17677669
      %v772 = vpack.c.bf16 %v770, %v769
      %v773 = vpack.c.bf16 %v771, %v771
      %v774 = vpack.c.bf16 %v729, %v727
      %v775 = vpack.c.bf16 %v732, %v732
      %v776 = vpack.c.bf16 %v747, %v745
      %v777 = vpack.c.bf16 %v750, %v750
      %vm778 = vcmask 261120
      %v780 = vsel %vm778, %v772, 0
      %v783 = vsel %vm778, %v773, 0
      %v786 = vsel %vm778, %v774, 0
      %v789 = vsel %vm778, %v775, 0
      %791 = vmatpush.bf16.xpose.msra.mxu0 0
      %792 = vmatpush.bf16.xpose.msra.mxu0 0
      %793 = vmatpush.bf16.xpose.msra.mxu0 0
      %794 = vmatpush.bf16.xpose.msra.mxu0 0
      %795 = vmatpush.bf16.xpose.msra.mxu0 0
      %796 = vmatpush.bf16.xpose.msra.mxu0 0
      %797 = vmatpush.bf16.xpose.msra.mxu0 %v789
      %798 = vmatpush.bf16.xpose.msra.mxu0 %v786
      %799 = vmatmul.bf16.gmra.mxu0 %v780
      %v800 = vpop.f32.mrf.mxu0
      %v801 = vadd.f32 0.0, %v800
      %v802 = vpop.f32.mrf.mxu0
      %v803 = vadd.f32 0.0, %v802
      %804 = vmatmul.bf16.gmra.mxu0 %v783
      %v805 = vpop.f32.mrf.mxu0
      %v806 = vadd.f32 0.0, %v805
      %v807 = vpop.f32.mrf.mxu0
      %808 = vdwg.mxu0
      %vm809 = vcmask 138240
      %v810 = vsel %vm809, %v801, -inf
      %811 = vmax.xlane.f32.xlu0 %v810
      %v812 = vpop.xlane.xlu0 %811
      %v813 = vsel %vm809, %v803, -inf
      %814 = vmax.xlane.f32.xlu0 %v813
      %v815 = vpop.xlane.xlu0 %814
      %vm816 = vcmask 131072
      %v817 = vsel %vm816, %v806, -inf
      %818 = vmax.xlane.f32.xlu0 %v817
      %v819 = vpop.xlane.xlu0 %818
      %v820 = vsub.f32 %v801, %v812
      %v821 = vsub.f32 %v803, %v815
      %v822 = vsub.f32 %v806, %v819
      %v823 = vmul.f32 %v820, 1.442695
      %v824 = vpow.pop %v823
      %v825 = vmul.f32 %v821, 1.442695
      %v826 = vpow.pop %v825
      %v827 = vmul.f32 %v822, 1.442695
      %v828 = vpow.pop %v827
      %v829 = vsel %vm809, %v824, 0.0
      %830 = vadd.xlane.f32.xlu0 %v829
      %v831 = vpop.xlane.xlu0 %830
      %v832 = vsel %vm809, %v826, 0.0
      %833 = vadd.xlane.f32.xlu0 %v832
      %v834 = vpop.xlane.xlu0 %833
      %v835 = vsel %vm816, %v828, 0.0
      %836 = vadd.xlane.f32.xlu0 %v835
      %v837 = vpop.xlane.xlu0 %836
      %v838 = vrcp.pop %v831
      %v839 = vmul.f32 %v831, %v838
      %v840 = vsub.f32 1.0, %v839
      %v841 = vmul.f32 %v838, %v840
      %v842 = vadd.f32 %v838, %v841
      %vm843 = vweird.f32 %v831
      %vm844 = vweird.f32 %v838
      %vm845 = vmor %vm843, %vm844
      %v846 = vsel %vm845, %v838, %v842
      %v847 = vand.u32 2147483647, %v831
      %vm848 = vcmp.eq.f32.partialorder %v847, 8.507059e+37
      %v849 = vand.u32 %v831, 2147483648
      %v850 = vor.u32 1.1754944e-38, %v849
      %v851 = vsel %vm848, %v850, %v846
      %v852 = vmul.f32 %v824, %v851
      %v853 = vrcp.pop %v834
      %v854 = vmul.f32 %v834, %v853
      %v855 = vsub.f32 1.0, %v854
      %v856 = vmul.f32 %v853, %v855
      %v857 = vadd.f32 %v853, %v856
      %vm858 = vweird.f32 %v834
      %vm859 = vweird.f32 %v853
      %vm860 = vmor %vm858, %vm859
      %v861 = vsel %vm860, %v853, %v857
      %v862 = vand.u32 2147483647, %v834
      %vm863 = vcmp.eq.f32.partialorder %v862, 8.507059e+37
      %v864 = vand.u32 %v834, 2147483648
      %v865 = vor.u32 1.1754944e-38, %v864
      %v866 = vsel %vm863, %v865, %v861
      %v867 = vmul.f32 %v826, %v866
      %v868 = vrcp.pop %v837
      %v869 = vmul.f32 %v837, %v868
      %v870 = vsub.f32 1.0, %v869
      %v871 = vmul.f32 %v868, %v870
      %v872 = vadd.f32 %v868, %v871
      %vm873 = vweird.f32 %v837
      %vm874 = vweird.f32 %v868
      %vm875 = vmor %vm873, %vm874
      %v876 = vsel %vm875, %v868, %v872
      %v877 = vand.u32 2147483647, %v837
      %vm878 = vcmp.eq.f32.partialorder %v877, 8.507059e+37
      %v879 = vand.u32 %v837, 2147483648
      %v880 = vor.u32 1.1754944e-38, %v879
      %v881 = vsel %vm878, %v880, %v876
      %v882 = vmul.f32 %v828, %v881
      %v883 = vpack.c.bf16 %v867, %v852
      %v884 = vpack.c.bf16 %v882, %v882
      %v886 = vsel %vm809, %v883, 0
      %v889 = vsel %vm809, %v884, 0
      %v891 = vsel 0, 4294967295, 65535
      %v892 = vsel %vm451, %v891, 0
      %v894 = vand.u32 %v777, %v892
      %896 = vmatpush.bf16.msra.mxu0 0
      %897 = vmatpush.bf16.msra.mxu0 0
      %898 = vmatpush.bf16.msra.mxu0 0
      %899 = vmatpush.bf16.msra.mxu0 0
      %900 = vmatpush.bf16.msra.mxu0 0
      %901 = vmatpush.bf16.msra.mxu0 0
      %902 = vmatpush.bf16.msra.mxu0 %v894
      %903 = vmatpush.bf16.msra.mxu0 %v776
      %904 = vmatmul.bf16.gmra.mxu0 %v886
      %v905 = vpop.f32.mrf.mxu0
      %v906 = vadd.f32 0.0, %v905
      %v907 = vpop.f32.mrf.mxu0
      %v908 = vadd.f32 0.0, %v907
      %909 = vmatmul.bf16.gmra.mxu0 %v889
      %v910 = vpop.f32.mrf.mxu0
      %v911 = vadd.f32 0.0, %v910
      %v912 = vpop.f32.mrf.mxu0
      %913 = vdwg.mxu0
      %v914 = vpack.c.bf16 %v908, %v906
      %v915 = vpack.c.bf16 %v911, %v911
      %918 = vrot.lane.b32.xlu0 %v772, 96
      %v919 = vpop.permute.xlu0 %918
      %920 = vrot.lane.b32.xlu0 %v773, 96
      %v921 = vpop.permute.xlu0 %920
      %924 = vrot.lane.b32.xlu0 %v774, 96
      %v925 = vpop.permute.xlu0 %924
      %926 = vrot.lane.b32.xlu0 %v775, 96
      %v927 = vpop.permute.xlu0 %926
      %v929 = vsel %vm778, %v919, 0
      %v932 = vsel %vm778, %v921, 0
      %v935 = vsel %vm778, %v925, 0
      %v938 = vsel %vm778, %v927, 0
      %940 = vmatpush.bf16.xpose.msra.mxu0 0
      %941 = vmatpush.bf16.xpose.msra.mxu0 0
      %942 = vmatpush.bf16.xpose.msra.mxu0 0
      %943 = vmatpush.bf16.xpose.msra.mxu0 0
      %944 = vmatpush.bf16.xpose.msra.mxu0 0
      %945 = vmatpush.bf16.xpose.msra.mxu0 0
      %946 = vmatpush.bf16.xpose.msra.mxu0 %v938
      %947 = vmatpush.bf16.xpose.msra.mxu0 %v935
      %948 = vmatmul.bf16.gmra.mxu0 %v929
      %v949 = vpop.f32.mrf.mxu0
      %v950 = vadd.f32 0.0, %v949
      %v951 = vpop.f32.mrf.mxu0
      %v952 = vadd.f32 0.0, %v951
      %953 = vmatmul.bf16.gmra.mxu0 %v932
      %v954 = vpop.f32.mrf.mxu0
      %v955 = vadd.f32 0.0, %v954
      %v956 = vpop.f32.mrf.mxu0
      %957 = vdwg.mxu0
      %v958 = vsel %vm809, %v950, -inf
      %959 = vmax.xlane.f32.xlu0 %v958
      %v960 = vpop.xlane.xlu0 %959
      %v961 = vsel %vm809, %v952, -inf
      %962 = vmax.xlane.f32.xlu0 %v961
      %v963 = vpop.xlane.xlu0 %962
      %v964 = vsel %vm816, %v955, -inf
      %965 = vmax.xlane.f32.xlu0 %v964
      %v966 = vpop.xlane.xlu0 %965
      %v967 = vsub.f32 %v950, %v960
      %v968 = vsub.f32 %v952, %v963
      %v969 = vsub.f32 %v955, %v966
      %v970 = vmul.f32 %v967, 1.442695
      %v971 = vpow.pop %v970
      %v972 = vmul.f32 %v968, 1.442695
      %v973 = vpow.pop %v972
      %v974 = vmul.f32 %v969, 1.442695
      %v975 = vpow.pop %v974
      %v976 = vsel %vm809, %v971, 0.0
      %977 = vadd.xlane.f32.xlu0 %v976
      %v978 = vpop.xlane.xlu0 %977
      %v979 = vsel %vm809, %v973, 0.0
      %980 = vadd.xlane.f32.xlu0 %v979
      %v981 = vpop.xlane.xlu0 %980
      %v982 = vsel %vm816, %v975, 0.0
      %983 = vadd.xlane.f32.xlu0 %v982
      %v984 = vpop.xlane.xlu0 %983
      %v985 = vrcp.pop %v978
      %v986 = vmul.f32 %v978, %v985
      %v987 = vsub.f32 1.0, %v986
      %v988 = vmul.f32 %v985, %v987
      %v989 = vadd.f32 %v985, %v988
      %vm990 = vweird.f32 %v978
      %vm991 = vweird.f32 %v985
      %vm992 = vmor %vm990, %vm991
      %v993 = vsel %vm992, %v985, %v989
      %v994 = vand.u32 2147483647, %v978
      %vm995 = vcmp.eq.f32.partialorder %v994, 8.507059e+37
      %v996 = vand.u32 %v978, 2147483648
      %v997 = vor.u32 1.1754944e-38, %v996
      %v998 = vsel %vm995, %v997, %v993
      %v999 = vmul.f32 %v971, %v998
      %v1000 = vrcp.pop %v981
      %v1001 = vmul.f32 %v981, %v1000
      %v1002 = vsub.f32 1.0, %v1001
      %v1003 = vmul.f32 %v1000, %v1002
      %v1004 = vadd.f32 %v1000, %v1003
      %vm1005 = vweird.f32 %v981
      %vm1006 = vweird.f32 %v1000
      %vm1007 = vmor %vm1005, %vm1006
      %v1008 = vsel %vm1007, %v1000, %v1004
      %v1009 = vand.u32 2147483647, %v981
      %vm1010 = vcmp.eq.f32.partialorder %v1009, 8.507059e+37
      %v1011 = vand.u32 %v981, 2147483648
      %v1012 = vor.u32 1.1754944e-38, %v1011
      %v1013 = vsel %vm1010, %v1012, %v1008
      %v1014 = vmul.f32 %v973, %v1013
      %v1015 = vrcp.pop %v984
      %v1016 = vmul.f32 %v984, %v1015
      %v1017 = vsub.f32 1.0, %v1016
      %v1018 = vmul.f32 %v1015, %v1017
      %v1019 = vadd.f32 %v1015, %v1018
      %vm1020 = vweird.f32 %v984
      %vm1021 = vweird.f32 %v1015
      %vm1022 = vmor %vm1020, %vm1021
      %v1023 = vsel %vm1022, %v1015, %v1019
      %v1024 = vand.u32 2147483647, %v984
      %vm1025 = vcmp.eq.f32.partialorder %v1024, 8.507059e+37
      %v1026 = vand.u32 %v984, 2147483648
      %v1027 = vor.u32 1.1754944e-38, %v1026
      %v1028 = vsel %vm1025, %v1027, %v1023
      %v1029 = vmul.f32 %v975, %v1028
      %v1030 = vpack.c.bf16 %v1014, %v999
      %v1031 = vpack.c.bf16 %v1029, %v1029
      %1034 = vrot.lane.b32.xlu0 %v776, 96
      %v1035 = vpop.permute.xlu0 %1034
      %1036 = vrot.lane.b32.xlu0 %v777, 96
      %v1037 = vpop.permute.xlu0 %1036
      %v1040 = vsel %vm809, %v1030, 0
      %v1043 = vsel %vm809, %v1031, 0
      %v1046 = vand.u32 %v1037, %v892
      %1048 = vmatpush.bf16.msra.mxu0 0
      %1049 = vmatpush.bf16.msra.mxu0 0
      %1050 = vmatpush.bf16.msra.mxu0 0
      %1051 = vmatpush.bf16.msra.mxu0 0
      %1052 = vmatpush.bf16.msra.mxu0 0
      %1053 = vmatpush.bf16.msra.mxu0 0
      %1054 = vmatpush.bf16.msra.mxu0 %v1046
      %1055 = vmatpush.bf16.msra.mxu0 %v1035
      %1056 = vmatmul.bf16.gmra.mxu0 %v1040
      %v1057 = vpop.f32.mrf.mxu0
      %v1058 = vadd.f32 0.0, %v1057
      %v1059 = vpop.f32.mrf.mxu0
      %v1060 = vadd.f32 0.0, %v1059
      %1061 = vmatmul.bf16.gmra.mxu0 %v1043
      %v1062 = vpop.f32.mrf.mxu0
      %v1063 = vadd.f32 0.0, %v1062
      %v1064 = vpop.f32.mrf.mxu0
      %1065 = vdwg.mxu0
      %v1066 = vpack.c.bf16 %v1060, %v1058
      %v1067 = vpack.c.bf16 %v1063, %v1063
      %v1072 = vunpack.c.l.b16 %v757
      %v1073 = vunpack.c.l.b16 %v758
      %v1074 = vunpack.c.l.b16 %v759
      %v1075 = vunpack.c.l.b16 %v760
      %v1076 = vpack.c.b16 %v1073, %v1072
      %v1077 = vpack.c.b16 %v1075, %v1074
      %v1081 = vsel %vm778, %v1066, 0
      %v1084 = vsel %vm778, %v1067, 0
      %1086 = vmatpush.bf16.msra.mxu0 0
      %1087 = vmatpush.bf16.msra.mxu0 0
      %1088 = vmatpush.bf16.msra.mxu0 0
      %1089 = vmatpush.bf16.msra.mxu0 0
      %1090 = vmatpush.bf16.msra.mxu0 0
      %1091 = vmatpush.bf16.msra.mxu0 0
      %1092 = vmatpush.bf16.msra.mxu0 %v1077
      %1093 = vmatpush.bf16.msra.mxu0 %v1076
      %1094 = vmatmul.bf16.gmra.mxu0 %v1081
      %v1095 = vpop.f32.mrf.mxu0
      %v1096 = vadd.f32 0.0, %v1095
      %v1097 = vpop.f32.mrf.mxu0
      %v1098 = vadd.f32 0.0, %v1097
      %1099 = vmatmul.bf16.gmra.mxu0 %v1084
      %v1100 = vpop.f32.mrf.mxu0
      %v1101 = vadd.f32 0.0, %v1100
      %v1102 = vpop.f32.mrf.mxu0
      %1103 = vdwg.mxu0
      %v1108 = vunpack.c.l.b16 %v753
      %v1109 = vunpack.c.l.b16 %v754
      %v1110 = vunpack.c.l.b16 %v755
      %v1111 = vunpack.c.l.b16 %v756
      %v1112 = vpack.c.b16 %v1109, %v1108
      %v1113 = vpack.c.b16 %v1111, %v1110
      %v1117 = vsel %vm778, %v914, 0
      %v1120 = vsel %vm778, %v915, 0
      %1122 = vmatpush.bf16.msra.mxu0 0
      %1123 = vmatpush.bf16.msra.mxu0 0
      %1124 = vmatpush.bf16.msra.mxu0 0
      %1125 = vmatpush.bf16.msra.mxu0 0
      %1126 = vmatpush.bf16.msra.mxu0 0
      %1127 = vmatpush.bf16.msra.mxu0 0
      %1128 = vmatpush.bf16.msra.mxu0 %v1113
      %1129 = vmatpush.bf16.msra.mxu0 %v1112
      %1130 = vmatmul.bf16.gmra.mxu0 %v1117
      %v1131 = vpop.f32.mrf.mxu0
      %v1132 = vadd.f32 %v1096, %v1131
      %v1133 = vpop.f32.mrf.mxu0
      %v1134 = vadd.f32 %v1098, %v1133
      %1135 = vmatmul.bf16.gmra.mxu0 %v1120
      %v1136 = vpop.f32.mrf.mxu0
      %v1137 = vadd.f32 %v1101, %v1136
      %v1138 = vpop.f32.mrf.mxu0
      %1139 = vdwg.mxu0
      %1140 = vrot.lane.b32.xlu0 %v772, 64
      %v1141 = vpop.permute.xlu0 %1140
      %1142 = vrot.lane.b32.xlu0 %v773, 64
      %v1143 = vpop.permute.xlu0 %1142
      %1144 = vrot.lane.b32.xlu0 %v774, 64
      %v1145 = vpop.permute.xlu0 %1144
      %1146 = vrot.lane.b32.xlu0 %v775, 64
      %v1147 = vpop.permute.xlu0 %1146
      %v1149 = vsel %vm778, %v1141, 0
      %v1152 = vsel %vm778, %v1143, 0
      %v1155 = vsel %vm778, %v1145, 0
      %v1158 = vsel %vm778, %v1147, 0
      %1160 = vmatpush.bf16.xpose.msra.mxu0 0
      %1161 = vmatpush.bf16.xpose.msra.mxu0 0
      %1162 = vmatpush.bf16.xpose.msra.mxu0 0
      %1163 = vmatpush.bf16.xpose.msra.mxu0 0
      %1164 = vmatpush.bf16.xpose.msra.mxu0 0
      %1165 = vmatpush.bf16.xpose.msra.mxu0 0
      %1166 = vmatpush.bf16.xpose.msra.mxu0 %v1158
      %1167 = vmatpush.bf16.xpose.msra.mxu0 %v1155
      %1168 = vmatmul.bf16.gmra.mxu0 %v1149
      %v1169 = vpop.f32.mrf.mxu0
      %v1170 = vadd.f32 0.0, %v1169
      %v1171 = vpop.f32.mrf.mxu0
      %v1172 = vadd.f32 0.0, %v1171
      %1173 = vmatmul.bf16.gmra.mxu0 %v1152
      %v1174 = vpop.f32.mrf.mxu0
      %v1175 = vadd.f32 0.0, %v1174
      %v1176 = vpop.f32.mrf.mxu0
      %1177 = vdwg.mxu0
      %v1178 = vsel %vm809, %v1170, -inf
      %1179 = vmax.xlane.f32.xlu0 %v1178
      %v1180 = vpop.xlane.xlu0 %1179
      %v1181 = vsel %vm809, %v1172, -inf
      %1182 = vmax.xlane.f32.xlu0 %v1181
      %v1183 = vpop.xlane.xlu0 %1182
      %v1184 = vsel %vm816, %v1175, -inf
      %1185 = vmax.xlane.f32.xlu0 %v1184
      %v1186 = vpop.xlane.xlu0 %1185
      %v1187 = vsub.f32 %v1170, %v1180
      %v1188 = vsub.f32 %v1172, %v1183
      %v1189 = vsub.f32 %v1175, %v1186
      %v1190 = vmul.f32 %v1187, 1.442695
      %v1191 = vpow.pop %v1190
      %v1192 = vmul.f32 %v1188, 1.442695
      %v1193 = vpow.pop %v1192
      %v1194 = vmul.f32 %v1189, 1.442695
      %v1195 = vpow.pop %v1194
      %v1196 = vsel %vm809, %v1191, 0.0
      %1197 = vadd.xlane.f32.xlu0 %v1196
      %v1198 = vpop.xlane.xlu0 %1197
      %v1199 = vsel %vm809, %v1193, 0.0
      %1200 = vadd.xlane.f32.xlu0 %v1199
      %v1201 = vpop.xlane.xlu0 %1200
      %v1202 = vsel %vm816, %v1195, 0.0
      %1203 = vadd.xlane.f32.xlu0 %v1202
      %v1204 = vpop.xlane.xlu0 %1203
      %v1205 = vrcp.pop %v1198
      %v1206 = vmul.f32 %v1198, %v1205
      %v1207 = vsub.f32 1.0, %v1206
      %v1208 = vmul.f32 %v1205, %v1207
      %v1209 = vadd.f32 %v1205, %v1208
      %vm1210 = vweird.f32 %v1198
      %vm1211 = vweird.f32 %v1205
      %vm1212 = vmor %vm1210, %vm1211
      %v1213 = vsel %vm1212, %v1205, %v1209
      %v1214 = vand.u32 2147483647, %v1198
      %vm1215 = vcmp.eq.f32.partialorder %v1214, 8.507059e+37
      %v1216 = vand.u32 %v1198, 2147483648
      %v1217 = vor.u32 1.1754944e-38, %v1216
      %v1218 = vsel %vm1215, %v1217, %v1213
      %v1219 = vmul.f32 %v1191, %v1218
      %v1220 = vrcp.pop %v1201
      %v1221 = vmul.f32 %v1201, %v1220
      %v1222 = vsub.f32 1.0, %v1221
      %v1223 = vmul.f32 %v1220, %v1222
      %v1224 = vadd.f32 %v1220, %v1223
      %vm1225 = vweird.f32 %v1201
      %vm1226 = vweird.f32 %v1220
      %vm1227 = vmor %vm1225, %vm1226
      %v1228 = vsel %vm1227, %v1220, %v1224
      %v1229 = vand.u32 2147483647, %v1201
      %vm1230 = vcmp.eq.f32.partialorder %v1229, 8.507059e+37
      %v1231 = vand.u32 %v1201, 2147483648
      %v1232 = vor.u32 1.1754944e-38, %v1231
      %v1233 = vsel %vm1230, %v1232, %v1228
      %v1234 = vmul.f32 %v1193, %v1233
      %v1235 = vrcp.pop %v1204
      %v1236 = vmul.f32 %v1204, %v1235
      %v1237 = vsub.f32 1.0, %v1236
      %v1238 = vmul.f32 %v1235, %v1237
      %v1239 = vadd.f32 %v1235, %v1238
      %vm1240 = vweird.f32 %v1204
      %vm1241 = vweird.f32 %v1235
      %vm1242 = vmor %vm1240, %vm1241
      %v1243 = vsel %vm1242, %v1235, %v1239
      %v1244 = vand.u32 2147483647, %v1204
      %vm1245 = vcmp.eq.f32.partialorder %v1244, 8.507059e+37
      %v1246 = vand.u32 %v1204, 2147483648
      %v1247 = vor.u32 1.1754944e-38, %v1246
      %v1248 = vsel %vm1245, %v1247, %v1243
      %v1249 = vmul.f32 %v1195, %v1248
      %v1250 = vpack.c.bf16 %v1234, %v1219
      %v1251 = vpack.c.bf16 %v1249, %v1249
      %1252 = vrot.lane.b32.xlu0 %v776, 64
      %v1253 = vpop.permute.xlu0 %1252
      %1254 = vrot.lane.b32.xlu0 %v777, 64
      %v1255 = vpop.permute.xlu0 %1254
      %v1258 = vsel %vm809, %v1250, 0
      %v1261 = vsel %vm809, %v1251, 0
      %v1264 = vand.u32 %v1255, %v892
      %1266 = vmatpush.bf16.msra.mxu0 0
      %1267 = vmatpush.bf16.msra.mxu0 0
      %1268 = vmatpush.bf16.msra.mxu0 0
      %1269 = vmatpush.bf16.msra.mxu0 0
      %1270 = vmatpush.bf16.msra.mxu0 0
      %1271 = vmatpush.bf16.msra.mxu0 0
      %1272 = vmatpush.bf16.msra.mxu0 %v1264
      %1273 = vmatpush.bf16.msra.mxu0 %v1253
      %1274 = vmatmul.bf16.gmra.mxu0 %v1258
      %v1275 = vpop.f32.mrf.mxu0
      %v1276 = vadd.f32 0.0, %v1275
      %v1277 = vpop.f32.mrf.mxu0
      %v1278 = vadd.f32 0.0, %v1277
      %1279 = vmatmul.bf16.gmra.mxu0 %v1261
      %v1280 = vpop.f32.mrf.mxu0
      %v1281 = vadd.f32 0.0, %v1280
      %v1282 = vpop.f32.mrf.mxu0
      %1283 = vdwg.mxu0
      %v1284 = vpack.c.bf16 %v1278, %v1276
      %v1285 = vpack.c.bf16 %v1281, %v1281
      %v1290 = vunpack.c.l.b16 %v761
      %v1291 = vunpack.c.l.b16 %v762
      %v1292 = vunpack.c.l.b16 %v763
      %v1293 = vunpack.c.l.b16 %v764
      %v1294 = vpack.c.b16 %v1291, %v1290
      %v1295 = vpack.c.b16 %v1293, %v1292
      %v1299 = vsel %vm778, %v1284, 0
      %v1302 = vsel %vm778, %v1285, 0
      %1304 = vmatpush.bf16.msra.mxu0 0
      %1305 = vmatpush.bf16.msra.mxu0 0
      %1306 = vmatpush.bf16.msra.mxu0 0
      %1307 = vmatpush.bf16.msra.mxu0 0
      %1308 = vmatpush.bf16.msra.mxu0 0
      %1309 = vmatpush.bf16.msra.mxu0 0
      %1310 = vmatpush.bf16.msra.mxu0 %v1295
      %1311 = vmatpush.bf16.msra.mxu0 %v1294
      %1312 = vmatmul.bf16.gmra.mxu0 %v1299
      %v1313 = vpop.f32.mrf.mxu0
      %v1314 = vadd.f32 0.0, %v1313
      %v1315 = vpop.f32.mrf.mxu0
      %v1316 = vadd.f32 0.0, %v1315
      %1317 = vmatmul.bf16.gmra.mxu0 %v1302
      %v1318 = vpop.f32.mrf.mxu0
      %v1319 = vadd.f32 0.0, %v1318
      %v1320 = vpop.f32.mrf.mxu0
      %1321 = vdwg.mxu0
      %v1322 = vadd.f32 %v1132, %v1314
      %v1323 = vadd.f32 %v1134, %v1316
      %v1324 = vadd.f32 %v1137, %v1319
      %1325 = vrot.lane.b32.xlu0 %v772, 32
      %v1326 = vpop.permute.xlu0 %1325
      %1327 = vrot.lane.b32.xlu0 %v773, 32
      %v1328 = vpop.permute.xlu0 %1327
      %1329 = vrot.lane.b32.xlu0 %v774, 32
      %v1330 = vpop.permute.xlu0 %1329
      %1331 = vrot.lane.b32.xlu0 %v775, 32
      %v1332 = vpop.permute.xlu0 %1331
      %v1334 = vsel %vm778, %v1326, 0
      %v1337 = vsel %vm778, %v1328, 0
      %v1340 = vsel %vm778, %v1330, 0
      %v1343 = vsel %vm778, %v1332, 0
      %1345 = vmatpush.bf16.xpose.msra.mxu0 0
      %1346 = vmatpush.bf16.xpose.msra.mxu0 0
      %1347 = vmatpush.bf16.xpose.msra.mxu0 0
      %1348 = vmatpush.bf16.xpose.msra.mxu0 0
      %1349 = vmatpush.bf16.xpose.msra.mxu0 0
      %1350 = vmatpush.bf16.xpose.msra.mxu0 0
      %1351 = vmatpush.bf16.xpose.msra.mxu0 %v1343
      %1352 = vmatpush.bf16.xpose.msra.mxu0 %v1340
      %1353 = vmatmul.bf16.gmra.mxu0 %v1334
      %v1354 = vpop.f32.mrf.mxu0
      %v1355 = vadd.f32 0.0, %v1354
      %v1356 = vpop.f32.mrf.mxu0
      %v1357 = vadd.f32 0.0, %v1356
      %1358 = vmatmul.bf16.gmra.mxu0 %v1337
      %v1359 = vpop.f32.mrf.mxu0
      %v1360 = vadd.f32 0.0, %v1359
      %v1361 = vpop.f32.mrf.mxu0
      %1362 = vdwg.mxu0
      %v1363 = vsel %vm809, %v1355, -inf
      %1364 = vmax.xlane.f32.xlu0 %v1363
      %v1365 = vpop.xlane.xlu0 %1364
      %v1366 = vsel %vm809, %v1357, -inf
      %1367 = vmax.xlane.f32.xlu0 %v1366
      %v1368 = vpop.xlane.xlu0 %1367
      %v1369 = vsel %vm816, %v1360, -inf
      %1370 = vmax.xlane.f32.xlu0 %v1369
      %v1371 = vpop.xlane.xlu0 %1370
      %v1372 = vsub.f32 %v1355, %v1365
      %v1373 = vsub.f32 %v1357, %v1368
      %v1374 = vsub.f32 %v1360, %v1371
      %v1375 = vmul.f32 %v1372, 1.442695
      %v1376 = vpow.pop %v1375
      %v1377 = vmul.f32 %v1373, 1.442695
      %v1378 = vpow.pop %v1377
      %v1379 = vmul.f32 %v1374, 1.442695
      %v1380 = vpow.pop %v1379
      %v1381 = vsel %vm809, %v1376, 0.0
      %1382 = vadd.xlane.f32.xlu0 %v1381
      %v1383 = vpop.xlane.xlu0 %1382
      %v1384 = vsel %vm809, %v1378, 0.0
      %1385 = vadd.xlane.f32.xlu0 %v1384
      %v1386 = vpop.xlane.xlu0 %1385
      %v1387 = vsel %vm816, %v1380, 0.0
      %1388 = vadd.xlane.f32.xlu0 %v1387
      %v1389 = vpop.xlane.xlu0 %1388
      %v1390 = vrcp.pop %v1383
      %v1391 = vmul.f32 %v1383, %v1390
      %v1392 = vsub.f32 1.0, %v1391
      %v1393 = vmul.f32 %v1390, %v1392
      %v1394 = vadd.f32 %v1390, %v1393
      %vm1395 = vweird.f32 %v1383
      %vm1396 = vweird.f32 %v1390
      %vm1397 = vmor %vm1395, %vm1396
      %v1398 = vsel %vm1397, %v1390, %v1394
      %v1399 = vand.u32 2147483647, %v1383
      %vm1400 = vcmp.eq.f32.partialorder %v1399, 8.507059e+37
      %v1401 = vand.u32 %v1383, 2147483648
      %v1402 = vor.u32 1.1754944e-38, %v1401
      %v1403 = vsel %vm1400, %v1402, %v1398
      %v1404 = vmul.f32 %v1376, %v1403
      %v1405 = vrcp.pop %v1386
      %v1406 = vmul.f32 %v1386, %v1405
      %v1407 = vsub.f32 1.0, %v1406
      %v1408 = vmul.f32 %v1405, %v1407
      %v1409 = vadd.f32 %v1405, %v1408
      %vm1410 = vweird.f32 %v1386
      %vm1411 = vweird.f32 %v1405
      %vm1412 = vmor %vm1410, %vm1411
      %v1413 = vsel %vm1412, %v1405, %v1409
      %v1414 = vand.u32 2147483647, %v1386
      %vm1415 = vcmp.eq.f32.partialorder %v1414, 8.507059e+37
      %v1416 = vand.u32 %v1386, 2147483648
      %v1417 = vor.u32 1.1754944e-38, %v1416
      %v1418 = vsel %vm1415, %v1417, %v1413
      %v1419 = vmul.f32 %v1378, %v1418
      %v1420 = vrcp.pop %v1389
      %v1421 = vmul.f32 %v1389, %v1420
      %v1422 = vsub.f32 1.0, %v1421
      %v1423 = vmul.f32 %v1420, %v1422
      %v1424 = vadd.f32 %v1420, %v1423
      %vm1425 = vweird.f32 %v1389
      %vm1426 = vweird.f32 %v1420
      %vm1427 = vmor %vm1425, %vm1426
      %v1428 = vsel %vm1427, %v1420, %v1424
      %v1429 = vand.u32 2147483647, %v1389
      %vm1430 = vcmp.eq.f32.partialorder %v1429, 8.507059e+37
      %v1431 = vand.u32 %v1389, 2147483648
      %v1432 = vor.u32 1.1754944e-38, %v1431
      %v1433 = vsel %vm1430, %v1432, %v1428
      %v1434 = vmul.f32 %v1380, %v1433
      %v1435 = vpack.c.bf16 %v1419, %v1404
      %v1436 = vpack.c.bf16 %v1434, %v1434
      %1437 = vrot.lane.b32.xlu0 %v776, 32
      %v1438 = vpop.permute.xlu0 %1437
      %1439 = vrot.lane.b32.xlu0 %v777, 32
      %v1440 = vpop.permute.xlu0 %1439
      %v1443 = vsel %vm809, %v1435, 0
      %v1446 = vsel %vm809, %v1436, 0
      %v1449 = vand.u32 %v1440, %v892
      %1451 = vmatpush.bf16.msra.mxu0 0
      %1452 = vmatpush.bf16.msra.mxu0 0
      %1453 = vmatpush.bf16.msra.mxu0 0
      %1454 = vmatpush.bf16.msra.mxu0 0
      %1455 = vmatpush.bf16.msra.mxu0 0
      %1456 = vmatpush.bf16.msra.mxu0 0
      %1457 = vmatpush.bf16.msra.mxu0 %v1449
      %1458 = vmatpush.bf16.msra.mxu0 %v1438
      %1459 = vmatmul.bf16.gmra.mxu0 %v1443
      %v1460 = vpop.f32.mrf.mxu0
      %v1461 = vadd.f32 0.0, %v1460
      %v1462 = vpop.f32.mrf.mxu0
      %v1463 = vadd.f32 0.0, %v1462
      %1464 = vmatmul.bf16.gmra.mxu0 %v1446
      %v1465 = vpop.f32.mrf.mxu0
      %v1466 = vadd.f32 0.0, %v1465
      %v1467 = vpop.f32.mrf.mxu0
      %1468 = vdwg.mxu0
      %v1469 = vpack.c.bf16 %v1463, %v1461
      %v1470 = vpack.c.bf16 %v1466, %v1466
      %v1475 = vunpack.c.l.b16 %v765
      %v1476 = vunpack.c.l.b16 %v766
      %v1477 = vunpack.c.l.b16 %v767
      %v1478 = vunpack.c.l.b16 %v768
      %v1479 = vpack.c.b16 %v1476, %v1475
      %v1480 = vpack.c.b16 %v1478, %v1477
      %v1484 = vsel %vm778, %v1469, 0
      %v1487 = vsel %vm778, %v1470, 0
      %1489 = vmatpush.bf16.msra.mxu0 0
      %1490 = vmatpush.bf16.msra.mxu0 0
      %1491 = vmatpush.bf16.msra.mxu0 0
      %1492 = vmatpush.bf16.msra.mxu0 0
      %1493 = vmatpush.bf16.msra.mxu0 0
      %1494 = vmatpush.bf16.msra.mxu0 0
      %1495 = vmatpush.bf16.msra.mxu0 %v1480
      %1496 = vmatpush.bf16.msra.mxu0 %v1479
      %1497 = vmatmul.bf16.gmra.mxu0 %v1484
      %v1498 = vpop.f32.mrf.mxu0
      %v1499 = vadd.f32 0.0, %v1498
      %v1500 = vpop.f32.mrf.mxu0
      %v1501 = vadd.f32 0.0, %v1500
      %1502 = vmatmul.bf16.gmra.mxu0 %v1487
      %v1503 = vpop.f32.mrf.mxu0
      %v1504 = vadd.f32 0.0, %v1503
      %v1505 = vpop.f32.mrf.mxu0
      %1506 = vdwg.mxu0
      %v1507 = vadd.f32 %v1322, %v1499
      %v1508 = vadd.f32 %v1323, %v1501
      %v1509 = vadd.f32 %v1324, %v1504
      %v1510 = vadd.f32 %v442, %v1507
      %v1511 = vadd.f32 %v443, %v1508
      %v1512 = vadd.f32 %v444, %v1509
      %v1513 = vld [vmem:[%s6] sm:$0x1]
      %v1515 = vperm.slane %v1513, 0
      %v1517 = vadd.f32 %v1510, %v1515
      %v1518 = vadd.f32 %v1511, %v1515
      %v1519 = vadd.f32 %v1512, %v1515
      %v1520 = vld [vmem:[%s7] sm:$0x1]
      %v1521 = vld [vmem:[%s8] sm:$0x1]
      %1522 = vadd.xlane.f32.xlu0 %v1517
      %v1523 = vpop.xlane.xlu0 %1522
      %1524 = vadd.xlane.f32.xlu0 %v1518
      %v1525 = vpop.xlane.xlu0 %1524
      %v1526 = vsel %vm451, %v1519, 0.0
      %1527 = vadd.xlane.f32.xlu0 %v1526
      %v1528 = vpop.xlane.xlu0 %1527
      %v1529 = vmul.f32 %v1523, %v461
      %v1530 = vmul.f32 %v1525, %v461
      %v1531 = vmul.f32 %v1528, %v461
      %v1532 = vsub.f32 %v1517, %v1529
      %v1533 = vsub.f32 %v1518, %v1530
      %v1534 = vsub.f32 %v1519, %v1531
      %v1535 = vmul.f32 %v1532, %v1532
      %v1536 = vmul.f32 %v1533, %v1533
      %v1537 = vmul.f32 %v1534, %v1534
      %1538 = vadd.xlane.f32.xlu0 %v1535
      %v1539 = vpop.xlane.xlu0 %1538
      %1540 = vadd.xlane.f32.xlu0 %v1536
      %v1541 = vpop.xlane.xlu0 %1540
      %v1542 = vsel %vm451, %v1537, 0.0
      %1543 = vadd.xlane.f32.xlu0 %v1542
      %v1544 = vpop.xlane.xlu0 %1543
      %v1545 = vmul.f32 %v1539, %v461
      %v1546 = vmul.f32 %v1541, %v461
      %v1547 = vmul.f32 %v1544, %v461
      %v1548 = vadd.f32 %v1545, 1e-06
      %v1549 = vadd.f32 %v1546, 1e-06
      %v1550 = vadd.f32 %v1547, 1e-06
      %v1551 = vrsqrt.pop %v1548
      %v1552 = vmul.f32 %v1551, %v1548
      %v1553 = vmul.f32 %v1552, %v1551
      %v1554 = vmul.f32 0.5, %v1553
      %v1555 = vsub.f32 1.5, %v1554
      %v1556 = vmul.f32 %v1551, %v1555
      %vm1557 = vweird.f32 %v1548
      %vm1558 = vweird.f32 %v1551
      %vm1559 = vmor %vm1557, %vm1558
      %v1560 = vsel %vm1559, %v1551, %v1556
      %v1561 = vrsqrt.pop %v1549
      %v1562 = vmul.f32 %v1561, %v1549
      %v1563 = vmul.f32 %v1562, %v1561
      %v1564 = vmul.f32 0.5, %v1563
      %v1565 = vsub.f32 1.5, %v1564
      %v1566 = vmul.f32 %v1561, %v1565
      %vm1567 = vweird.f32 %v1549
      %vm1568 = vweird.f32 %v1561
      %vm1569 = vmor %vm1567, %vm1568
      %v1570 = vsel %vm1569, %v1561, %v1566
      %v1571 = vrsqrt.pop %v1550
      %v1572 = vmul.f32 %v1571, %v1550
      %v1573 = vmul.f32 %v1572, %v1571
      %v1574 = vmul.f32 0.5, %v1573
      %v1575 = vsub.f32 1.5, %v1574
      %v1576 = vmul.f32 %v1571, %v1575
      %vm1577 = vweird.f32 %v1550
      %vm1578 = vweird.f32 %v1571
      %vm1579 = vmor %vm1577, %vm1578
      %v1580 = vsel %vm1579, %v1571, %v1576
      %v1581 = vmul.f32 %v1532, %v1560
      %v1582 = vmul.f32 %v1533, %v1570
      %v1583 = vmul.f32 %v1534, %v1580
      %v1585 = vperm.slane %v1520, 0
      %v1587 = vmul.f32 %v1581, %v1585
      %v1588 = vmul.f32 %v1582, %v1585
      %v1589 = vmul.f32 %v1583, %v1585
      %v1591 = vperm.slane %v1521, 0
      %v1593 = vadd.f32 %v1587, %v1591
      %v1594 = vadd.f32 %v1588, %v1591
      %v1595 = vadd.f32 %v1589, %v1591
      %v1596 = vpack.c.bf16 %v1594, %v1593
      %v1597 = vpack.c.bf16 %v1595, %v1595
      %v1598 = vld [vmem:[%s9] sm:$0xff]
      %v1599 = vld [vmem:[%s9 + $0x8] sm:$0xff]
      %v1600 = vld [vmem:[%s9 + $0x10] sm:$0xff]
      %v1601 = vld [vmem:[%s9 + $0x18] sm:$0xff]
      %v1602 = vld [vmem:[%s9 + $0x20] sm:$0xff]
      %v1603 = vld [vmem:[%s9 + $0x28] sm:$0xff]
      %v1604 = vld [vmem:[%s9 + $0x30] sm:$0xff]
      %v1605 = vld [vmem:[%s9 + $0x38] sm:$0xff]
      %v1606 = vld [vmem:[%s9 + $0x40] sm:$0xff]
      %v1607 = vld [vmem:[%s9 + $0x48] sm:$0xff]
      %v1608 = vld [vmem:[%s9 + $0x50] sm:$0xff]
      %v1609 = vld [vmem:[%s9 + $0x58] sm:$0xff]
      %v1610 = vld [vmem:[%s9 + $0x60] sm:$0xff]
      %v1611 = vld [vmem:[%s9 + $0x68] sm:$0xff]
      %v1612 = vld [vmem:[%s9 + $0x70] sm:$0xff]
      %v1613 = vld [vmem:[%s9 + $0x78] sm:$0xff]
      %v1614 = vld [vmem:[%s9 + $0x80] sm:$0xff]
      %v1615 = vld [vmem:[%s9 + $0x88] sm:$0xff]
      %v1616 = vld [vmem:[%s9 + $0x90] sm:$0xff]
      %v1617 = vld [vmem:[%s9 + $0x98] sm:$0xff]
      %v1618 = vld [vmem:[%s9 + $0xa0] sm:$0xff]
      %v1619 = vld [vmem:[%s9 + $0xa8] sm:$0xff]
      %v1620 = vld [vmem:[%s9 + $0xb0] sm:$0xff]
      %v1621 = vld [vmem:[%s9 + $0xb8] sm:$0xff]
      %v1622 = vld [vmem:[%s9 + $0xc0] sm:$0xff]
      %v1623 = vld [vmem:[%s9 + $0xc8] sm:$0xff]
      %v1624 = vld [vmem:[%s9 + $0xd0] sm:$0xff]
      %v1625 = vld [vmem:[%s9 + $0xd8] sm:$0xff]
      %v1626 = vld [vmem:[%s9 + $0xe0] sm:$0xff]
      %v1627 = vld [vmem:[%s9 + $0xe8] sm:$0xff]
      %v1628 = vld [vmem:[%s9 + $0xf0] sm:$0xff]
      %v1629 = vld [vmem:[%s9 + $0xf8] sm:$0xff]
      %v1630 = vld [vmem:[%s10] sm:$0xf]
      %v1632 = vperm.slane %v1630, 0
      %v1633 = vperm.slane %v1630, 1
      %v1634 = vperm.slane %v1630, 2
      %v1635 = vperm.slane %v1630, 3
      %v1672 = vunpack.c.l.b16 %v1598
      %v1673 = vunpack.c.h.b16 %v1598
      %v1674 = vunpack.c.l.b16 %v1599
      %v1675 = vunpack.c.h.b16 %v1599
      %v1676 = vunpack.c.l.b16 %v1600
      %v1677 = vunpack.c.h.b16 %v1600
      %v1678 = vunpack.c.l.b16 %v1601
      %v1679 = vunpack.c.h.b16 %v1601
      %v1680 = vunpack.c.l.b16 %v1602
      %v1681 = vunpack.c.h.b16 %v1602
      %v1682 = vunpack.c.l.b16 %v1603
      %v1683 = vunpack.c.h.b16 %v1603
      %v1684 = vunpack.c.l.b16 %v1604
      %v1685 = vunpack.c.h.b16 %v1604
      %v1686 = vunpack.c.l.b16 %v1605
      %v1687 = vunpack.c.h.b16 %v1605
      %v1688 = vunpack.c.l.b16 %v1606
      %v1689 = vunpack.c.h.b16 %v1606
      %v1690 = vunpack.c.l.b16 %v1607
      %v1691 = vunpack.c.h.b16 %v1607
      %v1692 = vunpack.c.l.b16 %v1608
      %v1693 = vunpack.c.h.b16 %v1608
      %v1694 = vunpack.c.l.b16 %v1609
      %v1695 = vunpack.c.h.b16 %v1609
      %v1696 = vunpack.c.l.b16 %v1610
      %v1697 = vunpack.c.h.b16 %v1610
      %v1698 = vunpack.c.l.b16 %v1611
      %v1699 = vunpack.c.h.b16 %v1611
      %v1700 = vunpack.c.l.b16 %v1612
      %v1701 = vunpack.c.h.b16 %v1612
      %v1702 = vunpack.c.l.b16 %v1613
      %v1703 = vunpack.c.h.b16 %v1613
      %v1704 = vunpack.c.l.b16 %v1614
      %v1705 = vunpack.c.h.b16 %v1614
      %v1706 = vunpack.c.l.b16 %v1615
      %v1707 = vunpack.c.h.b16 %v1615
      %v1708 = vunpack.c.l.b16 %v1616
      %v1709 = vunpack.c.h.b16 %v1616
      %v1710 = vunpack.c.l.b16 %v1617
      %v1711 = vunpack.c.h.b16 %v1617
      %v1712 = vunpack.c.l.b16 %v1618
      %v1713 = vunpack.c.h.b16 %v1618
      %v1714 = vunpack.c.l.b16 %v1619
      %v1715 = vunpack.c.h.b16 %v1619
      %v1716 = vunpack.c.l.b16 %v1620
      %v1717 = vunpack.c.h.b16 %v1620
      %v1718 = vunpack.c.l.b16 %v1621
      %v1719 = vunpack.c.h.b16 %v1621
      %v1720 = vunpack.c.l.b16 %v1622
      %v1721 = vunpack.c.h.b16 %v1622
      %v1722 = vunpack.c.l.b16 %v1623
      %v1723 = vunpack.c.h.b16 %v1623
      %v1724 = vunpack.c.l.b16 %v1624
      %v1725 = vunpack.c.h.b16 %v1624
      %v1726 = vunpack.c.l.b16 %v1625
      %v1727 = vunpack.c.h.b16 %v1625
      %v1728 = vunpack.c.l.b16 %v1626
      %v1729 = vunpack.c.h.b16 %v1626
      %v1730 = vunpack.c.l.b16 %v1627
      %v1731 = vunpack.c.h.b16 %v1627
      %v1732 = vunpack.c.l.b16 %v1628
      %v1733 = vunpack.c.h.b16 %v1628
      %v1734 = vunpack.c.l.b16 %v1629
      %v1735 = vunpack.c.h.b16 %v1629
      %v1736 = vpack.c.b16 %v1676, %v1672
      %v1737 = vpack.c.b16 %v1677, %v1673
      %v1738 = vpack.c.b16 %v1678, %v1674
      %v1739 = vpack.c.b16 %v1679, %v1675
      %v1740 = vpack.c.b16 %v1684, %v1680
      %v1741 = vpack.c.b16 %v1685, %v1681
      %v1742 = vpack.c.b16 %v1686, %v1682
      %v1743 = vpack.c.b16 %v1687, %v1683
      %v1744 = vpack.c.b16 %v1692, %v1688
      %v1745 = vpack.c.b16 %v1693, %v1689
      %v1746 = vpack.c.b16 %v1694, %v1690
      %v1747 = vpack.c.b16 %v1695, %v1691
      %v1748 = vpack.c.b16 %v1700, %v1696
      %v1749 = vpack.c.b16 %v1701, %v1697
      %v1750 = vpack.c.b16 %v1702, %v1698
      %v1751 = vpack.c.b16 %v1703, %v1699
      %v1752 = vpack.c.b16 %v1708, %v1704
      %v1753 = vpack.c.b16 %v1709, %v1705
      %v1754 = vpack.c.b16 %v1710, %v1706
      %v1755 = vpack.c.b16 %v1711, %v1707
      %v1756 = vpack.c.b16 %v1716, %v1712
      %v1757 = vpack.c.b16 %v1717, %v1713
      %v1758 = vpack.c.b16 %v1718, %v1714
      %v1759 = vpack.c.b16 %v1719, %v1715
      %v1760 = vpack.c.b16 %v1724, %v1720
      %v1761 = vpack.c.b16 %v1725, %v1721
      %v1762 = vpack.c.b16 %v1726, %v1722
      %v1763 = vpack.c.b16 %v1727, %v1723
      %v1764 = vpack.c.b16 %v1732, %v1728
      %v1765 = vpack.c.b16 %v1733, %v1729
      %v1766 = vpack.c.b16 %v1734, %v1730
      %v1767 = vpack.c.b16 %v1735, %v1731
      %1800 = vmatpush.bf16.msra.mxu0 %v1764
      %1801 = vmatpush.bf16.msra.mxu0 %v1760
      %1802 = vmatpush.bf16.msra.mxu0 %v1756
      %1803 = vmatpush.bf16.msra.mxu0 %v1752
      %1804 = vmatpush.bf16.msra.mxu0 %v1748
      %1805 = vmatpush.bf16.msra.mxu0 %v1744
      %1806 = vmatpush.bf16.msra.mxu0 %v1740
      %1807 = vmatpush.bf16.msra.mxu0 %v1736
      %1808 = vmatmul.bf16.gmra.mxu0 %v1596
      %v1809 = vpop.f32.mrf.mxu0
      %v1810 = vadd.f32 %v1632, %v1809
      %v1811 = vpop.f32.mrf.mxu0
      %v1812 = vadd.f32 %v1632, %v1811
      %1813 = vmatmul.bf16.gmra.mxu0 %v1597
      %v1814 = vpop.f32.mrf.mxu0
      %v1815 = vadd.f32 %v1632, %v1814
      %v1816 = vpop.f32.mrf.mxu0
      %1817 = vdwg.mxu0
      %1818 = vmatpush.bf16.msra.mxu0 %v1765
      %1819 = vmatpush.bf16.msra.mxu0 %v1761
      %1820 = vmatpush.bf16.msra.mxu0 %v1757
      %1821 = vmatpush.bf16.msra.mxu0 %v1753
      %1822 = vmatpush.bf16.msra.mxu0 %v1749
      %1823 = vmatpush.bf16.msra.mxu0 %v1745
      %1824 = vmatpush.bf16.msra.mxu0 %v1741
      %1825 = vmatpush.bf16.msra.mxu0 %v1737
      %1826 = vmatmul.bf16.gmra.mxu0 %v1596
      %v1827 = vpop.f32.mrf.mxu0
      %v1828 = vadd.f32 %v1633, %v1827
      %v1829 = vpop.f32.mrf.mxu0
      %v1830 = vadd.f32 %v1633, %v1829
      %1831 = vmatmul.bf16.gmra.mxu0 %v1597
      %v1832 = vpop.f32.mrf.mxu0
      %v1833 = vadd.f32 %v1633, %v1832
      %v1834 = vpop.f32.mrf.mxu0
      %1835 = vdwg.mxu0
      %1836 = vmatpush.bf16.msra.mxu0 %v1766
      %1837 = vmatpush.bf16.msra.mxu0 %v1762
      %1838 = vmatpush.bf16.msra.mxu0 %v1758
      %1839 = vmatpush.bf16.msra.mxu0 %v1754
      %1840 = vmatpush.bf16.msra.mxu0 %v1750
      %1841 = vmatpush.bf16.msra.mxu0 %v1746
      %1842 = vmatpush.bf16.msra.mxu0 %v1742
      %1843 = vmatpush.bf16.msra.mxu0 %v1738
      %1844 = vmatmul.bf16.gmra.mxu0 %v1596
      %v1845 = vpop.f32.mrf.mxu0
      %v1846 = vadd.f32 %v1634, %v1845
      %v1847 = vpop.f32.mrf.mxu0
      %v1848 = vadd.f32 %v1634, %v1847
      %1849 = vmatmul.bf16.gmra.mxu0 %v1597
      %v1850 = vpop.f32.mrf.mxu0
      %v1851 = vadd.f32 %v1634, %v1850
      %v1852 = vpop.f32.mrf.mxu0
      %1853 = vdwg.mxu0
      %1854 = vmatpush.bf16.msra.mxu0 %v1767
      %1855 = vmatpush.bf16.msra.mxu0 %v1763
      %1856 = vmatpush.bf16.msra.mxu0 %v1759
      %1857 = vmatpush.bf16.msra.mxu0 %v1755
      %1858 = vmatpush.bf16.msra.mxu0 %v1751
      %1859 = vmatpush.bf16.msra.mxu0 %v1747
      %1860 = vmatpush.bf16.msra.mxu0 %v1743
      %1861 = vmatpush.bf16.msra.mxu0 %v1739
      %1862 = vmatmul.bf16.gmra.mxu0 %v1596
      %v1863 = vpop.f32.mrf.mxu0
      %v1864 = vadd.f32 %v1635, %v1863
      %v1865 = vpop.f32.mrf.mxu0
      %v1866 = vadd.f32 %v1635, %v1865
      %1867 = vmatmul.bf16.gmra.mxu0 %v1597
      %v1868 = vpop.f32.mrf.mxu0
      %v1869 = vadd.f32 %v1635, %v1868
      %v1870 = vpop.f32.mrf.mxu0
      %1871 = vdwg.mxu0
      %v1872 = vmul.f32 %v1810, 0.5
      %v1873 = vmul.f32 %v1828, 0.5
      %v1874 = vmul.f32 %v1846, 0.5
      %v1875 = vmul.f32 %v1864, 0.5
      %v1876 = vmul.f32 %v1812, 0.5
      %v1877 = vmul.f32 %v1830, 0.5
      %v1878 = vmul.f32 %v1848, 0.5
      %v1879 = vmul.f32 %v1866, 0.5
      %v1880 = vmul.f32 %v1815, 0.5
      %v1881 = vmul.f32 %v1833, 0.5
      %v1882 = vmul.f32 %v1851, 0.5
      %v1883 = vmul.f32 %v1869, 0.5
      %v1884 = vmul.f32 %v1810, 0.70710677
      %v1885 = vmul.f32 %v1828, 0.70710677
      %v1886 = vmul.f32 %v1846, 0.70710677
      %v1887 = vmul.f32 %v1864, 0.70710677
      %v1888 = vmul.f32 %v1812, 0.70710677
      %v1889 = vmul.f32 %v1830, 0.70710677
      %v1890 = vmul.f32 %v1848, 0.70710677
      %v1891 = vmul.f32 %v1866, 0.70710677
      %v1892 = vmul.f32 %v1815, 0.70710677
      %v1893 = vmul.f32 %v1833, 0.70710677
      %v1894 = vmul.f32 %v1851, 0.70710677
      %v1895 = vmul.f32 %v1869, 0.70710677
      %v1896 = vmul.f32 %v1884, %v1884
      %v1897 = vmin.f32 16.0, %v1896
      %v1898 = vmul.f32 %v1897, 2.1237322e-06
      %v1899 = vadd.f32 %v1898, 0.00028619796
      %v1900 = vmul.f32 %v1897, %v1899
      %v1901 = vadd.f32 %v1900, 0.0036580483
      %v1902 = vmul.f32 %v1897, %v1901
      %v1903 = vadd.f32 %v1902, 0.05243302
      %v1904 = vmul.f32 %v1897, %v1903
      %v1905 = vadd.f32 %v1904, 0.18741608
      %v1906 = vmul.f32 %v1897, %v1905
      %v1907 = vadd.f32 %v1906, 1.1283791
      %v1908 = vmul.f32 %v1884, %v1907
      %v1909 = vmul.f32 %v1897, 3.8918573e-05
      %v1910 = vadd.f32 %v1909, 0.001143296
      %v1911 = vmul.f32 %v1897, %v1910
      %v1912 = vadd.f32 %v1911, 0.014752088
      %v1913 = vmul.f32 %v1897, %v1912
      %v1914 = vadd.f32 %v1913, 0.112945676
      %v1915 = vmul.f32 %v1897, %v1914
      %v1916 = vadd.f32 %v1915, 0.4994258
      %v1917 = vmul.f32 %v1897, %v1916
      %v1918 = vadd.f32 %v1917, 1.0
      %v1919 = vrcp.pop %v1918
      %v1920 = vmul.f32 %v1918, %v1919
      %v1921 = vsub.f32 1.0, %v1920
      %v1922 = vmul.f32 %v1919, %v1921
      %v1923 = vadd.f32 %v1919, %v1922
      %vm1924 = vweird.f32 %v1918
      %vm1925 = vweird.f32 %v1919
      %vm1926 = vmor %vm1924, %vm1925
      %v1927 = vsel %vm1926, %v1919, %v1923
      %v1928 = vand.u32 2147483647, %v1918
      %vm1929 = vcmp.eq.f32.partialorder %v1928, 8.507059e+37
      %v1930 = vand.u32 %v1918, 2147483648
      %v1931 = vor.u32 1.1754944e-38, %v1930
      %v1932 = vsel %vm1929, %v1931, %v1927
      %v1933 = vmul.f32 %v1908, %v1932
      %v1934 = vmin.f32 %v1933, 1.0
      %v1935 = vmax.f32 %v1934, -1.0
      %v1936 = vmul.f32 %v1885, %v1885
      %v1937 = vmin.f32 16.0, %v1936
      %v1938 = vmul.f32 %v1937, 2.1237322e-06
      %v1939 = vadd.f32 %v1938, 0.00028619796
      %v1940 = vmul.f32 %v1937, %v1939
      %v1941 = vadd.f32 %v1940, 0.0036580483
      %v1942 = vmul.f32 %v1937, %v1941
      %v1943 = vadd.f32 %v1942, 0.05243302
      %v1944 = vmul.f32 %v1937, %v1943
      %v1945 = vadd.f32 %v1944, 0.18741608
      %v1946 = vmul.f32 %v1937, %v1945
      %v1947 = vadd.f32 %v1946, 1.1283791
      %v1948 = vmul.f32 %v1885, %v1947
      %v1949 = vmul.f32 %v1937, 3.8918573e-05
      %v1950 = vadd.f32 %v1949, 0.001143296
      %v1951 = vmul.f32 %v1937, %v1950
      %v1952 = vadd.f32 %v1951, 0.014752088
      %v1953 = vmul.f32 %v1937, %v1952
      %v1954 = vadd.f32 %v1953, 0.112945676
      %v1955 = vmul.f32 %v1937, %v1954
      %v1956 = vadd.f32 %v1955, 0.4994258
      %v1957 = vmul.f32 %v1937, %v1956
      %v1958 = vadd.f32 %v1957, 1.0
      %v1959 = vrcp.pop %v1958
      %v1960 = vmul.f32 %v1958, %v1959
      %v1961 = vsub.f32 1.0, %v1960
      %v1962 = vmul.f32 %v1959, %v1961
      %v1963 = vadd.f32 %v1959, %v1962
      %vm1964 = vweird.f32 %v1958
      %vm1965 = vweird.f32 %v1959
      %vm1966 = vmor %vm1964, %vm1965
      %v1967 = vsel %vm1966, %v1959, %v1963
      %v1968 = vand.u32 2147483647, %v1958
      %vm1969 = vcmp.eq.f32.partialorder %v1968, 8.507059e+37
      %v1970 = vand.u32 %v1958, 2147483648
      %v1971 = vor.u32 1.1754944e-38, %v1970
      %v1972 = vsel %vm1969, %v1971, %v1967
      %v1973 = vmul.f32 %v1948, %v1972
      %v1974 = vmin.f32 %v1973, 1.0
      %v1975 = vmax.f32 %v1974, -1.0
      %v1976 = vmul.f32 %v1886, %v1886
      %v1977 = vmin.f32 16.0, %v1976
      %v1978 = vmul.f32 %v1977, 2.1237322e-06
      %v1979 = vadd.f32 %v1978, 0.00028619796
      %v1980 = vmul.f32 %v1977, %v1979
      %v1981 = vadd.f32 %v1980, 0.0036580483
      %v1982 = vmul.f32 %v1977, %v1981
      %v1983 = vadd.f32 %v1982, 0.05243302
      %v1984 = vmul.f32 %v1977, %v1983
      %v1985 = vadd.f32 %v1984, 0.18741608
      %v1986 = vmul.f32 %v1977, %v1985
      %v1987 = vadd.f32 %v1986, 1.1283791
      %v1988 = vmul.f32 %v1886, %v1987
      %v1989 = vmul.f32 %v1977, 3.8918573e-05
      %v1990 = vadd.f32 %v1989, 0.001143296
      %v1991 = vmul.f32 %v1977, %v1990
      %v1992 = vadd.f32 %v1991, 0.014752088
      %v1993 = vmul.f32 %v1977, %v1992
      %v1994 = vadd.f32 %v1993, 0.112945676
      %v1995 = vmul.f32 %v1977, %v1994
      %v1996 = vadd.f32 %v1995, 0.4994258
      %v1997 = vmul.f32 %v1977, %v1996
      %v1998 = vadd.f32 %v1997, 1.0
      %v1999 = vrcp.pop %v1998
      %v2000 = vmul.f32 %v1998, %v1999
      %v2001 = vsub.f32 1.0, %v2000
      %v2002 = vmul.f32 %v1999, %v2001
      %v2003 = vadd.f32 %v1999, %v2002
      %vm2004 = vweird.f32 %v1998
      %vm2005 = vweird.f32 %v1999
      %vm2006 = vmor %vm2004, %vm2005
      %v2007 = vsel %vm2006, %v1999, %v2003
      %v2008 = vand.u32 2147483647, %v1998
      %vm2009 = vcmp.eq.f32.partialorder %v2008, 8.507059e+37
      %v2010 = vand.u32 %v1998, 2147483648
      %v2011 = vor.u32 1.1754944e-38, %v2010
      %v2012 = vsel %vm2009, %v2011, %v2007
      %v2013 = vmul.f32 %v1988, %v2012
      %v2014 = vmin.f32 %v2013, 1.0
      %v2015 = vmax.f32 %v2014, -1.0
      %v2016 = vmul.f32 %v1887, %v1887
      %v2017 = vmin.f32 16.0, %v2016
      %v2018 = vmul.f32 %v2017, 2.1237322e-06
      %v2019 = vadd.f32 %v2018, 0.00028619796
      %v2020 = vmul.f32 %v2017, %v2019
      %v2021 = vadd.f32 %v2020, 0.0036580483
      %v2022 = vmul.f32 %v2017, %v2021
      %v2023 = vadd.f32 %v2022, 0.05243302
      %v2024 = vmul.f32 %v2017, %v2023
      %v2025 = vadd.f32 %v2024, 0.18741608
      %v2026 = vmul.f32 %v2017, %v2025
      %v2027 = vadd.f32 %v2026, 1.1283791
      %v2028 = vmul.f32 %v1887, %v2027
      %v2029 = vmul.f32 %v2017, 3.8918573e-05
      %v2030 = vadd.f32 %v2029, 0.001143296
      %v2031 = vmul.f32 %v2017, %v2030
      %v2032 = vadd.f32 %v2031, 0.014752088
      %v2033 = vmul.f32 %v2017, %v2032
      %v2034 = vadd.f32 %v2033, 0.112945676
      %v2035 = vmul.f32 %v2017, %v2034
      %v2036 = vadd.f32 %v2035, 0.4994258
      %v2037 = vmul.f32 %v2017, %v2036
      %v2038 = vadd.f32 %v2037, 1.0
      %v2039 = vrcp.pop %v2038
      %v2040 = vmul.f32 %v2038, %v2039
      %v2041 = vsub.f32 1.0, %v2040
      %v2042 = vmul.f32 %v2039, %v2041
      %v2043 = vadd.f32 %v2039, %v2042
      %vm2044 = vweird.f32 %v2038
      %vm2045 = vweird.f32 %v2039
      %vm2046 = vmor %vm2044, %vm2045
      %v2047 = vsel %vm2046, %v2039, %v2043
      %v2048 = vand.u32 2147483647, %v2038
      %vm2049 = vcmp.eq.f32.partialorder %v2048, 8.507059e+37
      %v2050 = vand.u32 %v2038, 2147483648
      %v2051 = vor.u32 1.1754944e-38, %v2050
      %v2052 = vsel %vm2049, %v2051, %v2047
      %v2053 = vmul.f32 %v2028, %v2052
      %v2054 = vmin.f32 %v2053, 1.0
      %v2055 = vmax.f32 %v2054, -1.0
      %v2056 = vmul.f32 %v1888, %v1888
      %v2057 = vmin.f32 16.0, %v2056
      %v2058 = vmul.f32 %v2057, 2.1237322e-06
      %v2059 = vadd.f32 %v2058, 0.00028619796
      %v2060 = vmul.f32 %v2057, %v2059
      %v2061 = vadd.f32 %v2060, 0.0036580483
      %v2062 = vmul.f32 %v2057, %v2061
      %v2063 = vadd.f32 %v2062, 0.05243302
      %v2064 = vmul.f32 %v2057, %v2063
      %v2065 = vadd.f32 %v2064, 0.18741608
      %v2066 = vmul.f32 %v2057, %v2065
      %v2067 = vadd.f32 %v2066, 1.1283791
      %v2068 = vmul.f32 %v1888, %v2067
      %v2069 = vmul.f32 %v2057, 3.8918573e-05
      %v2070 = vadd.f32 %v2069, 0.001143296
      %v2071 = vmul.f32 %v2057, %v2070
      %v2072 = vadd.f32 %v2071, 0.014752088
      %v2073 = vmul.f32 %v2057, %v2072
      %v2074 = vadd.f32 %v2073, 0.112945676
      %v2075 = vmul.f32 %v2057, %v2074
      %v2076 = vadd.f32 %v2075, 0.4994258
      %v2077 = vmul.f32 %v2057, %v2076
      %v2078 = vadd.f32 %v2077, 1.0
      %v2079 = vrcp.pop %v2078
      %v2080 = vmul.f32 %v2078, %v2079
      %v2081 = vsub.f32 1.0, %v2080
      %v2082 = vmul.f32 %v2079, %v2081
      %v2083 = vadd.f32 %v2079, %v2082
      %vm2084 = vweird.f32 %v2078
      %vm2085 = vweird.f32 %v2079
      %vm2086 = vmor %vm2084, %vm2085
      %v2087 = vsel %vm2086, %v2079, %v2083
      %v2088 = vand.u32 2147483647, %v2078
      %vm2089 = vcmp.eq.f32.partialorder %v2088, 8.507059e+37
      %v2090 = vand.u32 %v2078, 2147483648
      %v2091 = vor.u32 1.1754944e-38, %v2090
      %v2092 = vsel %vm2089, %v2091, %v2087
      %v2093 = vmul.f32 %v2068, %v2092
      %v2094 = vmin.f32 %v2093, 1.0
      %v2095 = vmax.f32 %v2094, -1.0
      %v2096 = vmul.f32 %v1889, %v1889
      %v2097 = vmin.f32 16.0, %v2096
      %v2098 = vmul.f32 %v2097, 2.1237322e-06
      %v2099 = vadd.f32 %v2098, 0.00028619796
      %v2100 = vmul.f32 %v2097, %v2099
      %v2101 = vadd.f32 %v2100, 0.0036580483
      %v2102 = vmul.f32 %v2097, %v2101
      %v2103 = vadd.f32 %v2102, 0.05243302
      %v2104 = vmul.f32 %v2097, %v2103
      %v2105 = vadd.f32 %v2104, 0.18741608
      %v2106 = vmul.f32 %v2097, %v2105
      %v2107 = vadd.f32 %v2106, 1.1283791
      %v2108 = vmul.f32 %v1889, %v2107
      %v2109 = vmul.f32 %v2097, 3.8918573e-05
      %v2110 = vadd.f32 %v2109, 0.001143296
      %v2111 = vmul.f32 %v2097, %v2110
      %v2112 = vadd.f32 %v2111, 0.014752088
      %v2113 = vmul.f32 %v2097, %v2112
      %v2114 = vadd.f32 %v2113, 0.112945676
      %v2115 = vmul.f32 %v2097, %v2114
      %v2116 = vadd.f32 %v2115, 0.4994258
      %v2117 = vmul.f32 %v2097, %v2116
      %v2118 = vadd.f32 %v2117, 1.0
      %v2119 = vrcp.pop %v2118
      %v2120 = vmul.f32 %v2118, %v2119
      %v2121 = vsub.f32 1.0, %v2120
      %v2122 = vmul.f32 %v2119, %v2121
      %v2123 = vadd.f32 %v2119, %v2122
      %vm2124 = vweird.f32 %v2118
      %vm2125 = vweird.f32 %v2119
      %vm2126 = vmor %vm2124, %vm2125
      %v2127 = vsel %vm2126, %v2119, %v2123
      %v2128 = vand.u32 2147483647, %v2118
      %vm2129 = vcmp.eq.f32.partialorder %v2128, 8.507059e+37
      %v2130 = vand.u32 %v2118, 2147483648
      %v2131 = vor.u32 1.1754944e-38, %v2130
      %v2132 = vsel %vm2129, %v2131, %v2127
      %v2133 = vmul.f32 %v2108, %v2132
      %v2134 = vmin.f32 %v2133, 1.0
      %v2135 = vmax.f32 %v2134, -1.0
      %v2136 = vmul.f32 %v1890, %v1890
      %v2137 = vmin.f32 16.0, %v2136
      %v2138 = vmul.f32 %v2137, 2.1237322e-06
      %v2139 = vadd.f32 %v2138, 0.00028619796
      %v2140 = vmul.f32 %v2137, %v2139
      %v2141 = vadd.f32 %v2140, 0.0036580483
      %v2142 = vmul.f32 %v2137, %v2141
      %v2143 = vadd.f32 %v2142, 0.05243302
      %v2144 = vmul.f32 %v2137, %v2143
      %v2145 = vadd.f32 %v2144, 0.18741608
      %v2146 = vmul.f32 %v2137, %v2145
      %v2147 = vadd.f32 %v2146, 1.1283791
      %v2148 = vmul.f32 %v1890, %v2147
      %v2149 = vmul.f32 %v2137, 3.8918573e-05
      %v2150 = vadd.f32 %v2149, 0.001143296
      %v2151 = vmul.f32 %v2137, %v2150
      %v2152 = vadd.f32 %v2151, 0.014752088
      %v2153 = vmul.f32 %v2137, %v2152
      %v2154 = vadd.f32 %v2153, 0.112945676
      %v2155 = vmul.f32 %v2137, %v2154
      %v2156 = vadd.f32 %v2155, 0.4994258
      %v2157 = vmul.f32 %v2137, %v2156
      %v2158 = vadd.f32 %v2157, 1.0
      %v2159 = vrcp.pop %v2158
      %v2160 = vmul.f32 %v2158, %v2159
      %v2161 = vsub.f32 1.0, %v2160
      %v2162 = vmul.f32 %v2159, %v2161
      %v2163 = vadd.f32 %v2159, %v2162
      %vm2164 = vweird.f32 %v2158
      %vm2165 = vweird.f32 %v2159
      %vm2166 = vmor %vm2164, %vm2165
      %v2167 = vsel %vm2166, %v2159, %v2163
      %v2168 = vand.u32 2147483647, %v2158
      %vm2169 = vcmp.eq.f32.partialorder %v2168, 8.507059e+37
      %v2170 = vand.u32 %v2158, 2147483648
      %v2171 = vor.u32 1.1754944e-38, %v2170
      %v2172 = vsel %vm2169, %v2171, %v2167
      %v2173 = vmul.f32 %v2148, %v2172
      %v2174 = vmin.f32 %v2173, 1.0
      %v2175 = vmax.f32 %v2174, -1.0
      %v2176 = vmul.f32 %v1891, %v1891
      %v2177 = vmin.f32 16.0, %v2176
      %v2178 = vmul.f32 %v2177, 2.1237322e-06
      %v2179 = vadd.f32 %v2178, 0.00028619796
      %v2180 = vmul.f32 %v2177, %v2179
      %v2181 = vadd.f32 %v2180, 0.0036580483
      %v2182 = vmul.f32 %v2177, %v2181
      %v2183 = vadd.f32 %v2182, 0.05243302
      %v2184 = vmul.f32 %v2177, %v2183
      %v2185 = vadd.f32 %v2184, 0.18741608
      %v2186 = vmul.f32 %v2177, %v2185
      %v2187 = vadd.f32 %v2186, 1.1283791
      %v2188 = vmul.f32 %v1891, %v2187
      %v2189 = vmul.f32 %v2177, 3.8918573e-05
      %v2190 = vadd.f32 %v2189, 0.001143296
      %v2191 = vmul.f32 %v2177, %v2190
      %v2192 = vadd.f32 %v2191, 0.014752088
      %v2193 = vmul.f32 %v2177, %v2192
      %v2194 = vadd.f32 %v2193, 0.112945676
      %v2195 = vmul.f32 %v2177, %v2194
      %v2196 = vadd.f32 %v2195, 0.4994258
      %v2197 = vmul.f32 %v2177, %v2196
      %v2198 = vadd.f32 %v2197, 1.0
      %v2199 = vrcp.pop %v2198
      %v2200 = vmul.f32 %v2198, %v2199
      %v2201 = vsub.f32 1.0, %v2200
      %v2202 = vmul.f32 %v2199, %v2201
      %v2203 = vadd.f32 %v2199, %v2202
      %vm2204 = vweird.f32 %v2198
      %vm2205 = vweird.f32 %v2199
      %vm2206 = vmor %vm2204, %vm2205
      %v2207 = vsel %vm2206, %v2199, %v2203
      %v2208 = vand.u32 2147483647, %v2198
      %vm2209 = vcmp.eq.f32.partialorder %v2208, 8.507059e+37
      %v2210 = vand.u32 %v2198, 2147483648
      %v2211 = vor.u32 1.1754944e-38, %v2210
      %v2212 = vsel %vm2209, %v2211, %v2207
      %v2213 = vmul.f32 %v2188, %v2212
      %v2214 = vmin.f32 %v2213, 1.0
      %v2215 = vmax.f32 %v2214, -1.0
      %v2216 = vmul.f32 %v1892, %v1892
      %v2217 = vmin.f32 16.0, %v2216
      %v2218 = vmul.f32 %v2217, 2.1237322e-06
      %v2219 = vadd.f32 %v2218, 0.00028619796
      %v2220 = vmul.f32 %v2217, %v2219
      %v2221 = vadd.f32 %v2220, 0.0036580483
      %v2222 = vmul.f32 %v2217, %v2221
      %v2223 = vadd.f32 %v2222, 0.05243302
      %v2224 = vmul.f32 %v2217, %v2223
      %v2225 = vadd.f32 %v2224, 0.18741608
      %v2226 = vmul.f32 %v2217, %v2225
      %v2227 = vadd.f32 %v2226, 1.1283791
      %v2228 = vmul.f32 %v1892, %v2227
      %v2229 = vmul.f32 %v2217, 3.8918573e-05
      %v2230 = vadd.f32 %v2229, 0.001143296
      %v2231 = vmul.f32 %v2217, %v2230
      %v2232 = vadd.f32 %v2231, 0.014752088
      %v2233 = vmul.f32 %v2217, %v2232
      %v2234 = vadd.f32 %v2233, 0.112945676
      %v2235 = vmul.f32 %v2217, %v2234
      %v2236 = vadd.f32 %v2235, 0.4994258
      %v2237 = vmul.f32 %v2217, %v2236
      %v2238 = vadd.f32 %v2237, 1.0
      %v2239 = vrcp.pop %v2238
      %v2240 = vmul.f32 %v2238, %v2239
      %v2241 = vsub.f32 1.0, %v2240
      %v2242 = vmul.f32 %v2239, %v2241
      %v2243 = vadd.f32 %v2239, %v2242
      %vm2244 = vweird.f32 %v2238
      %vm2245 = vweird.f32 %v2239
      %vm2246 = vmor %vm2244, %vm2245
      %v2247 = vsel %vm2246, %v2239, %v2243
      %v2248 = vand.u32 2147483647, %v2238
      %vm2249 = vcmp.eq.f32.partialorder %v2248, 8.507059e+37
      %v2250 = vand.u32 %v2238, 2147483648
      %v2251 = vor.u32 1.1754944e-38, %v2250
      %v2252 = vsel %vm2249, %v2251, %v2247
      %v2253 = vmul.f32 %v2228, %v2252
      %v2254 = vmin.f32 %v2253, 1.0
      %v2255 = vmax.f32 %v2254, -1.0
      %v2256 = vmul.f32 %v1893, %v1893
      %v2257 = vmin.f32 16.0, %v2256
      %v2258 = vmul.f32 %v2257, 2.1237322e-06
      %v2259 = vadd.f32 %v2258, 0.00028619796
      %v2260 = vmul.f32 %v2257, %v2259
      %v2261 = vadd.f32 %v2260, 0.0036580483
      %v2262 = vmul.f32 %v2257, %v2261
      %v2263 = vadd.f32 %v2262, 0.05243302
      %v2264 = vmul.f32 %v2257, %v2263
      %v2265 = vadd.f32 %v2264, 0.18741608
      %v2266 = vmul.f32 %v2257, %v2265
      %v2267 = vadd.f32 %v2266, 1.1283791
      %v2268 = vmul.f32 %v1893, %v2267
      %v2269 = vmul.f32 %v2257, 3.8918573e-05
      %v2270 = vadd.f32 %v2269, 0.001143296
      %v2271 = vmul.f32 %v2257, %v2270
      %v2272 = vadd.f32 %v2271, 0.014752088
      %v2273 = vmul.f32 %v2257, %v2272
      %v2274 = vadd.f32 %v2273, 0.112945676
      %v2275 = vmul.f32 %v2257, %v2274
      %v2276 = vadd.f32 %v2275, 0.4994258
      %v2277 = vmul.f32 %v2257, %v2276
      %v2278 = vadd.f32 %v2277, 1.0
      %v2279 = vrcp.pop %v2278
      %v2280 = vmul.f32 %v2278, %v2279
      %v2281 = vsub.f32 1.0, %v2280
      %v2282 = vmul.f32 %v2279, %v2281
      %v2283 = vadd.f32 %v2279, %v2282
      %vm2284 = vweird.f32 %v2278
      %vm2285 = vweird.f32 %v2279
      %vm2286 = vmor %vm2284, %vm2285
      %v2287 = vsel %vm2286, %v2279, %v2283
      %v2288 = vand.u32 2147483647, %v2278
      %vm2289 = vcmp.eq.f32.partialorder %v2288, 8.507059e+37
      %v2290 = vand.u32 %v2278, 2147483648
      %v2291 = vor.u32 1.1754944e-38, %v2290
      %v2292 = vsel %vm2289, %v2291, %v2287
      %v2293 = vmul.f32 %v2268, %v2292
      %v2294 = vmin.f32 %v2293, 1.0
      %v2295 = vmax.f32 %v2294, -1.0
      %v2296 = vmul.f32 %v1894, %v1894
      %v2297 = vmin.f32 16.0, %v2296
      %v2298 = vmul.f32 %v2297, 2.1237322e-06
      %v2299 = vadd.f32 %v2298, 0.00028619796
      %v2300 = vmul.f32 %v2297, %v2299
      %v2301 = vadd.f32 %v2300, 0.0036580483
      %v2302 = vmul.f32 %v2297, %v2301
      %v2303 = vadd.f32 %v2302, 0.05243302
      %v2304 = vmul.f32 %v2297, %v2303
      %v2305 = vadd.f32 %v2304, 0.18741608
      %v2306 = vmul.f32 %v2297, %v2305
      %v2307 = vadd.f32 %v2306, 1.1283791
      %v2308 = vmul.f32 %v1894, %v2307
      %v2309 = vmul.f32 %v2297, 3.8918573e-05
      %v2310 = vadd.f32 %v2309, 0.001143296
      %v2311 = vmul.f32 %v2297, %v2310
      %v2312 = vadd.f32 %v2311, 0.014752088
      %v2313 = vmul.f32 %v2297, %v2312
      %v2314 = vadd.f32 %v2313, 0.112945676
      %v2315 = vmul.f32 %v2297, %v2314
      %v2316 = vadd.f32 %v2315, 0.4994258
      %v2317 = vmul.f32 %v2297, %v2316
      %v2318 = vadd.f32 %v2317, 1.0
      %v2319 = vrcp.pop %v2318
      %v2320 = vmul.f32 %v2318, %v2319
      %v2321 = vsub.f32 1.0, %v2320
      %v2322 = vmul.f32 %v2319, %v2321
      %v2323 = vadd.f32 %v2319, %v2322
      %vm2324 = vweird.f32 %v2318
      %vm2325 = vweird.f32 %v2319
      %vm2326 = vmor %vm2324, %vm2325
      %v2327 = vsel %vm2326, %v2319, %v2323
      %v2328 = vand.u32 2147483647, %v2318
      %vm2329 = vcmp.eq.f32.partialorder %v2328, 8.507059e+37
      %v2330 = vand.u32 %v2318, 2147483648
      %v2331 = vor.u32 1.1754944e-38, %v2330
      %v2332 = vsel %vm2329, %v2331, %v2327
      %v2333 = vmul.f32 %v2308, %v2332
      %v2334 = vmin.f32 %v2333, 1.0
      %v2335 = vmax.f32 %v2334, -1.0
      %v2336 = vmul.f32 %v1895, %v1895
      %v2337 = vmin.f32 16.0, %v2336
      %v2338 = vmul.f32 %v2337, 2.1237322e-06
      %v2339 = vadd.f32 %v2338, 0.00028619796
      %v2340 = vmul.f32 %v2337, %v2339
      %v2341 = vadd.f32 %v2340, 0.0036580483
      %v2342 = vmul.f32 %v2337, %v2341
      %v2343 = vadd.f32 %v2342, 0.05243302
      %v2344 = vmul.f32 %v2337, %v2343
      %v2345 = vadd.f32 %v2344, 0.18741608
      %v2346 = vmul.f32 %v2337, %v2345
      %v2347 = vadd.f32 %v2346, 1.1283791
      %v2348 = vmul.f32 %v1895, %v2347
      %v2349 = vmul.f32 %v2337, 3.8918573e-05
      %v2350 = vadd.f32 %v2349, 0.001143296
      %v2351 = vmul.f32 %v2337, %v2350
      %v2352 = vadd.f32 %v2351, 0.014752088
      %v2353 = vmul.f32 %v2337, %v2352
      %v2354 = vadd.f32 %v2353, 0.112945676
      %v2355 = vmul.f32 %v2337, %v2354
      %v2356 = vadd.f32 %v2355, 0.4994258
      %v2357 = vmul.f32 %v2337, %v2356
      %v2358 = vadd.f32 %v2357, 1.0
      %v2359 = vrcp.pop %v2358
      %v2360 = vmul.f32 %v2358, %v2359
      %v2361 = vsub.f32 1.0, %v2360
      %v2362 = vmul.f32 %v2359, %v2361
      %v2363 = vadd.f32 %v2359, %v2362
      %vm2364 = vweird.f32 %v2358
      %vm2365 = vweird.f32 %v2359
      %vm2366 = vmor %vm2364, %vm2365
      %v2367 = vsel %vm2366, %v2359, %v2363
      %v2368 = vand.u32 2147483647, %v2358
      %vm2369 = vcmp.eq.f32.partialorder %v2368, 8.507059e+37
      %v2370 = vand.u32 %v2358, 2147483648
      %v2371 = vor.u32 1.1754944e-38, %v2370
      %v2372 = vsel %vm2369, %v2371, %v2367
      %v2373 = vmul.f32 %v2348, %v2372
      %v2374 = vmin.f32 %v2373, 1.0
      %v2375 = vmax.f32 %v2374, -1.0
      %v2376 = vadd.f32 %v1935, 1.0
      %v2377 = vadd.f32 %v1975, 1.0
      %v2378 = vadd.f32 %v2015, 1.0
      %v2379 = vadd.f32 %v2055, 1.0
      %v2380 = vadd.f32 %v2095, 1.0
      %v2381 = vadd.f32 %v2135, 1.0
      %v2382 = vadd.f32 %v2175, 1.0
      %v2383 = vadd.f32 %v2215, 1.0
      %v2384 = vadd.f32 %v2255, 1.0
      %v2385 = vadd.f32 %v2295, 1.0
      %v2386 = vadd.f32 %v2335, 1.0
      %v2387 = vadd.f32 %v2375, 1.0
      %v2388 = vmul.f32 %v1872, %v2376
      %v2389 = vmul.f32 %v1873, %v2377
      %v2390 = vmul.f32 %v1874, %v2378
      %v2391 = vmul.f32 %v1875, %v2379
      %v2392 = vmul.f32 %v1876, %v2380
      %v2393 = vmul.f32 %v1877, %v2381
      %v2394 = vmul.f32 %v1878, %v2382
      %v2395 = vmul.f32 %v1879, %v2383
      %v2396 = vmul.f32 %v1880, %v2384
      %v2397 = vmul.f32 %v1881, %v2385
      %v2398 = vmul.f32 %v1882, %v2386
      %v2399 = vmul.f32 %v1883, %v2387
      %v2400 = vpack.c.bf16 %v2392, %v2388
      %v2401 = vpack.c.bf16 %v2393, %v2389
      %v2402 = vpack.c.bf16 %v2394, %v2390
      %v2403 = vpack.c.bf16 %v2395, %v2391
      %v2404 = vpack.c.bf16 %v2396, %v2396
      %v2405 = vpack.c.bf16 %v2397, %v2397
      %v2406 = vpack.c.bf16 %v2398, %v2398
      %v2407 = vpack.c.bf16 %v2399, %v2399
      %v2408 = vld [vmem:[%s11] sm:$0xf]
      %v2409 = vld [vmem:[%s11 + $0x4] sm:$0xf]
      %v2410 = vld [vmem:[%s11 + $0x8] sm:$0xf]
      %v2411 = vld [vmem:[%s11 + $0xc] sm:$0xf]
      %v2412 = vld [vmem:[%s11 + $0x10] sm:$0xf]
      %v2413 = vld [vmem:[%s11 + $0x14] sm:$0xf]
      %v2414 = vld [vmem:[%s11 + $0x18] sm:$0xf]
      %v2415 = vld [vmem:[%s11 + $0x1c] sm:$0xf]
      %v2416 = vld [vmem:[%s11 + $0x20] sm:$0xf]
      %v2417 = vld [vmem:[%s11 + $0x24] sm:$0xf]
      %v2418 = vld [vmem:[%s11 + $0x28] sm:$0xf]
      %v2419 = vld [vmem:[%s11 + $0x2c] sm:$0xf]
      %v2420 = vld [vmem:[%s11 + $0x30] sm:$0xf]
      %v2421 = vld [vmem:[%s11 + $0x34] sm:$0xf]
      %v2422 = vld [vmem:[%s11 + $0x38] sm:$0xf]
      %v2423 = vld [vmem:[%s11 + $0x3c] sm:$0xf]
      %v2424 = vld [vmem:[%s11 + $0x40] sm:$0xf]
      %v2425 = vld [vmem:[%s11 + $0x44] sm:$0xf]
      %v2426 = vld [vmem:[%s11 + $0x48] sm:$0xf]
      %v2427 = vld [vmem:[%s11 + $0x4c] sm:$0xf]
      %v2428 = vld [vmem:[%s11 + $0x50] sm:$0xf]
      %v2429 = vld [vmem:[%s11 + $0x54] sm:$0xf]
      %v2430 = vld [vmem:[%s11 + $0x58] sm:$0xf]
      %v2431 = vld [vmem:[%s11 + $0x5c] sm:$0xf]
      %v2432 = vld [vmem:[%s11 + $0x60] sm:$0xf]
      %v2433 = vld [vmem:[%s11 + $0x64] sm:$0xf]
      %v2434 = vld [vmem:[%s11 + $0x68] sm:$0xf]
      %v2435 = vld [vmem:[%s11 + $0x6c] sm:$0xf]
      %v2436 = vld [vmem:[%s11 + $0x70] sm:$0xf]
      %v2437 = vld [vmem:[%s11 + $0x74] sm:$0xf]
      %v2438 = vld [vmem:[%s11 + $0x78] sm:$0xf]
      %v2439 = vld [vmem:[%s11 + $0x7c] sm:$0xf]
      %v2440 = vld [vmem:[%s11 + $0x80] sm:$0xf]
      %v2441 = vld [vmem:[%s11 + $0x84] sm:$0xf]
      %v2442 = vld [vmem:[%s11 + $0x88] sm:$0xf]
      %v2443 = vld [vmem:[%s11 + $0x8c] sm:$0xf]
      %v2444 = vld [vmem:[%s11 + $0x90] sm:$0xf]
      %v2445 = vld [vmem:[%s11 + $0x94] sm:$0xf]
      %v2446 = vld [vmem:[%s11 + $0x98] sm:$0xf]
      %v2447 = vld [vmem:[%s11 + $0x9c] sm:$0xf]
      %v2448 = vld [vmem:[%s11 + $0xa0] sm:$0xf]
      %v2449 = vld [vmem:[%s11 + $0xa4] sm:$0xf]
      %v2450 = vld [vmem:[%s11 + $0xa8] sm:$0xf]
      %v2451 = vld [vmem:[%s11 + $0xac] sm:$0xf]
      %v2452 = vld [vmem:[%s11 + $0xb0] sm:$0xf]
      %v2453 = vld [vmem:[%s11 + $0xb4] sm:$0xf]
      %v2454 = vld [vmem:[%s11 + $0xb8] sm:$0xf]
      %v2455 = vld [vmem:[%s11 + $0xbc] sm:$0xf]
      %v2456 = vld [vmem:[%s11 + $0xc0] sm:$0xf]
      %v2457 = vld [vmem:[%s11 + $0xc4] sm:$0xf]
      %v2458 = vld [vmem:[%s11 + $0xc8] sm:$0xf]
      %v2459 = vld [vmem:[%s11 + $0xcc] sm:$0xf]
      %v2460 = vld [vmem:[%s11 + $0xd0] sm:$0xf]
      %v2461 = vld [vmem:[%s11 + $0xd4] sm:$0xf]
      %v2462 = vld [vmem:[%s11 + $0xd8] sm:$0xf]
      %v2463 = vld [vmem:[%s11 + $0xdc] sm:$0xf]
      %v2464 = vld [vmem:[%s11 + $0xe0] sm:$0xf]
      %v2465 = vld [vmem:[%s11 + $0xe4] sm:$0xf]
      %v2466 = vld [vmem:[%s11 + $0xe8] sm:$0xf]
      %v2467 = vld [vmem:[%s11 + $0xec] sm:$0xf]
      %v2468 = vld [vmem:[%s11 + $0xf0] sm:$0xf]
      %v2469 = vld [vmem:[%s11 + $0xf4] sm:$0xf]
      %v2470 = vld [vmem:[%s11 + $0xf8] sm:$0xf]
      %v2471 = vld [vmem:[%s11 + $0xfc] sm:$0xf]
      %v2536 = vunpack.c.l.b16 %v2408
      %v2537 = vunpack.c.l.b16 %v2409
      %v2538 = vunpack.c.l.b16 %v2410
      %v2539 = vunpack.c.l.b16 %v2411
      %v2540 = vunpack.c.l.b16 %v2412
      %v2541 = vunpack.c.l.b16 %v2413
      %v2542 = vunpack.c.l.b16 %v2414
      %v2543 = vunpack.c.l.b16 %v2415
      %v2544 = vunpack.c.l.b16 %v2416
      %v2545 = vunpack.c.l.b16 %v2417
      %v2546 = vunpack.c.l.b16 %v2418
      %v2547 = vunpack.c.l.b16 %v2419
      %v2548 = vunpack.c.l.b16 %v2420
      %v2549 = vunpack.c.l.b16 %v2421
      %v2550 = vunpack.c.l.b16 %v2422
      %v2551 = vunpack.c.l.b16 %v2423
      %v2552 = vunpack.c.l.b16 %v2424
      %v2553 = vunpack.c.l.b16 %v2425
      %v2554 = vunpack.c.l.b16 %v2426
      %v2555 = vunpack.c.l.b16 %v2427
      %v2556 = vunpack.c.l.b16 %v2428
      %v2557 = vunpack.c.l.b16 %v2429
      %v2558 = vunpack.c.l.b16 %v2430
      %v2559 = vunpack.c.l.b16 %v2431
      %v2560 = vunpack.c.l.b16 %v2432
      %v2561 = vunpack.c.l.b16 %v2433
      %v2562 = vunpack.c.l.b16 %v2434
      %v2563 = vunpack.c.l.b16 %v2435
      %v2564 = vunpack.c.l.b16 %v2436
      %v2565 = vunpack.c.l.b16 %v2437
      %v2566 = vunpack.c.l.b16 %v2438
      %v2567 = vunpack.c.l.b16 %v2439
      %v2568 = vunpack.c.l.b16 %v2440
      %v2569 = vunpack.c.l.b16 %v2441
      %v2570 = vunpack.c.l.b16 %v2442
      %v2571 = vunpack.c.l.b16 %v2443
      %v2572 = vunpack.c.l.b16 %v2444
      %v2573 = vunpack.c.l.b16 %v2445
      %v2574 = vunpack.c.l.b16 %v2446
      %v2575 = vunpack.c.l.b16 %v2447
      %v2576 = vunpack.c.l.b16 %v2448
      %v2577 = vunpack.c.l.b16 %v2449
      %v2578 = vunpack.c.l.b16 %v2450
      %v2579 = vunpack.c.l.b16 %v2451
      %v2580 = vunpack.c.l.b16 %v2452
      %v2581 = vunpack.c.l.b16 %v2453
      %v2582 = vunpack.c.l.b16 %v2454
      %v2583 = vunpack.c.l.b16 %v2455
      %v2584 = vunpack.c.l.b16 %v2456
      %v2585 = vunpack.c.l.b16 %v2457
      %v2586 = vunpack.c.l.b16 %v2458
      %v2587 = vunpack.c.l.b16 %v2459
      %v2588 = vunpack.c.l.b16 %v2460
      %v2589 = vunpack.c.l.b16 %v2461
      %v2590 = vunpack.c.l.b16 %v2462
      %v2591 = vunpack.c.l.b16 %v2463
      %v2592 = vunpack.c.l.b16 %v2464
      %v2593 = vunpack.c.l.b16 %v2465
      %v2594 = vunpack.c.l.b16 %v2466
      %v2595 = vunpack.c.l.b16 %v2467
      %v2596 = vunpack.c.l.b16 %v2468
      %v2597 = vunpack.c.l.b16 %v2469
      %v2598 = vunpack.c.l.b16 %v2470
      %v2599 = vunpack.c.l.b16 %v2471
      %v2600 = vpack.c.b16 %v2537, %v2536
      %v2601 = vpack.c.b16 %v2539, %v2538
      %v2602 = vpack.c.b16 %v2541, %v2540
      %v2603 = vpack.c.b16 %v2543, %v2542
      %v2604 = vpack.c.b16 %v2545, %v2544
      %v2605 = vpack.c.b16 %v2547, %v2546
      %v2606 = vpack.c.b16 %v2549, %v2548
      %v2607 = vpack.c.b16 %v2551, %v2550
      %v2608 = vpack.c.b16 %v2553, %v2552
      %v2609 = vpack.c.b16 %v2555, %v2554
      %v2610 = vpack.c.b16 %v2557, %v2556
      %v2611 = vpack.c.b16 %v2559, %v2558
      %v2612 = vpack.c.b16 %v2561, %v2560
      %v2613 = vpack.c.b16 %v2563, %v2562
      %v2614 = vpack.c.b16 %v2565, %v2564
      %v2615 = vpack.c.b16 %v2567, %v2566
      %v2616 = vpack.c.b16 %v2569, %v2568
      %v2617 = vpack.c.b16 %v2571, %v2570
      %v2618 = vpack.c.b16 %v2573, %v2572
      %v2619 = vpack.c.b16 %v2575, %v2574
      %v2620 = vpack.c.b16 %v2577, %v2576
      %v2621 = vpack.c.b16 %v2579, %v2578
      %v2622 = vpack.c.b16 %v2581, %v2580
      %v2623 = vpack.c.b16 %v2583, %v2582
      %v2624 = vpack.c.b16 %v2585, %v2584
      %v2625 = vpack.c.b16 %v2587, %v2586
      %v2626 = vpack.c.b16 %v2589, %v2588
      %v2627 = vpack.c.b16 %v2591, %v2590
      %v2628 = vpack.c.b16 %v2593, %v2592
      %v2629 = vpack.c.b16 %v2595, %v2594
      %v2630 = vpack.c.b16 %v2597, %v2596
      %v2631 = vpack.c.b16 %v2599, %v2598
      %2664 = vmatpush.bf16.msra.mxu0 %v2607
      %2665 = vmatpush.bf16.msra.mxu0 %v2606
      %2666 = vmatpush.bf16.msra.mxu0 %v2605
      %2667 = vmatpush.bf16.msra.mxu0 %v2604
      %2668 = vmatpush.bf16.msra.mxu0 %v2603
      %2669 = vmatpush.bf16.msra.mxu0 %v2602
      %2670 = vmatpush.bf16.msra.mxu0 %v2601
      %2671 = vmatpush.bf16.msra.mxu0 %v2600
      %2672 = vmatmul.bf16.gmra.mxu0 %v2400
      %v2673 = vpop.f32.mrf.mxu0
      %v2674 = vadd.f32 0.0, %v2673
      %v2675 = vpop.f32.mrf.mxu0
      %v2676 = vadd.f32 0.0, %v2675
      %2677 = vmatmul.bf16.gmra.mxu0 %v2404
      %v2678 = vpop.f32.mrf.mxu0
      %v2679 = vadd.f32 0.0, %v2678
      %v2680 = vpop.f32.mrf.mxu0
      %2681 = vdwg.mxu0
      %2682 = vmatpush.bf16.msra.mxu0 %v2615
      %2683 = vmatpush.bf16.msra.mxu0 %v2614
      %2684 = vmatpush.bf16.msra.mxu0 %v2613
      %2685 = vmatpush.bf16.msra.mxu0 %v2612
      %2686 = vmatpush.bf16.msra.mxu0 %v2611
      %2687 = vmatpush.bf16.msra.mxu0 %v2610
      %2688 = vmatpush.bf16.msra.mxu0 %v2609
      %2689 = vmatpush.bf16.msra.mxu0 %v2608
      %2690 = vmatmul.bf16.gmra.mxu0 %v2401
      %v2691 = vpop.f32.mrf.mxu0
      %v2692 = vadd.f32 %v2674, %v2691
      %v2693 = vpop.f32.mrf.mxu0
      %v2694 = vadd.f32 %v2676, %v2693
      %2695 = vmatmul.bf16.gmra.mxu0 %v2405
      %v2696 = vpop.f32.mrf.mxu0
      %v2697 = vadd.f32 %v2679, %v2696
      %v2698 = vpop.f32.mrf.mxu0
      %2699 = vdwg.mxu0
      %2700 = vmatpush.bf16.msra.mxu0 %v2623
      %2701 = vmatpush.bf16.msra.mxu0 %v2622
      %2702 = vmatpush.bf16.msra.mxu0 %v2621
      %2703 = vmatpush.bf16.msra.mxu0 %v2620
      %2704 = vmatpush.bf16.msra.mxu0 %v2619
      %2705 = vmatpush.bf16.msra.mxu0 %v2618
      %2706 = vmatpush.bf16.msra.mxu0 %v2617
      %2707 = vmatpush.bf16.msra.mxu0 %v2616
      %2708 = vmatmul.bf16.gmra.mxu0 %v2402
      %v2709 = vpop.f32.mrf.mxu0
      %v2710 = vadd.f32 %v2692, %v2709
      %v2711 = vpop.f32.mrf.mxu0
      %v2712 = vadd.f32 %v2694, %v2711
      %2713 = vmatmul.bf16.gmra.mxu0 %v2406
      %v2714 = vpop.f32.mrf.mxu0
      %v2715 = vadd.f32 %v2697, %v2714
      %v2716 = vpop.f32.mrf.mxu0
      %2717 = vdwg.mxu0
      %2718 = vmatpush.bf16.msra.mxu0 %v2631
      %2719 = vmatpush.bf16.msra.mxu0 %v2630
      %2720 = vmatpush.bf16.msra.mxu0 %v2629
      %2721 = vmatpush.bf16.msra.mxu0 %v2628
      %2722 = vmatpush.bf16.msra.mxu0 %v2627
      %2723 = vmatpush.bf16.msra.mxu0 %v2626
      %2724 = vmatpush.bf16.msra.mxu0 %v2625
      %2725 = vmatpush.bf16.msra.mxu0 %v2624
      %2726 = vmatmul.bf16.gmra.mxu0 %v2403
      %v2727 = vpop.f32.mrf.mxu0
      %v2728 = vadd.f32 %v2710, %v2727
      %v2729 = vpop.f32.mrf.mxu0
      %v2730 = vadd.f32 %v2712, %v2729
      %2731 = vmatmul.bf16.gmra.mxu0 %v2407
      %v2732 = vpop.f32.mrf.mxu0
      %v2733 = vadd.f32 %v2715, %v2732
      %v2734 = vpop.f32.mrf.mxu0
      %2735 = vdwg.mxu0
      %v2736 = vadd.f32 %v1517, %v2728
      %v2737 = vadd.f32 %v1518, %v2730
      %v2738 = vadd.f32 %v1519, %v2733
      %v2739 = vld [vmem:[%s12] sm:$0x1]
      %v2741 = vperm.slane %v2739, 0
      %v2743 = vadd.f32 %v2736, %v2741
      %v2744 = vadd.f32 %v2737, %v2741
      %v2745 = vadd.f32 %v2738, %v2741
      %2746 = vst [vmem:[%s440] sm:$0xff] %v2743
      %2747 = vst [vmem:[%s440 + $0x8] sm:$0xff] %v2744
      %2748 = vst [vmem:[%s440 + $0x10] sm:$0x1] %v2745
      %p2749 = scmp.lt.s32.totalorder %s24, 1
      %s2750 = scalar_select %p2749, %s24, 1
      %s2751 = smul.addr %s2750, 3
      %s2752 = smul.addr %s2751, 8
      %s2753 = scalar_lea.vmem %s13, %s2752
      // Predicated region
      $region73: #{_lambda_.7} parent=71 // pred_check
        %p2754 = pneg %p320
      $region74: #{_lambda_.7} parent=71 // pred_check_branch
        %2756 = sbr.rel (%p2754) target = $region76
      $region75: #{_lambda_.7} parent=71 // pred_region
        _
      $region76: #{_lambda_.7} parent=71 // pred_fallthru
        _
    $region72: #{_lambda_.7} parent=5 // pred_fallthru
      _
    %p2757 = scmp.le.s32.totalorder 2, %s19
    // Predicated region
    $region77: #{_lambda_.7} parent=5 // pred_check
      %p2758 = pneg %p2757
    $region78: #{_lambda_.7} parent=5 // pred_check_branch
      %2760 = sbr.rel (%p2758) target = $region80
    $region79: #{_lambda_.7} parent=5 // pred_region
      %s2761 = ssub.s32 %s19, 2
      // Predicated region
      $region81: #{_lambda_.7} parent=79 // pred_check
        %p2762 = pneg %p326
      $region82: #{_lambda_.7} parent=79 // pred_check_branch
        %2764 = sbr.rel (%p2762) target = $region84
      $region83: #{_lambda_.7} parent=79 // pred_region
        %p2765 = scmp.lt.s32.totalorder %s25, 1
        %s2766 = scalar_select %p2765, %s25, 1
        %s2767 = smul.addr %s2766, 3
        %s2768 = smul.addr %s2767, 8
        %s2769 = scalar_lea.vmem %s13, %s2768
      $region84: #{_lambda_.7} parent=79 // pred_fallthru
        _
    $region80: #{_lambda_.7} parent=5 // pred_fallthru
      _
  $region6: #{_lambda_.7} parent=0 // loop_footer
    %s23 = sadd.s32 1, %s19
  $region7: #{_lambda_.7} parent=0 // loop_footer_branch
    %18 = sbr.rel target = $region3
  $region8: #{_lambda_.7} parent=0 // loop_exit
    _

</llo_original>
